<compile_context>
chip_gen: v5e
topology: v5e:2x2
jax: 0.10.0
libtpu: 0.0.40
codegen_flags: <defaults>
</compile_context>

<pallas_src>
import functools

import jax
import jax.numpy as jnp
from jax import lax
from jax.experimental import pallas as pl
from jax.experimental.pallas import tpu as pltpu

ZETA = 10      # ζ: number of [System, Activation] repetitions
E = 0.3        # e: decision band half-width


def _bstc_kernel(x_ref, w_ref, b_ref, mask_ref, out_ref, stk_ref,
                 *, n_layers, nc, hw, w, e):
    """All ζ layers in one kernel invocation; decision emitted at the end.

    x_ref   : (NC, HW)            f32  input, rows = (sample, channel), lanes = pixels
    w_ref   : (ζ, NC, 9*NC)       f32  sample-block-diagonal, tap-stacked weights
    b_ref   : (ζ, NC, 1)          f32  per-layer bias (replicated over samples)
    mask_ref: (9, NC, HW)         f32  multiplicative zero-padding border masks
    out_ref : (NC, HW)            f32  binary decision {0.0, 0.5, 1.0}
    stk_ref : (9*NC, HW)          f32  VMEM scratch: stacked shifted planes
    """
    y = x_ref[...]                                     # (NC, HW) running activation

    for layer in range(n_layers):
        # ---- System: 3x3 "same" conv = 9 lane-rolls (XLU) + 1 mask vmul per
        # tap (VPU) staged into the stacked scratch, then ONE fused 72-deep
        # channel/tap-mix matmul on the MXU (bias added once after). ----
        for kh in range(3):
            for kw in range(3):
                t = kh * 3 + kw
                delta = (kh - 1) * w + (kw - 1)        # static lane offset
                if delta == 0:
                    plane = y
                else:
                    plane = pltpu.roll(y, (-delta) % hw, axis=1) * mask_ref[t]
                stk_ref[t * nc:(t + 1) * nc, :] = plane
        acc = jnp.dot(w_ref[layer], stk_ref[...],
                      preferred_element_type=jnp.float32) + b_ref[layer]

        # ---- Activation: global abs-max normaliser + tanh (exact f32) ----
        m = jnp.max(jnp.abs(acc))
        y = jnp.tanh(acc * (3.0 / (m + 1.0)))

    # ---- binary_decision: one lane/sublane-dense unmasked store ----
    dec = jnp.full(y.shape, 0.5, jnp.float32)
    dec = jnp.where(jnp.abs(y - 0.5) <= e, 1.0, dec)
    dec = jnp.where(jnp.abs(y + 0.5) <= e, 0.0, dec)
    out_ref[...] = dec


def bstc_forward(x_nchw, weights, biases):
    """BSTC.forward.

    x_nchw : (N, C, H, W) f32  -- same layout as the PyTorch module
    weights: (ζ, 9, C, C) f32  -- [layer, tap=kh*3+kw, C_out, C_in]
    biases : (ζ, C)       f32
    returns: (N, C, H, W) f32  with values in {0.0, 0.5, 1.0}
    """
    N, C, H, W = x_nchw.shape
    HW = H * W
    NC = N * C
    # Lane/sublane-dense layout assumptions (see review correctness concerns).
    assert HW % 128 == 0, "H*W must be a multiple of 128 for the lane-dense layout"
    assert NC % 8 == 0, "N*C must be a multiple of 8 for the sublane-dense layout"
    assert H >= 2 and W >= 2, "3x3 'same' conv masking assumes H, W >= 2"

    x_r = x_nchw.reshape(NC, HW).astype(jnp.float32)        # free, contiguous

    # Sample-block-diagonal, tap-stacked weights: (ζ, NC, 9*NC).
    #   W_big[l, n*C+co, t*NC + m*C+ci] = weights[l, t, co, ci] * (n == m)
    w_big = jnp.einsum(
        "nm,ltoc->lnotmc",
        jnp.eye(N, dtype=jnp.float32),
        weights.astype(jnp.float32),
    ).reshape(ZETA, NC, 9 * NC)
    b_big = jnp.tile(biases.astype(jnp.float32)[:, None, :],
                     (1, N, 1)).reshape(ZETA, NC, 1)

    # Zero-padding border masks (multiplicative, per tap), hoisted out of the
    # kernel entirely.  Mask depends only on the destination pixel.
    pix = jnp.arange(HW, dtype=jnp.int32)
    row = pix // W
    col = pix % W
    mask_list = []
    for kh in range(3):
        for kw in range(3):
            oh, ow = kh - 1, kw - 1
            valid = jnp.ones((HW,), dtype=bool)
            if oh == -1:
                valid = valid & (row >= 1)
            elif oh == 1:
                valid = valid & (row <= H - 2)
            if ow == -1:
                valid = valid & (col >= 1)
            elif ow == 1:
                valid = valid & (col <= W - 2)
            mask_list.append(valid)
    masks = jnp.stack(mask_list).astype(jnp.float32)         # (9, HW)
    masks = jnp.broadcast_to(masks[:, None, :], (9, NC, HW))

    out = pl.pallas_call(
        functools.partial(_bstc_kernel, n_layers=ZETA, nc=NC, hw=HW, w=W, e=E),
        out_shape=jax.ShapeDtypeStruct((NC, HW), jnp.float32),
        grid_spec=pltpu.PrefetchScalarGridSpec(
            num_scalar_prefetch=0,
            grid=(1,),                                       # single step: all layers in-kernel
            in_specs=[
                pl.BlockSpec((NC, HW), lambda i: (0, 0)),                 # input
                pl.BlockSpec((ZETA, NC, 9 * NC), lambda i: (0, 0, 0)),    # all weights (resident)
                pl.BlockSpec((ZETA, NC, 1), lambda i: (0, 0, 0)),         # all biases (resident)
                pl.BlockSpec((9, NC, HW), lambda i: (0, 0, 0)),           # border masks (resident)
            ],
            out_specs=pl.BlockSpec((NC, HW), lambda i: (0, 0)),
            scratch_shapes=[pltpu.VMEM((9 * NC, HW), jnp.float32)],       # stacked planes
        ),
        compiler_params=pltpu.CompilerParams(
            dimension_semantics=("arbitrary",),
        ),
    )(x_r, w_big, b_big, masks)

    return out.reshape(N, C, H, W)


def make_params(key, c):
    """Deterministic Conv2d-style init (uniform(-1/sqrt(fan_in), 1/sqrt(fan_in)))."""
    kw_, kb = jax.random.split(key)
    fan_in = c * 3 * 3
    bound = 1.0 / (fan_in ** 0.5)
    weights = jax.random.uniform(kw_, (ZETA, 9, c, c), jnp.float32,
                                 minval=-bound, maxval=bound)
    biases = jax.random.uniform(kb, (ZETA, c), jnp.float32,
                                minval=-bound, maxval=bound)
    return weights, biases


def bstc_reference(x_nchw, weights, biases):
    """Pure-XLA reference of the same forward pass (for validation)."""
    N, C, H, W = x_nchw.shape
    y = x_nchw.astype(jnp.float32)
    for l in range(ZETA):
        w_oihw = jnp.transpose(weights[l], (1, 2, 0)).reshape(C, C, 3, 3)
        y = lax.conv_general_dilated(
            y, w_oihw, window_strides=(1, 1), padding=((1, 1), (1, 1)),
            dimension_numbers=("NCHW", "OIHW", "NCHW"))
        y = y + biases[l][None, :, None, None]
        y = jnp.tanh(3.0 * y / (jnp.max(jnp.abs(y)) + 1.0))
    dec = jnp.full_like(y, 0.5)
    dec = jnp.where(jnp.abs(y - 0.5) <= E, 1.0, dec)
    dec = jnp.where(jnp.abs(y + 0.5) <= E, 0.0, dec)
    return dec


if __name__ == "__main__":
    N, C, H, W = 2, 4, 16, 16          # small shapes; kwargs['outch'] == C
    key = jax.random.PRNGKey(0)
    kx, kp = jax.random.split(key)

    x = jax.random.normal(kx, (N, C, H, W), jnp.float32)   # bipolar input, NCHW
    weights, biases = make_params(kp, C)

    out = jax.jit(bstc_forward)(x, weights, biases)
    out = jax.block_until_ready(out)

    assert out.shape == (N, C, H, W)
    assert out.dtype == jnp.float32
    # decisions must be exactly 0.0, 0.5 or 1.0
    vals = jnp.unique(out)
    assert bool(jnp.all((vals == 0.0) | (vals == 0.5) | (vals == 1.0)))

    # Validate against a pure-XLA reference; allow rare band-edge flips caused
    # by f32 accumulation-order differences (decision bands are ±0.3 wide).
    ref = bstc_reference(x, weights, biases)
    match = float(jnp.mean((out == ref).astype(jnp.float32)))
    assert match >= 0.99, f"decision mismatch vs reference: match={match:.4f}"

    print("KERNEL_OK")
</pallas_src>

<mosaic_0001>
module attributes {stable_mosaic.version = 11 : i64} {
  func.func @_bstc_kernel(%arg0: i32, %arg1: memref<8x256xf32, #tpu.memory_space<vmem>>, %arg2: memref<10x8x72xf32, #tpu.memory_space<vmem>>, %arg3: memref<10x8x1xf32, #tpu.memory_space<vmem>>, %arg4: memref<9x8x256xf32, #tpu.memory_space<vmem>>, %arg5: memref<8x256xf32, #tpu.memory_space<vmem>>, %arg6: memref<72x256xf32, #tpu.memory_space<vmem>>) attributes {dimension_semantics = [#tpu.dimension_semantics<arbitrary>], iteration_bounds = array<i64: 1>, scalar_prefetch = 0 : i64, scratch_operands = 1 : i64, tpu.core_type = #tpu.core_type<tc>, window_params = [{pipeline_mode = #tpu.pipeline_mode<synchronous>, transform_indices = @transform_0, window_bounds = array<i64: 8, 256>}, {pipeline_mode = #tpu.pipeline_mode<synchronous>, transform_indices = @transform_1, window_bounds = array<i64: 10, 8, 72>}, {pipeline_mode = #tpu.pipeline_mode<synchronous>, transform_indices = @transform_2, window_bounds = array<i64: 10, 8, 1>}, {pipeline_mode = #tpu.pipeline_mode<synchronous>, transform_indices = @transform_3, window_bounds = array<i64: 9, 8, 256>}, {pipeline_mode = #tpu.pipeline_mode<synchronous>, transform_indices = @transform_4, window_bounds = array<i64: 8, 256>}]} {
    %c0 = arith.constant 0 : index
    %c0_0 = arith.constant 0 : index
    %0 = vector.load %arg1[%c0, %c0_0] : memref<8x256xf32, #tpu.memory_space<vmem>>, vector<8x256xf32>
    %c17_i32 = arith.constant 17 : i32
    %1 = tpu.dynamic_rotate %0 by %c17_i32 dim 1 : vector<8x256xf32>, i32 -> vector<8x256xf32>
    %c0_1 = arith.constant 0 : index
    %c0_2 = arith.constant 0 : index
    %c0_3 = arith.constant 0 : index
    %2 = vector.load %arg4[%c0_1, %c0_2, %c0_3] : memref<9x8x256xf32, #tpu.memory_space<vmem>>, vector<1x8x256xf32>
    %3 = vector.shape_cast %2 : vector<1x8x256xf32> to vector<8x256xf32>
    %4 = arith.mulf %1, %3 : vector<8x256xf32>
    %c0_4 = arith.constant 0 : index
    %c0_5 = arith.constant 0 : index
    %5 = vector.load %arg6[%c0_4, %c0_5] : memref<72x256xf32, #tpu.memory_space<vmem>>, vector<8x256xf32>
    tpu.vector_store %arg6[%c0_4, %c0_5], %4 {strides = array<i32>} : memref<72x256xf32, #tpu.memory_space<vmem>>, vector<8x256xf32>,
    %c16_i32 = arith.constant 16 : i32
    %6 = tpu.dynamic_rotate %0 by %c16_i32 dim 1 : vector<8x256xf32>, i32 -> vector<8x256xf32>
    %c1 = arith.constant 1 : index
    %c0_6 = arith.constant 0 : index
    %c0_7 = arith.constant 0 : index
    %7 = vector.load %arg4[%c1, %c0_6, %c0_7] : memref<9x8x256xf32, #tpu.memory_space<vmem>>, vector<1x8x256xf32>
    %8 = vector.shape_cast %7 : vector<1x8x256xf32> to vector<8x256xf32>
    %9 = arith.mulf %6, %8 : vector<8x256xf32>
    %c8 = arith.constant 8 : index
    %c0_8 = arith.constant 0 : index
    %10 = vector.load %arg6[%c8, %c0_8] : memref<72x256xf32, #tpu.memory_space<vmem>>, vector<8x256xf32>
    tpu.vector_store %arg6[%c8, %c0_8], %9 {strides = array<i32>} : memref<72x256xf32, #tpu.memory_space<vmem>>, vector<8x256xf32>,
    %c15_i32 = arith.constant 15 : i32
    %11 = tpu.dynamic_rotate %0 by %c15_i32 dim 1 : vector<8x256xf32>, i32 -> vector<8x256xf32>
    %c2 = arith.constant 2 : index
    %c0_9 = arith.constant 0 : index
    %c0_10 = arith.constant 0 : index
    %12 = vector.load %arg4[%c2, %c0_9, %c0_10] : memref<9x8x256xf32, #tpu.memory_space<vmem>>, vector<1x8x256xf32>
    %13 = vector.shape_cast %12 : vector<1x8x256xf32> to vector<8x256xf32>
    %14 = arith.mulf %11, %13 : vector<8x256xf32>
    %c16 = arith.constant 16 : index
    %c0_11 = arith.constant 0 : index
    %15 = vector.load %arg6[%c16, %c0_11] : memref<72x256xf32, #tpu.memory_space<vmem>>, vector<8x256xf32>
    tpu.vector_store %arg6[%c16, %c0_11], %14 {strides = array<i32>} : memref<72x256xf32, #tpu.memory_space<vmem>>, vector<8x256xf32>,
    %c1_i32 = arith.constant 1 : i32
    %16 = tpu.dynamic_rotate %0 by %c1_i32 dim 1 : vector<8x256xf32>, i32 -> vector<8x256xf32>
    %c3 = arith.constant 3 : index
    %c0_12 = arith.constant 0 : index
    %c0_13 = arith.constant 0 : index
    %17 = vector.load %arg4[%c3, %c0_12, %c0_13] : memref<9x8x256xf32, #tpu.memory_space<vmem>>, vector<1x8x256xf32>
    %18 = vector.shape_cast %17 : vector<1x8x256xf32> to vector<8x256xf32>
    %19 = arith.mulf %16, %18 : vector<8x256xf32>
    %c24 = arith.constant 24 : index
    %c0_14 = arith.constant 0 : index
    %20 = vector.load %arg6[%c24, %c0_14] : memref<72x256xf32, #tpu.memory_space<vmem>>, vector<8x256xf32>
    tpu.vector_store %arg6[%c24, %c0_14], %19 {strides = array<i32>} : memref<72x256xf32, #tpu.memory_space<vmem>>, vector<8x256xf32>,
    %c32 = arith.constant 32 : index
    %c0_15 = arith.constant 0 : index
    %21 = vector.load %arg6[%c32, %c0_15] : memref<72x256xf32, #tpu.memory_space<vmem>>, vector<8x256xf32>
    tpu.vector_store %arg6[%c32, %c0_15], %0 {strides = array<i32>} : memref<72x256xf32, #tpu.memory_space<vmem>>, vector<8x256xf32>,
    %c255_i32 = arith.constant 255 : i32
    %22 = tpu.dynamic_rotate %0 by %c255_i32 dim 1 : vector<8x256xf32>, i32 -> vector<8x256xf32>
    %c5 = arith.constant 5 : index
    %c0_16 = arith.constant 0 : index
    %c0_17 = arith.constant 0 : index
    %23 = vector.load %arg4[%c5, %c0_16, %c0_17] : memref<9x8x256xf32, #tpu.memory_space<vmem>>, vector<1x8x256xf32>
    %24 = vector.shape_cast %23 : vector<1x8x256xf32> to vector<8x256xf32>
    %25 = arith.mulf %22, %24 : vector<8x256xf32>
    %c40 = arith.constant 40 : index
    %c0_18 = arith.constant 0 : index
    %26 = vector.load %arg6[%c40, %c0_18] : memref<72x256xf32, #tpu.memory_space<vmem>>, vector<8x256xf32>
    tpu.vector_store %arg6[%c40, %c0_18], %25 {strides = array<i32>} : memref<72x256xf32, #tpu.memory_space<vmem>>, vector<8x256xf32>,
    %c241_i32 = arith.constant 241 : i32
    %27 = tpu.dynamic_rotate %0 by %c241_i32 dim 1 : vector<8x256xf32>, i32 -> vector<8x256xf32>
    %c6 = arith.constant 6 : index
    %c0_19 = arith.constant 0 : index
    %c0_20 = arith.constant 0 : index
    %28 = vector.load %arg4[%c6, %c0_19, %c0_20] : memref<9x8x256xf32, #tpu.memory_space<vmem>>, vector<1x8x256xf32>
    %29 = vector.shape_cast %28 : vector<1x8x256xf32> to vector<8x256xf32>
    %30 = arith.mulf %27, %29 : vector<8x256xf32>
    %c48 = arith.constant 48 : index
    %c0_21 = arith.constant 0 : index
    %31 = vector.load %arg6[%c48, %c0_21] : memref<72x256xf32, #tpu.memory_space<vmem>>, vector<8x256xf32>
    tpu.vector_store %arg6[%c48, %c0_21], %30 {strides = array<i32>} : memref<72x256xf32, #tpu.memory_space<vmem>>, vector<8x256xf32>,
    %c240_i32 = arith.constant 240 : i32
    %32 = tpu.dynamic_rotate %0 by %c240_i32 dim 1 : vector<8x256xf32>, i32 -> vector<8x256xf32>
    %c7 = arith.constant 7 : index
    %c0_22 = arith.constant 0 : index
    %c0_23 = arith.constant 0 : index
    %33 = vector.load %arg4[%c7, %c0_22, %c0_23] : memref<9x8x256xf32, #tpu.memory_space<vmem>>, vector<1x8x256xf32>
    %34 = vector.shape_cast %33 : vector<1x8x256xf32> to vector<8x256xf32>
    %35 = arith.mulf %32, %34 : vector<8x256xf32>
    %c56 = arith.constant 56 : index
    %c0_24 = arith.constant 0 : index
    %36 = vector.load %arg6[%c56, %c0_24] : memref<72x256xf32, #tpu.memory_space<vmem>>, vector<8x256xf32>
    tpu.vector_store %arg6[%c56, %c0_24], %35 {strides = array<i32>} : memref<72x256xf32, #tpu.memory_space<vmem>>, vector<8x256xf32>,
    %c239_i32 = arith.constant 239 : i32
    %37 = tpu.dynamic_rotate %0 by %c239_i32 dim 1 : vector<8x256xf32>, i32 -> vector<8x256xf32>
    %c8_25 = arith.constant 8 : index
    %c0_26 = arith.constant 0 : index
    %c0_27 = arith.constant 0 : index
    %38 = vector.load %arg4[%c8_25, %c0_26, %c0_27] : memref<9x8x256xf32, #tpu.memory_space<vmem>>, vector<1x8x256xf32>
    %39 = vector.shape_cast %38 : vector<1x8x256xf32> to vector<8x256xf32>
    %40 = arith.mulf %37, %39 : vector<8x256xf32>
    %c64 = arith.constant 64 : index
    %c0_28 = arith.constant 0 : index
    %41 = vector.load %arg6[%c64, %c0_28] : memref<72x256xf32, #tpu.memory_space<vmem>>, vector<8x256xf32>
    tpu.vector_store %arg6[%c64, %c0_28], %40 {strides = array<i32>} : memref<72x256xf32, #tpu.memory_space<vmem>>, vector<8x256xf32>,
    %c0_29 = arith.constant 0 : index
    %c0_30 = arith.constant 0 : index
    %c0_31 = arith.constant 0 : index
    %42 = vector.load %arg2[%c0_29, %c0_30, %c0_31] : memref<10x8x72xf32, #tpu.memory_space<vmem>>, vector<1x8x72xf32>
    %43 = vector.shape_cast %42 : vector<1x8x72xf32> to vector<8x72xf32>
    %c0_32 = arith.constant 0 : index
    %c0_33 = arith.constant 0 : index
    %44 = vector.load %arg6[%c0_32, %c0_33] : memref<72x256xf32, #tpu.memory_space<vmem>>, vector<72x256xf32>
    %cst = arith.constant dense<0.000000e+00> : vector<8x256xf32>
    %45 = tpu.matmul %43, %44, %cst {dimension_numbers = #tpu.dot_dimension_numbers<[1], [0], [0], [1], [0, 0, 1, 1], [], []>} : vector<8x72xf32>, vector<72x256xf32>, vector<8x256xf32> -> vector<8x256xf32>
    %c0_34 = arith.constant 0 : index
    %c0_35 = arith.constant 0 : index
    %c0_36 = arith.constant 0 : index
    %46 = vector.load %arg3[%c0_34, %c0_35, %c0_36] : memref<10x8x1xf32, #tpu.memory_space<vmem>>, vector<1x8x1xf32>
    %47 = vector.shape_cast %46 : vector<1x8x1xf32> to vector<8x1xf32>
    %48 = vector.broadcast %47 : vector<8x1xf32> to vector<8x256xf32>
    %49 = arith.addf %45, %48 : vector<8x256xf32>
    %50 = math.absf %49 : vector<8x256xf32>
    %51 = vector.shape_cast %50 : vector<8x256xf32> to vector<1x8x256xf32>
    %cst_37 = arith.constant dense<0xFF800000> : vector<1xf32>
    %52 = vector.multi_reduction <maximumf>, %51, %cst_37 [1, 2] : vector<1x8x256xf32> to vector<1xf32>
    %53 = vector.shape_cast %52 : vector<1xf32> to vector<1x1x1xf32>
    %54 = vector.extract %53[0, 0, 0] : f32 from vector<1x1x1xf32>
    %cst_38 = arith.constant 1.000000e+00 : f32
    %55 = arith.addf %54, %cst_38 : f32
    %cst_39 = arith.constant 3.000000e+00 : f32
    %56 = arith.divf %cst_39, %55 : f32
    %57 = vector.broadcast %56 : f32 to vector<8x256xf32>
    %58 = arith.mulf %49, %57 : vector<8x256xf32>
    %59 = math.tanh %58 : vector<8x256xf32>
    %c17_i32_40 = arith.constant 17 : i32
    %60 = tpu.dynamic_rotate %59 by %c17_i32_40 dim 1 : vector<8x256xf32>, i32 -> vector<8x256xf32>
    %c0_41 = arith.constant 0 : index
    %c0_42 = arith.constant 0 : index
    %c0_43 = arith.constant 0 : index
    %61 = vector.load %arg4[%c0_41, %c0_42, %c0_43] : memref<9x8x256xf32, #tpu.memory_space<vmem>>, vector<1x8x256xf32>
    %62 = vector.shape_cast %61 : vector<1x8x256xf32> to vector<8x256xf32>
    %63 = arith.mulf %60, %62 : vector<8x256xf32>
    %c0_44 = arith.constant 0 : index
    %c0_45 = arith.constant 0 : index
    %64 = vector.load %arg6[%c0_44, %c0_45] : memref<72x256xf32, #tpu.memory_space<vmem>>, vector<8x256xf32>
    tpu.vector_store %arg6[%c0_44, %c0_45], %63 {strides = array<i32>} : memref<72x256xf32, #tpu.memory_space<vmem>>, vector<8x256xf32>,
    %c16_i32_46 = arith.constant 16 : i32
    %65 = tpu.dynamic_rotate %59 by %c16_i32_46 dim 1 : vector<8x256xf32>, i32 -> vector<8x256xf32>
    %c1_47 = arith.constant 1 : index
    %c0_48 = arith.constant 0 : index
    %c0_49 = arith.constant 0 : index
    %66 = vector.load %arg4[%c1_47, %c0_48, %c0_49] : memref<9x8x256xf32, #tpu.memory_space<vmem>>, vector<1x8x256xf32>
    %67 = vector.shape_cast %66 : vector<1x8x256xf32> to vector<8x256xf32>
    %68 = arith.mulf %65, %67 : vector<8x256xf32>
    %c8_50 = arith.constant 8 : index
    %c0_51 = arith.constant 0 : index
    %69 = vector.load %arg6[%c8_50, %c0_51] : memref<72x256xf32, #tpu.memory_space<vmem>>, vector<8x256xf32>
    tpu.vector_store %arg6[%c8_50, %c0_51], %68 {strides = array<i32>} : memref<72x256xf32, #tpu.memory_space<vmem>>, vector<8x256xf32>,
    %c15_i32_52 = arith.constant 15 : i32
    %70 = tpu.dynamic_rotate %59 by %c15_i32_52 dim 1 : vector<8x256xf32>, i32 -> vector<8x256xf32>
    %c2_53 = arith.constant 2 : index
    %c0_54 = arith.constant 0 : index
    %c0_55 = arith.constant 0 : index
    %71 = vector.load %arg4[%c2_53, %c0_54, %c0_55] : memref<9x8x256xf32, #tpu.memory_space<vmem>>, vector<1x8x256xf32>
    %72 = vector.shape_cast %71 : vector<1x8x256xf32> to vector<8x256xf32>
    %73 = arith.mulf %70, %72 : vector<8x256xf32>
    %c16_56 = arith.constant 16 : index
    %c0_57 = arith.constant 0 : index
    %74 = vector.load %arg6[%c16_56, %c0_57] : memref<72x256xf32, #tpu.memory_space<vmem>>, vector<8x256xf32>
    tpu.vector_store %arg6[%c16_56, %c0_57], %73 {strides = array<i32>} : memref<72x256xf32, #tpu.memory_space<vmem>>, vector<8x256xf32>,
    %c1_i32_58 = arith.constant 1 : i32
    %75 = tpu.dynamic_rotate %59 by %c1_i32_58 dim 1 : vector<8x256xf32>, i32 -> vector<8x256xf32>
    %c3_59 = arith.constant 3 : index
    %c0_60 = arith.constant 0 : index
    %c0_61 = arith.constant 0 : index
    %76 = vector.load %arg4[%c3_59, %c0_60, %c0_61] : memref<9x8x256xf32, #tpu.memory_space<vmem>>, vector<1x8x256xf32>
    %77 = vector.shape_cast %76 : vector<1x8x256xf32> to vector<8x256xf32>
    %78 = arith.mulf %75, %77 : vector<8x256xf32>
    %c24_62 = arith.constant 24 : index
    %c0_63 = arith.constant 0 : index
    %79 = vector.load %arg6[%c24_62, %c0_63] : memref<72x256xf32, #tpu.memory_space<vmem>>, vector<8x256xf32>
    tpu.vector_store %arg6[%c24_62, %c0_63], %78 {strides = array<i32>} : memref<72x256xf32, #tpu.memory_space<vmem>>, vector<8x256xf32>,
    %c32_64 = arith.constant 32 : index
    %c0_65 = arith.constant 0 : index
    %80 = vector.load %arg6[%c32_64, %c0_65] : memref<72x256xf32, #tpu.memory_space<vmem>>, vector<8x256xf32>
    tpu.vector_store %arg6[%c32_64, %c0_65], %59 {strides = array<i32>} : memref<72x256xf32, #tpu.memory_space<vmem>>, vector<8x256xf32>,
    %c255_i32_66 = arith.constant 255 : i32
    %81 = tpu.dynamic_rotate %59 by %c255_i32_66 dim 1 : vector<8x256xf32>, i32 -> vector<8x256xf32>
    %c5_67 = arith.constant 5 : index
    %c0_68 = arith.constant 0 : index
    %c0_69 = arith.constant 0 : index
    %82 = vector.load %arg4[%c5_67, %c0_68, %c0_69] : memref<9x8x256xf32, #tpu.memory_space<vmem>>, vector<1x8x256xf32>
    %83 = vector.shape_cast %82 : vector<1x8x256xf32> to vector<8x256xf32>
    %84 = arith.mulf %81, %83 : vector<8x256xf32>
    %c40_70 = arith.constant 40 : index
    %c0_71 = arith.constant 0 : index
    %85 = vector.load %arg6[%c40_70, %c0_71] : memref<72x256xf32, #tpu.memory_space<vmem>>, vector<8x256xf32>
    tpu.vector_store %arg6[%c40_70, %c0_71], %84 {strides = array<i32>} : memref<72x256xf32, #tpu.memory_space<vmem>>, vector<8x256xf32>,
    %c241_i32_72 = arith.constant 241 : i32
    %86 = tpu.dynamic_rotate %59 by %c241_i32_72 dim 1 : vector<8x256xf32>, i32 -> vector<8x256xf32>
    %c6_73 = arith.constant 6 : index
    %c0_74 = arith.constant 0 : index
    %c0_75 = arith.constant 0 : index
    %87 = vector.load %arg4[%c6_73, %c0_74, %c0_75] : memref<9x8x256xf32, #tpu.memory_space<vmem>>, vector<1x8x256xf32>
    %88 = vector.shape_cast %87 : vector<1x8x256xf32> to vector<8x256xf32>
    %89 = arith.mulf %86, %88 : vector<8x256xf32>
    %c48_76 = arith.constant 48 : index
    %c0_77 = arith.constant 0 : index
    %90 = vector.load %arg6[%c48_76, %c0_77] : memref<72x256xf32, #tpu.memory_space<vmem>>, vector<8x256xf32>
    tpu.vector_store %arg6[%c48_76, %c0_77], %89 {strides = array<i32>} : memref<72x256xf32, #tpu.memory_space<vmem>>, vector<8x256xf32>,
    %c240_i32_78 = arith.constant 240 : i32
    %91 = tpu.dynamic_rotate %59 by %c240_i32_78 dim 1 : vector<8x256xf32>, i32 -> vector<8x256xf32>
    %c7_79 = arith.constant 7 : index
    %c0_80 = arith.constant 0 : index
    %c0_81 = arith.constant 0 : index
    %92 = vector.load %arg4[%c7_79, %c0_80, %c0_81] : memref<9x8x256xf32, #tpu.memory_space<vmem>>, vector<1x8x256xf32>
    %93 = vector.shape_cast %92 : vector<1x8x256xf32> to vector<8x256xf32>
    %94 = arith.mulf %91, %93 : vector<8x256xf32>
    %c56_82 = arith.constant 56 : index
    %c0_83 = arith.constant 0 : index
    %95 = vector.load %arg6[%c56_82, %c0_83] : memref<72x256xf32, #tpu.memory_space<vmem>>, vector<8x256xf32>
    tpu.vector_store %arg6[%c56_82, %c0_83], %94 {strides = array<i32>} : memref<72x256xf32, #tpu.memory_space<vmem>>, vector<8x256xf32>,
    %c239_i32_84 = arith.constant 239 : i32
    %96 = tpu.dynamic_rotate %59 by %c239_i32_84 dim 1 : vector<8x256xf32>, i32 -> vector<8x256xf32>
    %c8_85 = arith.constant 8 : index
    %c0_86 = arith.constant 0 : index
    %c0_87 = arith.constant 0 : index
    %97 = vector.load %arg4[%c8_85, %c0_86, %c0_87] : memref<9x8x256xf32, #tpu.memory_space<vmem>>, vector<1x8x256xf32>
    %98 = vector.shape_cast %97 : vector<1x8x256xf32> to vector<8x256xf32>
    %99 = arith.mulf %96, %98 : vector<8x256xf32>
    %c64_88 = arith.constant 64 : index
    %c0_89 = arith.constant 0 : index
    %100 = vector.load %arg6[%c64_88, %c0_89] : memref<72x256xf32, #tpu.memory_space<vmem>>, vector<8x256xf32>
    tpu.vector_store %arg6[%c64_88, %c0_89], %99 {strides = array<i32>} : memref<72x256xf32, #tpu.memory_space<vmem>>, vector<8x256xf32>,
    %c1_90 = arith.constant 1 : index
    %c0_91 = arith.constant 0 : index
    %c0_92 = arith.constant 0 : index
    %101 = vector.load %arg2[%c1_90, %c0_91, %c0_92] : memref<10x8x72xf32, #tpu.memory_space<vmem>>, vector<1x8x72xf32>
    %102 = vector.shape_cast %101 : vector<1x8x72xf32> to vector<8x72xf32>
    %c0_93 = arith.constant 0 : index
    %c0_94 = arith.constant 0 : index
    %103 = vector.load %arg6[%c0_93, %c0_94] : memref<72x256xf32, #tpu.memory_space<vmem>>, vector<72x256xf32>
    %cst_95 = arith.constant dense<0.000000e+00> : vector<8x256xf32>
    %104 = tpu.matmul %102, %103, %cst_95 {dimension_numbers = #tpu.dot_dimension_numbers<[1], [0], [0], [1], [0, 0, 1, 1], [], []>} : vector<8x72xf32>, vector<72x256xf32>, vector<8x256xf32> -> vector<8x256xf32>
    %c1_96 = arith.constant 1 : index
    %c0_97 = arith.constant 0 : index
    %c0_98 = arith.constant 0 : index
    %105 = vector.load %arg3[%c1_96, %c0_97, %c0_98] : memref<10x8x1xf32, #tpu.memory_space<vmem>>, vector<1x8x1xf32>
    %106 = vector.shape_cast %105 : vector<1x8x1xf32> to vector<8x1xf32>
    %107 = vector.broadcast %106 : vector<8x1xf32> to vector<8x256xf32>
    %108 = arith.addf %104, %107 : vector<8x256xf32>
    %109 = math.absf %108 : vector<8x256xf32>
    %110 = vector.shape_cast %109 : vector<8x256xf32> to vector<1x8x256xf32>
    %cst_99 = arith.constant dense<0xFF800000> : vector<1xf32>
    %111 = vector.multi_reduction <maximumf>, %110, %cst_99 [1, 2] : vector<1x8x256xf32> to vector<1xf32>
    %112 = vector.shape_cast %111 : vector<1xf32> to vector<1x1x1xf32>
    %113 = vector.extract %112[0, 0, 0] : f32 from vector<1x1x1xf32>
    %cst_100 = arith.constant 1.000000e+00 : f32
    %114 = arith.addf %113, %cst_100 : f32
    %cst_101 = arith.constant 3.000000e+00 : f32
    %115 = arith.divf %cst_101, %114 : f32
    %116 = vector.broadcast %115 : f32 to vector<8x256xf32>
    %117 = arith.mulf %108, %116 : vector<8x256xf32>
    %118 = math.tanh %117 : vector<8x256xf32>
    %c17_i32_102 = arith.constant 17 : i32
    %119 = tpu.dynamic_rotate %118 by %c17_i32_102 dim 1 : vector<8x256xf32>, i32 -> vector<8x256xf32>
    %c0_103 = arith.constant 0 : index
    %c0_104 = arith.constant 0 : index
    %c0_105 = arith.constant 0 : index
    %120 = vector.load %arg4[%c0_103, %c0_104, %c0_105] : memref<9x8x256xf32, #tpu.memory_space<vmem>>, vector<1x8x256xf32>
    %121 = vector.shape_cast %120 : vector<1x8x256xf32> to vector<8x256xf32>
    %122 = arith.mulf %119, %121 : vector<8x256xf32>
    %c0_106 = arith.constant 0 : index
    %c0_107 = arith.constant 0 : index
    %123 = vector.load %arg6[%c0_106, %c0_107] : memref<72x256xf32, #tpu.memory_space<vmem>>, vector<8x256xf32>
    tpu.vector_store %arg6[%c0_106, %c0_107], %122 {strides = array<i32>} : memref<72x256xf32, #tpu.memory_space<vmem>>, vector<8x256xf32>,
    %c16_i32_108 = arith.constant 16 : i32
    %124 = tpu.dynamic_rotate %118 by %c16_i32_108 dim 1 : vector<8x256xf32>, i32 -> vector<8x256xf32>
    %c1_109 = arith.constant 1 : index
    %c0_110 = arith.constant 0 : index
    %c0_111 = arith.constant 0 : index
    %125 = vector.load %arg4[%c1_109, %c0_110, %c0_111] : memref<9x8x256xf32, #tpu.memory_space<vmem>>, vector<1x8x256xf32>
    %126 = vector.shape_cast %125 : vector<1x8x256xf32> to vector<8x256xf32>
    %127 = arith.mulf %124, %126 : vector<8x256xf32>
    %c8_112 = arith.constant 8 : index
    %c0_113 = arith.constant 0 : index
    %128 = vector.load %arg6[%c8_112, %c0_113] : memref<72x256xf32, #tpu.memory_space<vmem>>, vector<8x256xf32>
    tpu.vector_store %arg6[%c8_112, %c0_113], %127 {strides = array<i32>} : memref<72x256xf32, #tpu.memory_space<vmem>>, vector<8x256xf32>,
    %c15_i32_114 = arith.constant 15 : i32
    %129 = tpu.dynamic_rotate %118 by %c15_i32_114 dim 1 : vector<8x256xf32>, i32 -> vector<8x256xf32>
    %c2_115 = arith.constant 2 : index
    %c0_116 = arith.constant 0 : index
    %c0_117 = arith.constant 0 : index
    %130 = vector.load %arg4[%c2_115, %c0_116, %c0_117] : memref<9x8x256xf32, #tpu.memory_space<vmem>>, vector<1x8x256xf32>
    %131 = vector.shape_cast %130 : vector<1x8x256xf32> to vector<8x256xf32>
    %132 = arith.mulf %129, %131 : vector<8x256xf32>
    %c16_118 = arith.constant 16 : index
    %c0_119 = arith.constant 0 : index
    %133 = vector.load %arg6[%c16_118, %c0_119] : memref<72x256xf32, #tpu.memory_space<vmem>>, vector<8x256xf32>
    tpu.vector_store %arg6[%c16_118, %c0_119], %132 {strides = array<i32>} : memref<72x256xf32, #tpu.memory_space<vmem>>, vector<8x256xf32>,
    %c1_i32_120 = arith.constant 1 : i32
    %134 = tpu.dynamic_rotate %118 by %c1_i32_120 dim 1 : vector<8x256xf32>, i32 -> vector<8x256xf32>
    %c3_121 = arith.constant 3 : index
    %c0_122 = arith.constant 0 : index
    %c0_123 = arith.constant 0 : index
    %135 = vector.load %arg4[%c3_121, %c0_122, %c0_123] : memref<9x8x256xf32, #tpu.memory_space<vmem>>, vector<1x8x256xf32>
    %136 = vector.shape_cast %135 : vector<1x8x256xf32> to vector<8x256xf32>
    %137 = arith.mulf %134, %136 : vector<8x256xf32>
    %c24_124 = arith.constant 24 : index
    %c0_125 = arith.constant 0 : index
    %138 = vector.load %arg6[%c24_124, %c0_125] : memref<72x256xf32, #tpu.memory_space<vmem>>, vector<8x256xf32>
    tpu.vector_store %arg6[%c24_124, %c0_125], %137 {strides = array<i32>} : memref<72x256xf32, #tpu.memory_space<vmem>>, vector<8x256xf32>,
    %c32_126 = arith.constant 32 : index
    %c0_127 = arith.constant 0 : index
    %139 = vector.load %arg6[%c32_126, %c0_127] : memref<72x256xf32, #tpu.memory_space<vmem>>, vector<8x256xf32>
    tpu.vector_store %arg6[%c32_126, %c0_127], %118 {strides = array<i32>} : memref<72x256xf32, #tpu.memory_space<vmem>>, vector<8x256xf32>,
    %c255_i32_128 = arith.constant 255 : i32
    %140 = tpu.dynamic_rotate %118 by %c255_i32_128 dim 1 : vector<8x256xf32>, i32 -> vector<8x256xf32>
    %c5_129 = arith.constant 5 : index
    %c0_130 = arith.constant 0 : index
    %c0_131 = arith.constant 0 : index
    %141 = vector.load %arg4[%c5_129, %c0_130, %c0_131] : memref<9x8x256xf32, #tpu.memory_space<vmem>>, vector<1x8x256xf32>
    %142 = vector.shape_cast %141 : vector<1x8x256xf32> to vector<8x256xf32>
    %143 = arith.mulf %140, %142 : vector<8x256xf32>
    %c40_132 = arith.constant 40 : index
    %c0_133 = arith.constant 0 : index
    %144 = vector.load %arg6[%c40_132, %c0_133] : memref<72x256xf32, #tpu.memory_space<vmem>>, vector<8x256xf32>
    tpu.vector_store %arg6[%c40_132, %c0_133], %143 {strides = array<i32>} : memref<72x256xf32, #tpu.memory_space<vmem>>, vector<8x256xf32>,
    %c241_i32_134 = arith.constant 241 : i32
    %145 = tpu.dynamic_rotate %118 by %c241_i32_134 dim 1 : vector<8x256xf32>, i32 -> vector<8x256xf32>
    %c6_135 = arith.constant 6 : index
    %c0_136 = arith.constant 0 : index
    %c0_137 = arith.constant 0 : index
    %146 = vector.load %arg4[%c6_135, %c0_136, %c0_137] : memref<9x8x256xf32, #tpu.memory_space<vmem>>, vector<1x8x256xf32>
    %147 = vector.shape_cast %146 : vector<1x8x256xf32> to vector<8x256xf32>
    %148 = arith.mulf %145, %147 : vector<8x256xf32>
    %c48_138 = arith.constant 48 : index
    %c0_139 = arith.constant 0 : index
    %149 = vector.load %arg6[%c48_138, %c0_139] : memref<72x256xf32, #tpu.memory_space<vmem>>, vector<8x256xf32>
    tpu.vector_store %arg6[%c48_138, %c0_139], %148 {strides = array<i32>} : memref<72x256xf32, #tpu.memory_space<vmem>>, vector<8x256xf32>,
    %c240_i32_140 = arith.constant 240 : i32
    %150 = tpu.dynamic_rotate %118 by %c240_i32_140 dim 1 : vector<8x256xf32>, i32 -> vector<8x256xf32>
    %c7_141 = arith.constant 7 : index
    %c0_142 = arith.constant 0 : index
    %c0_143 = arith.constant 0 : index
    %151 = vector.load %arg4[%c7_141, %c0_142, %c0_143] : memref<9x8x256xf32, #tpu.memory_space<vmem>>, vector<1x8x256xf32>
    %152 = vector.shape_cast %151 : vector<1x8x256xf32> to vector<8x256xf32>
    %153 = arith.mulf %150, %152 : vector<8x256xf32>
    %c56_144 = arith.constant 56 : index
    %c0_145 = arith.constant 0 : index
    %154 = vector.load %arg6[%c56_144, %c0_145] : memref<72x256xf32, #tpu.memory_space<vmem>>, vector<8x256xf32>
    tpu.vector_store %arg6[%c56_144, %c0_145], %153 {strides = array<i32>} : memref<72x256xf32, #tpu.memory_space<vmem>>, vector<8x256xf32>,
    %c239_i32_146 = arith.constant 239 : i32
    %155 = tpu.dynamic_rotate %118 by %c239_i32_146 dim 1 : vector<8x256xf32>, i32 -> vector<8x256xf32>
    %c8_147 = arith.constant 8 : index
    %c0_148 = arith.constant 0 : index
    %c0_149 = arith.constant 0 : index
    %156 = vector.load %arg4[%c8_147, %c0_148, %c0_149] : memref<9x8x256xf32, #tpu.memory_space<vmem>>, vector<1x8x256xf32>
    %157 = vector.shape_cast %156 : vector<1x8x256xf32> to vector<8x256xf32>
    %158 = arith.mulf %155, %157 : vector<8x256xf32>
    %c64_150 = arith.constant 64 : index
    %c0_151 = arith.constant 0 : index
    %159 = vector.load %arg6[%c64_150, %c0_151] : memref<72x256xf32, #tpu.memory_space<vmem>>, vector<8x256xf32>
    tpu.vector_store %arg6[%c64_150, %c0_151], %158 {strides = array<i32>} : memref<72x256xf32, #tpu.memory_space<vmem>>, vector<8x256xf32>,
    %c2_152 = arith.constant 2 : index
    %c0_153 = arith.constant 0 : index
    %c0_154 = arith.constant 0 : index
    %160 = vector.load %arg2[%c2_152, %c0_153, %c0_154] : memref<10x8x72xf32, #tpu.memory_space<vmem>>, vector<1x8x72xf32>
    %161 = vector.shape_cast %160 : vector<1x8x72xf32> to vector<8x72xf32>
    %c0_155 = arith.constant 0 : index
    %c0_156 = arith.constant 0 : index
    %162 = vector.load %arg6[%c0_155, %c0_156] : memref<72x256xf32, #tpu.memory_space<vmem>>, vector<72x256xf32>
    %cst_157 = arith.constant dense<0.000000e+00> : vector<8x256xf32>
    %163 = tpu.matmul %161, %162, %cst_157 {dimension_numbers = #tpu.dot_dimension_numbers<[1], [0], [0], [1], [0, 0, 1, 1], [], []>} : vector<8x72xf32>, vector<72x256xf32>, vector<8x256xf32> -> vector<8x256xf32>
    %c2_158 = arith.constant 2 : index
    %c0_159 = arith.constant 0 : index
    %c0_160 = arith.constant 0 : index
    %164 = vector.load %arg3[%c2_158, %c0_159, %c0_160] : memref<10x8x1xf32, #tpu.memory_space<vmem>>, vector<1x8x1xf32>
    %165 = vector.shape_cast %164 : vector<1x8x1xf32> to vector<8x1xf32>
    %166 = vector.broadcast %165 : vector<8x1xf32> to vector<8x256xf32>
    %167 = arith.addf %163, %166 : vector<8x256xf32>
    %168 = math.absf %167 : vector<8x256xf32>
    %169 = vector.shape_cast %168 : vector<8x256xf32> to vector<1x8x256xf32>
    %cst_161 = arith.constant dense<0xFF800000> : vector<1xf32>
    %170 = vector.multi_reduction <maximumf>, %169, %cst_161 [1, 2] : vector<1x8x256xf32> to vector<1xf32>
    %171 = vector.shape_cast %170 : vector<1xf32> to vector<1x1x1xf32>
    %172 = vector.extract %171[0, 0, 0] : f32 from vector<1x1x1xf32>
    %cst_162 = arith.constant 1.000000e+00 : f32
    %173 = arith.addf %172, %cst_162 : f32
    %cst_163 = arith.constant 3.000000e+00 : f32
    %174 = arith.divf %cst_163, %173 : f32
    %175 = vector.broadcast %174 : f32 to vector<8x256xf32>
    %176 = arith.mulf %167, %175 : vector<8x256xf32>
    %177 = math.tanh %176 : vector<8x256xf32>
    %c17_i32_164 = arith.constant 17 : i32
    %178 = tpu.dynamic_rotate %177 by %c17_i32_164 dim 1 : vector<8x256xf32>, i32 -> vector<8x256xf32>
    %c0_165 = arith.constant 0 : index
    %c0_166 = arith.constant 0 : index
    %c0_167 = arith.constant 0 : index
    %179 = vector.load %arg4[%c0_165, %c0_166, %c0_167] : memref<9x8x256xf32, #tpu.memory_space<vmem>>, vector<1x8x256xf32>
    %180 = vector.shape_cast %179 : vector<1x8x256xf32> to vector<8x256xf32>
    %181 = arith.mulf %178, %180 : vector<8x256xf32>
    %c0_168 = arith.constant 0 : index
    %c0_169 = arith.constant 0 : index
    %182 = vector.load %arg6[%c0_168, %c0_169] : memref<72x256xf32, #tpu.memory_space<vmem>>, vector<8x256xf32>
    tpu.vector_store %arg6[%c0_168, %c0_169], %181 {strides = array<i32>} : memref<72x256xf32, #tpu.memory_space<vmem>>, vector<8x256xf32>,
    %c16_i32_170 = arith.constant 16 : i32
    %183 = tpu.dynamic_rotate %177 by %c16_i32_170 dim 1 : vector<8x256xf32>, i32 -> vector<8x256xf32>
    %c1_171 = arith.constant 1 : index
    %c0_172 = arith.constant 0 : index
    %c0_173 = arith.constant 0 : index
    %184 = vector.load %arg4[%c1_171, %c0_172, %c0_173] : memref<9x8x256xf32, #tpu.memory_space<vmem>>, vector<1x8x256xf32>
    %185 = vector.shape_cast %184 : vector<1x8x256xf32> to vector<8x256xf32>
    %186 = arith.mulf %183, %185 : vector<8x256xf32>
    %c8_174 = arith.constant 8 : index
    %c0_175 = arith.constant 0 : index
    %187 = vector.load %arg6[%c8_174, %c0_175] : memref<72x256xf32, #tpu.memory_space<vmem>>, vector<8x256xf32>
    tpu.vector_store %arg6[%c8_174, %c0_175], %186 {strides = array<i32>} : memref<72x256xf32, #tpu.memory_space<vmem>>, vector<8x256xf32>,
    %c15_i32_176 = arith.constant 15 : i32
    %188 = tpu.dynamic_rotate %177 by %c15_i32_176 dim 1 : vector<8x256xf32>, i32 -> vector<8x256xf32>
    %c2_177 = arith.constant 2 : index
    %c0_178 = arith.constant 0 : index
    %c0_179 = arith.constant 0 : index
    %189 = vector.load %arg4[%c2_177, %c0_178, %c0_179] : memref<9x8x256xf32, #tpu.memory_space<vmem>>, vector<1x8x256xf32>
    %190 = vector.shape_cast %189 : vector<1x8x256xf32> to vector<8x256xf32>
    %191 = arith.mulf %188, %190 : vector<8x256xf32>
    %c16_180 = arith.constant 16 : index
    %c0_181 = arith.constant 0 : index
    %192 = vector.load %arg6[%c16_180, %c0_181] : memref<72x256xf32, #tpu.memory_space<vmem>>, vector<8x256xf32>
    tpu.vector_store %arg6[%c16_180, %c0_181], %191 {strides = array<i32>} : memref<72x256xf32, #tpu.memory_space<vmem>>, vector<8x256xf32>,
    %c1_i32_182 = arith.constant 1 : i32
    %193 = tpu.dynamic_rotate %177 by %c1_i32_182 dim 1 : vector<8x256xf32>, i32 -> vector<8x256xf32>
    %c3_183 = arith.constant 3 : index
    %c0_184 = arith.constant 0 : index
    %c0_185 = arith.constant 0 : index
    %194 = vector.load %arg4[%c3_183, %c0_184, %c0_185] : memref<9x8x256xf32, #tpu.memory_space<vmem>>, vector<1x8x256xf32>
    %195 = vector.shape_cast %194 : vector<1x8x256xf32> to vector<8x256xf32>
    %196 = arith.mulf %193, %195 : vector<8x256xf32>
    %c24_186 = arith.constant 24 : index
    %c0_187 = arith.constant 0 : index
    %197 = vector.load %arg6[%c24_186, %c0_187] : memref<72x256xf32, #tpu.memory_space<vmem>>, vector<8x256xf32>
    tpu.vector_store %arg6[%c24_186, %c0_187], %196 {strides = array<i32>} : memref<72x256xf32, #tpu.memory_space<vmem>>, vector<8x256xf32>,
    %c32_188 = arith.constant 32 : index
    %c0_189 = arith.constant 0 : index
    %198 = vector.load %arg6[%c32_188, %c0_189] : memref<72x256xf32, #tpu.memory_space<vmem>>, vector<8x256xf32>
    tpu.vector_store %arg6[%c32_188, %c0_189], %177 {strides = array<i32>} : memref<72x256xf32, #tpu.memory_space<vmem>>, vector<8x256xf32>,
    %c255_i32_190 = arith.constant 255 : i32
    %199 = tpu.dynamic_rotate %177 by %c255_i32_190 dim 1 : vector<8x256xf32>, i32 -> vector<8x256xf32>
    %c5_191 = arith.constant 5 : index
    %c0_192 = arith.constant 0 : index
    %c0_193 = arith.constant 0 : index
    %200 = vector.load %arg4[%c5_191, %c0_192, %c0_193] : memref<9x8x256xf32, #tpu.memory_space<vmem>>, vector<1x8x256xf32>
    %201 = vector.shape_cast %200 : vector<1x8x256xf32> to vector<8x256xf32>
    %202 = arith.mulf %199, %201 : vector<8x256xf32>
    %c40_194 = arith.constant 40 : index
    %c0_195 = arith.constant 0 : index
    %203 = vector.load %arg6[%c40_194, %c0_195] : memref<72x256xf32, #tpu.memory_space<vmem>>, vector<8x256xf32>
    tpu.vector_store %arg6[%c40_194, %c0_195], %202 {strides = array<i32>} : memref<72x256xf32, #tpu.memory_space<vmem>>, vector<8x256xf32>,
    %c241_i32_196 = arith.constant 241 : i32
    %204 = tpu.dynamic_rotate %177 by %c241_i32_196 dim 1 : vector<8x256xf32>, i32 -> vector<8x256xf32>
    %c6_197 = arith.constant 6 : index
    %c0_198 = arith.constant 0 : index
    %c0_199 = arith.constant 0 : index
    %205 = vector.load %arg4[%c6_197, %c0_198, %c0_199] : memref<9x8x256xf32, #tpu.memory_space<vmem>>, vector<1x8x256xf32>
    %206 = vector.shape_cast %205 : vector<1x8x256xf32> to vector<8x256xf32>
    %207 = arith.mulf %204, %206 : vector<8x256xf32>
    %c48_200 = arith.constant 48 : index
    %c0_201 = arith.constant 0 : index
    %208 = vector.load %arg6[%c48_200, %c0_201] : memref<72x256xf32, #tpu.memory_space<vmem>>, vector<8x256xf32>
    tpu.vector_store %arg6[%c48_200, %c0_201], %207 {strides = array<i32>} : memref<72x256xf32, #tpu.memory_space<vmem>>, vector<8x256xf32>,
    %c240_i32_202 = arith.constant 240 : i32
    %209 = tpu.dynamic_rotate %177 by %c240_i32_202 dim 1 : vector<8x256xf32>, i32 -> vector<8x256xf32>
    %c7_203 = arith.constant 7 : index
    %c0_204 = arith.constant 0 : index
    %c0_205 = arith.constant 0 : index
    %210 = vector.load %arg4[%c7_203, %c0_204, %c0_205] : memref<9x8x256xf32, #tpu.memory_space<vmem>>, vector<1x8x256xf32>
    %211 = vector.shape_cast %210 : vector<1x8x256xf32> to vector<8x256xf32>
    %212 = arith.mulf %209, %211 : vector<8x256xf32>
    %c56_206 = arith.constant 56 : index
    %c0_207 = arith.constant 0 : index
    %213 = vector.load %arg6[%c56_206, %c0_207] : memref<72x256xf32, #tpu.memory_space<vmem>>, vector<8x256xf32>
    tpu.vector_store %arg6[%c56_206, %c0_207], %212 {strides = array<i32>} : memref<72x256xf32, #tpu.memory_space<vmem>>, vector<8x256xf32>,
    %c239_i32_208 = arith.constant 239 : i32
    %214 = tpu.dynamic_rotate %177 by %c239_i32_208 dim 1 : vector<8x256xf32>, i32 -> vector<8x256xf32>
    %c8_209 = arith.constant 8 : index
    %c0_210 = arith.constant 0 : index
    %c0_211 = arith.constant 0 : index
    %215 = vector.load %arg4[%c8_209, %c0_210, %c0_211] : memref<9x8x256xf32, #tpu.memory_space<vmem>>, vector<1x8x256xf32>
    %216 = vector.shape_cast %215 : vector<1x8x256xf32> to vector<8x256xf32>
    %217 = arith.mulf %214, %216 : vector<8x256xf32>
    %c64_212 = arith.constant 64 : index
    %c0_213 = arith.constant 0 : index
    %218 = vector.load %arg6[%c64_212, %c0_213] : memref<72x256xf32, #tpu.memory_space<vmem>>, vector<8x256xf32>
    tpu.vector_store %arg6[%c64_212, %c0_213], %217 {strides = array<i32>} : memref<72x256xf32, #tpu.memory_space<vmem>>, vector<8x256xf32>,
    %c3_214 = arith.constant 3 : index
    %c0_215 = arith.constant 0 : index
    %c0_216 = arith.constant 0 : index
    %219 = vector.load %arg2[%c3_214, %c0_215, %c0_216] : memref<10x8x72xf32, #tpu.memory_space<vmem>>, vector<1x8x72xf32>
    %220 = vector.shape_cast %219 : vector<1x8x72xf32> to vector<8x72xf32>
    %c0_217 = arith.constant 0 : index
    %c0_218 = arith.constant 0 : index
    %221 = vector.load %arg6[%c0_217, %c0_218] : memref<72x256xf32, #tpu.memory_space<vmem>>, vector<72x256xf32>
    %cst_219 = arith.constant dense<0.000000e+00> : vector<8x256xf32>
    %222 = tpu.matmul %220, %221, %cst_219 {dimension_numbers = #tpu.dot_dimension_numbers<[1], [0], [0], [1], [0, 0, 1, 1], [], []>} : vector<8x72xf32>, vector<72x256xf32>, vector<8x256xf32> -> vector<8x256xf32>
    %c3_220 = arith.constant 3 : index
    %c0_221 = arith.constant 0 : index
    %c0_222 = arith.constant 0 : index
    %223 = vector.load %arg3[%c3_220, %c0_221, %c0_222] : memref<10x8x1xf32, #tpu.memory_space<vmem>>, vector<1x8x1xf32>
    %224 = vector.shape_cast %223 : vector<1x8x1xf32> to vector<8x1xf32>
    %225 = vector.broadcast %224 : vector<8x1xf32> to vector<8x256xf32>
    %226 = arith.addf %222, %225 : vector<8x256xf32>
    %227 = math.absf %226 : vector<8x256xf32>
    %228 = vector.shape_cast %227 : vector<8x256xf32> to vector<1x8x256xf32>
    %cst_223 = arith.constant dense<0xFF800000> : vector<1xf32>
    %229 = vector.multi_reduction <maximumf>, %228, %cst_223 [1, 2] : vector<1x8x256xf32> to vector<1xf32>
    %230 = vector.shape_cast %229 : vector<1xf32> to vector<1x1x1xf32>
    %231 = vector.extract %230[0, 0, 0] : f32 from vector<1x1x1xf32>
    %cst_224 = arith.constant 1.000000e+00 : f32
    %232 = arith.addf %231, %cst_224 : f32
    %cst_225 = arith.constant 3.000000e+00 : f32
    %233 = arith.divf %cst_225, %232 : f32
    %234 = vector.broadcast %233 : f32 to vector<8x256xf32>
    %235 = arith.mulf %226, %234 : vector<8x256xf32>
    %236 = math.tanh %235 : vector<8x256xf32>
    %c17_i32_226 = arith.constant 17 : i32
    %237 = tpu.dynamic_rotate %236 by %c17_i32_226 dim 1 : vector<8x256xf32>, i32 -> vector<8x256xf32>
    %c0_227 = arith.constant 0 : index
    %c0_228 = arith.constant 0 : index
    %c0_229 = arith.constant 0 : index
    %238 = vector.load %arg4[%c0_227, %c0_228, %c0_229] : memref<9x8x256xf32, #tpu.memory_space<vmem>>, vector<1x8x256xf32>
    %239 = vector.shape_cast %238 : vector<1x8x256xf32> to vector<8x256xf32>
    %240 = arith.mulf %237, %239 : vector<8x256xf32>
    %c0_230 = arith.constant 0 : index
    %c0_231 = arith.constant 0 : index
    %241 = vector.load %arg6[%c0_230, %c0_231] : memref<72x256xf32, #tpu.memory_space<vmem>>, vector<8x256xf32>
    tpu.vector_store %arg6[%c0_230, %c0_231], %240 {strides = array<i32>} : memref<72x256xf32, #tpu.memory_space<vmem>>, vector<8x256xf32>,
    %c16_i32_232 = arith.constant 16 : i32
    %242 = tpu.dynamic_rotate %236 by %c16_i32_232 dim 1 : vector<8x256xf32>, i32 -> vector<8x256xf32>
    %c1_233 = arith.constant 1 : index
    %c0_234 = arith.constant 0 : index
    %c0_235 = arith.constant 0 : index
    %243 = vector.load %arg4[%c1_233, %c0_234, %c0_235] : memref<9x8x256xf32, #tpu.memory_space<vmem>>, vector<1x8x256xf32>
    %244 = vector.shape_cast %243 : vector<1x8x256xf32> to vector<8x256xf32>
    %245 = arith.mulf %242, %244 : vector<8x256xf32>
    %c8_236 = arith.constant 8 : index
    %c0_237 = arith.constant 0 : index
    %246 = vector.load %arg6[%c8_236, %c0_237] : memref<72x256xf32, #tpu.memory_space<vmem>>, vector<8x256xf32>
    tpu.vector_store %arg6[%c8_236, %c0_237], %245 {strides = array<i32>} : memref<72x256xf32, #tpu.memory_space<vmem>>, vector<8x256xf32>,
    %c15_i32_238 = arith.constant 15 : i32
    %247 = tpu.dynamic_rotate %236 by %c15_i32_238 dim 1 : vector<8x256xf32>, i32 -> vector<8x256xf32>
    %c2_239 = arith.constant 2 : index
    %c0_240 = arith.constant 0 : index
    %c0_241 = arith.constant 0 : index
    %248 = vector.load %arg4[%c2_239, %c0_240, %c0_241] : memref<9x8x256xf32, #tpu.memory_space<vmem>>, vector<1x8x256xf32>
    %249 = vector.shape_cast %248 : vector<1x8x256xf32> to vector<8x256xf32>
    %250 = arith.mulf %247, %249 : vector<8x256xf32>
    %c16_242 = arith.constant 16 : index
    %c0_243 = arith.constant 0 : index
    %251 = vector.load %arg6[%c16_242, %c0_243] : memref<72x256xf32, #tpu.memory_space<vmem>>, vector<8x256xf32>
    tpu.vector_store %arg6[%c16_242, %c0_243], %250 {strides = array<i32>} : memref<72x256xf32, #tpu.memory_space<vmem>>, vector<8x256xf32>,
    %c1_i32_244 = arith.constant 1 : i32
    %252 = tpu.dynamic_rotate %236 by %c1_i32_244 dim 1 : vector<8x256xf32>, i32 -> vector<8x256xf32>
    %c3_245 = arith.constant 3 : index
    %c0_246 = arith.constant 0 : index
    %c0_247 = arith.constant 0 : index
    %253 = vector.load %arg4[%c3_245, %c0_246, %c0_247] : memref<9x8x256xf32, #tpu.memory_space<vmem>>, vector<1x8x256xf32>
    %254 = vector.shape_cast %253 : vector<1x8x256xf32> to vector<8x256xf32>
    %255 = arith.mulf %252, %254 : vector<8x256xf32>
    %c24_248 = arith.constant 24 : index
    %c0_249 = arith.constant 0 : index
    %256 = vector.load %arg6[%c24_248, %c0_249] : memref<72x256xf32, #tpu.memory_space<vmem>>, vector<8x256xf32>
    tpu.vector_store %arg6[%c24_248, %c0_249], %255 {strides = array<i32>} : memref<72x256xf32, #tpu.memory_space<vmem>>, vector<8x256xf32>,
    %c32_250 = arith.constant 32 : index
    %c0_251 = arith.constant 0 : index
    %257 = vector.load %arg6[%c32_250, %c0_251] : memref<72x256xf32, #tpu.memory_space<vmem>>, vector<8x256xf32>
    tpu.vector_store %arg6[%c32_250, %c0_251], %236 {strides = array<i32>} : memref<72x256xf32, #tpu.memory_space<vmem>>, vector<8x256xf32>,
    %c255_i32_252 = arith.constant 255 : i32
    %258 = tpu.dynamic_rotate %236 by %c255_i32_252 dim 1 : vector<8x256xf32>, i32 -> vector<8x256xf32>
    %c5_253 = arith.constant 5 : index
    %c0_254 = arith.constant 0 : index
    %c0_255 = arith.constant 0 : index
    %259 = vector.load %arg4[%c5_253, %c0_254, %c0_255] : memref<9x8x256xf32, #tpu.memory_space<vmem>>, vector<1x8x256xf32>
    %260 = vector.shape_cast %259 : vector<1x8x256xf32> to vector<8x256xf32>
    %261 = arith.mulf %258, %260 : vector<8x256xf32>
    %c40_256 = arith.constant 40 : index
    %c0_257 = arith.constant 0 : index
    %262 = vector.load %arg6[%c40_256, %c0_257] : memref<72x256xf32, #tpu.memory_space<vmem>>, vector<8x256xf32>
    tpu.vector_store %arg6[%c40_256, %c0_257], %261 {strides = array<i32>} : memref<72x256xf32, #tpu.memory_space<vmem>>, vector<8x256xf32>,
    %c241_i32_258 = arith.constant 241 : i32
    %263 = tpu.dynamic_rotate %236 by %c241_i32_258 dim 1 : vector<8x256xf32>, i32 -> vector<8x256xf32>
    %c6_259 = arith.constant 6 : index
    %c0_260 = arith.constant 0 : index
    %c0_261 = arith.constant 0 : index
    %264 = vector.load %arg4[%c6_259, %c0_260, %c0_261] : memref<9x8x256xf32, #tpu.memory_space<vmem>>, vector<1x8x256xf32>
    %265 = vector.shape_cast %264 : vector<1x8x256xf32> to vector<8x256xf32>
    %266 = arith.mulf %263, %265 : vector<8x256xf32>
    %c48_262 = arith.constant 48 : index
    %c0_263 = arith.constant 0 : index
    %267 = vector.load %arg6[%c48_262, %c0_263] : memref<72x256xf32, #tpu.memory_space<vmem>>, vector<8x256xf32>
    tpu.vector_store %arg6[%c48_262, %c0_263], %266 {strides = array<i32>} : memref<72x256xf32, #tpu.memory_space<vmem>>, vector<8x256xf32>,
    %c240_i32_264 = arith.constant 240 : i32
    %268 = tpu.dynamic_rotate %236 by %c240_i32_264 dim 1 : vector<8x256xf32>, i32 -> vector<8x256xf32>
    %c7_265 = arith.constant 7 : index
    %c0_266 = arith.constant 0 : index
    %c0_267 = arith.constant 0 : index
    %269 = vector.load %arg4[%c7_265, %c0_266, %c0_267] : memref<9x8x256xf32, #tpu.memory_space<vmem>>, vector<1x8x256xf32>
    %270 = vector.shape_cast %269 : vector<1x8x256xf32> to vector<8x256xf32>
    %271 = arith.mulf %268, %270 : vector<8x256xf32>
    %c56_268 = arith.constant 56 : index
    %c0_269 = arith.constant 0 : index
    %272 = vector.load %arg6[%c56_268, %c0_269] : memref<72x256xf32, #tpu.memory_space<vmem>>, vector<8x256xf32>
    tpu.vector_store %arg6[%c56_268, %c0_269], %271 {strides = array<i32>} : memref<72x256xf32, #tpu.memory_space<vmem>>, vector<8x256xf32>,
    %c239_i32_270 = arith.constant 239 : i32
    %273 = tpu.dynamic_rotate %236 by %c239_i32_270 dim 1 : vector<8x256xf32>, i32 -> vector<8x256xf32>
    %c8_271 = arith.constant 8 : index
    %c0_272 = arith.constant 0 : index
    %c0_273 = arith.constant 0 : index
    %274 = vector.load %arg4[%c8_271, %c0_272, %c0_273] : memref<9x8x256xf32, #tpu.memory_space<vmem>>, vector<1x8x256xf32>
    %275 = vector.shape_cast %274 : vector<1x8x256xf32> to vector<8x256xf32>
    %276 = arith.mulf %273, %275 : vector<8x256xf32>
    %c64_274 = arith.constant 64 : index
    %c0_275 = arith.constant 0 : index
    %277 = vector.load %arg6[%c64_274, %c0_275] : memref<72x256xf32, #tpu.memory_space<vmem>>, vector<8x256xf32>
    tpu.vector_store %arg6[%c64_274, %c0_275], %276 {strides = array<i32>} : memref<72x256xf32, #tpu.memory_space<vmem>>, vector<8x256xf32>,
    %c4 = arith.constant 4 : index
    %c0_276 = arith.constant 0 : index
    %c0_277 = arith.constant 0 : index
    %278 = vector.load %arg2[%c4, %c0_276, %c0_277] : memref<10x8x72xf32, #tpu.memory_space<vmem>>, vector<1x8x72xf32>
    %279 = vector.shape_cast %278 : vector<1x8x72xf32> to vector<8x72xf32>
    %c0_278 = arith.constant 0 : index
    %c0_279 = arith.constant 0 : index
    %280 = vector.load %arg6[%c0_278, %c0_279] : memref<72x256xf32, #tpu.memory_space<vmem>>, vector<72x256xf32>
    %cst_280 = arith.constant dense<0.000000e+00> : vector<8x256xf32>
    %281 = tpu.matmul %279, %280, %cst_280 {dimension_numbers = #tpu.dot_dimension_numbers<[1], [0], [0], [1], [0, 0, 1, 1], [], []>} : vector<8x72xf32>, vector<72x256xf32>, vector<8x256xf32> -> vector<8x256xf32>
    %c4_281 = arith.constant 4 : index
    %c0_282 = arith.constant 0 : index
    %c0_283 = arith.constant 0 : index
    %282 = vector.load %arg3[%c4_281, %c0_282, %c0_283] : memref<10x8x1xf32, #tpu.memory_space<vmem>>, vector<1x8x1xf32>
    %283 = vector.shape_cast %282 : vector<1x8x1xf32> to vector<8x1xf32>
    %284 = vector.broadcast %283 : vector<8x1xf32> to vector<8x256xf32>
    %285 = arith.addf %281, %284 : vector<8x256xf32>
    %286 = math.absf %285 : vector<8x256xf32>
    %287 = vector.shape_cast %286 : vector<8x256xf32> to vector<1x8x256xf32>
    %cst_284 = arith.constant dense<0xFF800000> : vector<1xf32>
    %288 = vector.multi_reduction <maximumf>, %287, %cst_284 [1, 2] : vector<1x8x256xf32> to vector<1xf32>
    %289 = vector.shape_cast %288 : vector<1xf32> to vector<1x1x1xf32>
    %290 = vector.extract %289[0, 0, 0] : f32 from vector<1x1x1xf32>
    %cst_285 = arith.constant 1.000000e+00 : f32
    %291 = arith.addf %290, %cst_285 : f32
    %cst_286 = arith.constant 3.000000e+00 : f32
    %292 = arith.divf %cst_286, %291 : f32
    %293 = vector.broadcast %292 : f32 to vector<8x256xf32>
    %294 = arith.mulf %285, %293 : vector<8x256xf32>
    %295 = math.tanh %294 : vector<8x256xf32>
    %c17_i32_287 = arith.constant 17 : i32
    %296 = tpu.dynamic_rotate %295 by %c17_i32_287 dim 1 : vector<8x256xf32>, i32 -> vector<8x256xf32>
    %c0_288 = arith.constant 0 : index
    %c0_289 = arith.constant 0 : index
    %c0_290 = arith.constant 0 : index
    %297 = vector.load %arg4[%c0_288, %c0_289, %c0_290] : memref<9x8x256xf32, #tpu.memory_space<vmem>>, vector<1x8x256xf32>
    %298 = vector.shape_cast %297 : vector<1x8x256xf32> to vector<8x256xf32>
    %299 = arith.mulf %296, %298 : vector<8x256xf32>
    %c0_291 = arith.constant 0 : index
    %c0_292 = arith.constant 0 : index
    %300 = vector.load %arg6[%c0_291, %c0_292] : memref<72x256xf32, #tpu.memory_space<vmem>>, vector<8x256xf32>
    tpu.vector_store %arg6[%c0_291, %c0_292], %299 {strides = array<i32>} : memref<72x256xf32, #tpu.memory_space<vmem>>, vector<8x256xf32>,
    %c16_i32_293 = arith.constant 16 : i32
    %301 = tpu.dynamic_rotate %295 by %c16_i32_293 dim 1 : vector<8x256xf32>, i32 -> vector<8x256xf32>
    %c1_294 = arith.constant 1 : index
    %c0_295 = arith.constant 0 : index
    %c0_296 = arith.constant 0 : index
    %302 = vector.load %arg4[%c1_294, %c0_295, %c0_296] : memref<9x8x256xf32, #tpu.memory_space<vmem>>, vector<1x8x256xf32>
    %303 = vector.shape_cast %302 : vector<1x8x256xf32> to vector<8x256xf32>
    %304 = arith.mulf %301, %303 : vector<8x256xf32>
    %c8_297 = arith.constant 8 : index
    %c0_298 = arith.constant 0 : index
    %305 = vector.load %arg6[%c8_297, %c0_298] : memref<72x256xf32, #tpu.memory_space<vmem>>, vector<8x256xf32>
    tpu.vector_store %arg6[%c8_297, %c0_298], %304 {strides = array<i32>} : memref<72x256xf32, #tpu.memory_space<vmem>>, vector<8x256xf32>,
    %c15_i32_299 = arith.constant 15 : i32
    %306 = tpu.dynamic_rotate %295 by %c15_i32_299 dim 1 : vector<8x256xf32>, i32 -> vector<8x256xf32>
    %c2_300 = arith.constant 2 : index
    %c0_301 = arith.constant 0 : index
    %c0_302 = arith.constant 0 : index
    %307 = vector.load %arg4[%c2_300, %c0_301, %c0_302] : memref<9x8x256xf32, #tpu.memory_space<vmem>>, vector<1x8x256xf32>
    %308 = vector.shape_cast %307 : vector<1x8x256xf32> to vector<8x256xf32>
    %309 = arith.mulf %306, %308 : vector<8x256xf32>
    %c16_303 = arith.constant 16 : index
    %c0_304 = arith.constant 0 : index
    %310 = vector.load %arg6[%c16_303, %c0_304] : memref<72x256xf32, #tpu.memory_space<vmem>>, vector<8x256xf32>
    tpu.vector_store %arg6[%c16_303, %c0_304], %309 {strides = array<i32>} : memref<72x256xf32, #tpu.memory_space<vmem>>, vector<8x256xf32>,
    %c1_i32_305 = arith.constant 1 : i32
    %311 = tpu.dynamic_rotate %295 by %c1_i32_305 dim 1 : vector<8x256xf32>, i32 -> vector<8x256xf32>
    %c3_306 = arith.constant 3 : index
    %c0_307 = arith.constant 0 : index
    %c0_308 = arith.constant 0 : index
    %312 = vector.load %arg4[%c3_306, %c0_307, %c0_308] : memref<9x8x256xf32, #tpu.memory_space<vmem>>, vector<1x8x256xf32>
    %313 = vector.shape_cast %312 : vector<1x8x256xf32> to vector<8x256xf32>
    %314 = arith.mulf %311, %313 : vector<8x256xf32>
    %c24_309 = arith.constant 24 : index
    %c0_310 = arith.constant 0 : index
    %315 = vector.load %arg6[%c24_309, %c0_310] : memref<72x256xf32, #tpu.memory_space<vmem>>, vector<8x256xf32>
    tpu.vector_store %arg6[%c24_309, %c0_310], %314 {strides = array<i32>} : memref<72x256xf32, #tpu.memory_space<vmem>>, vector<8x256xf32>,
    %c32_311 = arith.constant 32 : index
    %c0_312 = arith.constant 0 : index
    %316 = vector.load %arg6[%c32_311, %c0_312] : memref<72x256xf32, #tpu.memory_space<vmem>>, vector<8x256xf32>
    tpu.vector_store %arg6[%c32_311, %c0_312], %295 {strides = array<i32>} : memref<72x256xf32, #tpu.memory_space<vmem>>, vector<8x256xf32>,
    %c255_i32_313 = arith.constant 255 : i32
    %317 = tpu.dynamic_rotate %295 by %c255_i32_313 dim 1 : vector<8x256xf32>, i32 -> vector<8x256xf32>
    %c5_314 = arith.constant 5 : index
    %c0_315 = arith.constant 0 : index
    %c0_316 = arith.constant 0 : index
    %318 = vector.load %arg4[%c5_314, %c0_315, %c0_316] : memref<9x8x256xf32, #tpu.memory_space<vmem>>, vector<1x8x256xf32>
    %319 = vector.shape_cast %318 : vector<1x8x256xf32> to vector<8x256xf32>
    %320 = arith.mulf %317, %319 : vector<8x256xf32>
    %c40_317 = arith.constant 40 : index
    %c0_318 = arith.constant 0 : index
    %321 = vector.load %arg6[%c40_317, %c0_318] : memref<72x256xf32, #tpu.memory_space<vmem>>, vector<8x256xf32>
    tpu.vector_store %arg6[%c40_317, %c0_318], %320 {strides = array<i32>} : memref<72x256xf32, #tpu.memory_space<vmem>>, vector<8x256xf32>,
    %c241_i32_319 = arith.constant 241 : i32
    %322 = tpu.dynamic_rotate %295 by %c241_i32_319 dim 1 : vector<8x256xf32>, i32 -> vector<8x256xf32>
    %c6_320 = arith.constant 6 : index
    %c0_321 = arith.constant 0 : index
    %c0_322 = arith.constant 0 : index
    %323 = vector.load %arg4[%c6_320, %c0_321, %c0_322] : memref<9x8x256xf32, #tpu.memory_space<vmem>>, vector<1x8x256xf32>
    %324 = vector.shape_cast %323 : vector<1x8x256xf32> to vector<8x256xf32>
    %325 = arith.mulf %322, %324 : vector<8x256xf32>
    %c48_323 = arith.constant 48 : index
    %c0_324 = arith.constant 0 : index
    %326 = vector.load %arg6[%c48_323, %c0_324] : memref<72x256xf32, #tpu.memory_space<vmem>>, vector<8x256xf32>
    tpu.vector_store %arg6[%c48_323, %c0_324], %325 {strides = array<i32>} : memref<72x256xf32, #tpu.memory_space<vmem>>, vector<8x256xf32>,
    %c240_i32_325 = arith.constant 240 : i32
    %327 = tpu.dynamic_rotate %295 by %c240_i32_325 dim 1 : vector<8x256xf32>, i32 -> vector<8x256xf32>
    %c7_326 = arith.constant 7 : index
    %c0_327 = arith.constant 0 : index
    %c0_328 = arith.constant 0 : index
    %328 = vector.load %arg4[%c7_326, %c0_327, %c0_328] : memref<9x8x256xf32, #tpu.memory_space<vmem>>, vector<1x8x256xf32>
    %329 = vector.shape_cast %328 : vector<1x8x256xf32> to vector<8x256xf32>
    %330 = arith.mulf %327, %329 : vector<8x256xf32>
    %c56_329 = arith.constant 56 : index
    %c0_330 = arith.constant 0 : index
    %331 = vector.load %arg6[%c56_329, %c0_330] : memref<72x256xf32, #tpu.memory_space<vmem>>, vector<8x256xf32>
    tpu.vector_store %arg6[%c56_329, %c0_330], %330 {strides = array<i32>} : memref<72x256xf32, #tpu.memory_space<vmem>>, vector<8x256xf32>,
    %c239_i32_331 = arith.constant 239 : i32
    %332 = tpu.dynamic_rotate %295 by %c239_i32_331 dim 1 : vector<8x256xf32>, i32 -> vector<8x256xf32>
    %c8_332 = arith.constant 8 : index
    %c0_333 = arith.constant 0 : index
    %c0_334 = arith.constant 0 : index
    %333 = vector.load %arg4[%c8_332, %c0_333, %c0_334] : memref<9x8x256xf32, #tpu.memory_space<vmem>>, vector<1x8x256xf32>
    %334 = vector.shape_cast %333 : vector<1x8x256xf32> to vector<8x256xf32>
    %335 = arith.mulf %332, %334 : vector<8x256xf32>
    %c64_335 = arith.constant 64 : index
    %c0_336 = arith.constant 0 : index
    %336 = vector.load %arg6[%c64_335, %c0_336] : memref<72x256xf32, #tpu.memory_space<vmem>>, vector<8x256xf32>
    tpu.vector_store %arg6[%c64_335, %c0_336], %335 {strides = array<i32>} : memref<72x256xf32, #tpu.memory_space<vmem>>, vector<8x256xf32>,
    %c5_337 = arith.constant 5 : index
    %c0_338 = arith.constant 0 : index
    %c0_339 = arith.constant 0 : index
    %337 = vector.load %arg2[%c5_337, %c0_338, %c0_339] : memref<10x8x72xf32, #tpu.memory_space<vmem>>, vector<1x8x72xf32>
    %338 = vector.shape_cast %337 : vector<1x8x72xf32> to vector<8x72xf32>
    %c0_340 = arith.constant 0 : index
    %c0_341 = arith.constant 0 : index
    %339 = vector.load %arg6[%c0_340, %c0_341] : memref<72x256xf32, #tpu.memory_space<vmem>>, vector<72x256xf32>
    %cst_342 = arith.constant dense<0.000000e+00> : vector<8x256xf32>
    %340 = tpu.matmul %338, %339, %cst_342 {dimension_numbers = #tpu.dot_dimension_numbers<[1], [0], [0], [1], [0, 0, 1, 1], [], []>} : vector<8x72xf32>, vector<72x256xf32>, vector<8x256xf32> -> vector<8x256xf32>
    %c5_343 = arith.constant 5 : index
    %c0_344 = arith.constant 0 : index
    %c0_345 = arith.constant 0 : index
    %341 = vector.load %arg3[%c5_343, %c0_344, %c0_345] : memref<10x8x1xf32, #tpu.memory_space<vmem>>, vector<1x8x1xf32>
    %342 = vector.shape_cast %341 : vector<1x8x1xf32> to vector<8x1xf32>
    %343 = vector.broadcast %342 : vector<8x1xf32> to vector<8x256xf32>
    %344 = arith.addf %340, %343 : vector<8x256xf32>
    %345 = math.absf %344 : vector<8x256xf32>
    %346 = vector.shape_cast %345 : vector<8x256xf32> to vector<1x8x256xf32>
    %cst_346 = arith.constant dense<0xFF800000> : vector<1xf32>
    %347 = vector.multi_reduction <maximumf>, %346, %cst_346 [1, 2] : vector<1x8x256xf32> to vector<1xf32>
    %348 = vector.shape_cast %347 : vector<1xf32> to vector<1x1x1xf32>
    %349 = vector.extract %348[0, 0, 0] : f32 from vector<1x1x1xf32>
    %cst_347 = arith.constant 1.000000e+00 : f32
    %350 = arith.addf %349, %cst_347 : f32
    %cst_348 = arith.constant 3.000000e+00 : f32
    %351 = arith.divf %cst_348, %350 : f32
    %352 = vector.broadcast %351 : f32 to vector<8x256xf32>
    %353 = arith.mulf %344, %352 : vector<8x256xf32>
    %354 = math.tanh %353 : vector<8x256xf32>
    %c17_i32_349 = arith.constant 17 : i32
    %355 = tpu.dynamic_rotate %354 by %c17_i32_349 dim 1 : vector<8x256xf32>, i32 -> vector<8x256xf32>
    %c0_350 = arith.constant 0 : index
    %c0_351 = arith.constant 0 : index
    %c0_352 = arith.constant 0 : index
    %356 = vector.load %arg4[%c0_350, %c0_351, %c0_352] : memref<9x8x256xf32, #tpu.memory_space<vmem>>, vector<1x8x256xf32>
    %357 = vector.shape_cast %356 : vector<1x8x256xf32> to vector<8x256xf32>
    %358 = arith.mulf %355, %357 : vector<8x256xf32>
    %c0_353 = arith.constant 0 : index
    %c0_354 = arith.constant 0 : index
    %359 = vector.load %arg6[%c0_353, %c0_354] : memref<72x256xf32, #tpu.memory_space<vmem>>, vector<8x256xf32>
    tpu.vector_store %arg6[%c0_353, %c0_354], %358 {strides = array<i32>} : memref<72x256xf32, #tpu.memory_space<vmem>>, vector<8x256xf32>,
    %c16_i32_355 = arith.constant 16 : i32
    %360 = tpu.dynamic_rotate %354 by %c16_i32_355 dim 1 : vector<8x256xf32>, i32 -> vector<8x256xf32>
    %c1_356 = arith.constant 1 : index
    %c0_357 = arith.constant 0 : index
    %c0_358 = arith.constant 0 : index
    %361 = vector.load %arg4[%c1_356, %c0_357, %c0_358] : memref<9x8x256xf32, #tpu.memory_space<vmem>>, vector<1x8x256xf32>
    %362 = vector.shape_cast %361 : vector<1x8x256xf32> to vector<8x256xf32>
    %363 = arith.mulf %360, %362 : vector<8x256xf32>
    %c8_359 = arith.constant 8 : index
    %c0_360 = arith.constant 0 : index
    %364 = vector.load %arg6[%c8_359, %c0_360] : memref<72x256xf32, #tpu.memory_space<vmem>>, vector<8x256xf32>
    tpu.vector_store %arg6[%c8_359, %c0_360], %363 {strides = array<i32>} : memref<72x256xf32, #tpu.memory_space<vmem>>, vector<8x256xf32>,
    %c15_i32_361 = arith.constant 15 : i32
    %365 = tpu.dynamic_rotate %354 by %c15_i32_361 dim 1 : vector<8x256xf32>, i32 -> vector<8x256xf32>
    %c2_362 = arith.constant 2 : index
    %c0_363 = arith.constant 0 : index
    %c0_364 = arith.constant 0 : index
    %366 = vector.load %arg4[%c2_362, %c0_363, %c0_364] : memref<9x8x256xf32, #tpu.memory_space<vmem>>, vector<1x8x256xf32>
    %367 = vector.shape_cast %366 : vector<1x8x256xf32> to vector<8x256xf32>
    %368 = arith.mulf %365, %367 : vector<8x256xf32>
    %c16_365 = arith.constant 16 : index
    %c0_366 = arith.constant 0 : index
    %369 = vector.load %arg6[%c16_365, %c0_366] : memref<72x256xf32, #tpu.memory_space<vmem>>, vector<8x256xf32>
    tpu.vector_store %arg6[%c16_365, %c0_366], %368 {strides = array<i32>} : memref<72x256xf32, #tpu.memory_space<vmem>>, vector<8x256xf32>,
    %c1_i32_367 = arith.constant 1 : i32
    %370 = tpu.dynamic_rotate %354 by %c1_i32_367 dim 1 : vector<8x256xf32>, i32 -> vector<8x256xf32>
    %c3_368 = arith.constant 3 : index
    %c0_369 = arith.constant 0 : index
    %c0_370 = arith.constant 0 : index
    %371 = vector.load %arg4[%c3_368, %c0_369, %c0_370] : memref<9x8x256xf32, #tpu.memory_space<vmem>>, vector<1x8x256xf32>
    %372 = vector.shape_cast %371 : vector<1x8x256xf32> to vector<8x256xf32>
    %373 = arith.mulf %370, %372 : vector<8x256xf32>
    %c24_371 = arith.constant 24 : index
    %c0_372 = arith.constant 0 : index
    %374 = vector.load %arg6[%c24_371, %c0_372] : memref<72x256xf32, #tpu.memory_space<vmem>>, vector<8x256xf32>
    tpu.vector_store %arg6[%c24_371, %c0_372], %373 {strides = array<i32>} : memref<72x256xf32, #tpu.memory_space<vmem>>, vector<8x256xf32>,
    %c32_373 = arith.constant 32 : index
    %c0_374 = arith.constant 0 : index
    %375 = vector.load %arg6[%c32_373, %c0_374] : memref<72x256xf32, #tpu.memory_space<vmem>>, vector<8x256xf32>
    tpu.vector_store %arg6[%c32_373, %c0_374], %354 {strides = array<i32>} : memref<72x256xf32, #tpu.memory_space<vmem>>, vector<8x256xf32>,
    %c255_i32_375 = arith.constant 255 : i32
    %376 = tpu.dynamic_rotate %354 by %c255_i32_375 dim 1 : vector<8x256xf32>, i32 -> vector<8x256xf32>
    %c5_376 = arith.constant 5 : index
    %c0_377 = arith.constant 0 : index
    %c0_378 = arith.constant 0 : index
    %377 = vector.load %arg4[%c5_376, %c0_377, %c0_378] : memref<9x8x256xf32, #tpu.memory_space<vmem>>, vector<1x8x256xf32>
    %378 = vector.shape_cast %377 : vector<1x8x256xf32> to vector<8x256xf32>
    %379 = arith.mulf %376, %378 : vector<8x256xf32>
    %c40_379 = arith.constant 40 : index
    %c0_380 = arith.constant 0 : index
    %380 = vector.load %arg6[%c40_379, %c0_380] : memref<72x256xf32, #tpu.memory_space<vmem>>, vector<8x256xf32>
    tpu.vector_store %arg6[%c40_379, %c0_380], %379 {strides = array<i32>} : memref<72x256xf32, #tpu.memory_space<vmem>>, vector<8x256xf32>,
    %c241_i32_381 = arith.constant 241 : i32
    %381 = tpu.dynamic_rotate %354 by %c241_i32_381 dim 1 : vector<8x256xf32>, i32 -> vector<8x256xf32>
    %c6_382 = arith.constant 6 : index
    %c0_383 = arith.constant 0 : index
    %c0_384 = arith.constant 0 : index
    %382 = vector.load %arg4[%c6_382, %c0_383, %c0_384] : memref<9x8x256xf32, #tpu.memory_space<vmem>>, vector<1x8x256xf32>
    %383 = vector.shape_cast %382 : vector<1x8x256xf32> to vector<8x256xf32>
    %384 = arith.mulf %381, %383 : vector<8x256xf32>
    %c48_385 = arith.constant 48 : index
    %c0_386 = arith.constant 0 : index
    %385 = vector.load %arg6[%c48_385, %c0_386] : memref<72x256xf32, #tpu.memory_space<vmem>>, vector<8x256xf32>
    tpu.vector_store %arg6[%c48_385, %c0_386], %384 {strides = array<i32>} : memref<72x256xf32, #tpu.memory_space<vmem>>, vector<8x256xf32>,
    %c240_i32_387 = arith.constant 240 : i32
    %386 = tpu.dynamic_rotate %354 by %c240_i32_387 dim 1 : vector<8x256xf32>, i32 -> vector<8x256xf32>
    %c7_388 = arith.constant 7 : index
    %c0_389 = arith.constant 0 : index
    %c0_390 = arith.constant 0 : index
    %387 = vector.load %arg4[%c7_388, %c0_389, %c0_390] : memref<9x8x256xf32, #tpu.memory_space<vmem>>, vector<1x8x256xf32>
    %388 = vector.shape_cast %387 : vector<1x8x256xf32> to vector<8x256xf32>
    %389 = arith.mulf %386, %388 : vector<8x256xf32>
    %c56_391 = arith.constant 56 : index
    %c0_392 = arith.constant 0 : index
    %390 = vector.load %arg6[%c56_391, %c0_392] : memref<72x256xf32, #tpu.memory_space<vmem>>, vector<8x256xf32>
    tpu.vector_store %arg6[%c56_391, %c0_392], %389 {strides = array<i32>} : memref<72x256xf32, #tpu.memory_space<vmem>>, vector<8x256xf32>,
    %c239_i32_393 = arith.constant 239 : i32
    %391 = tpu.dynamic_rotate %354 by %c239_i32_393 dim 1 : vector<8x256xf32>, i32 -> vector<8x256xf32>
    %c8_394 = arith.constant 8 : index
    %c0_395 = arith.constant 0 : index
    %c0_396 = arith.constant 0 : index
    %392 = vector.load %arg4[%c8_394, %c0_395, %c0_396] : memref<9x8x256xf32, #tpu.memory_space<vmem>>, vector<1x8x256xf32>
    %393 = vector.shape_cast %392 : vector<1x8x256xf32> to vector<8x256xf32>
    %394 = arith.mulf %391, %393 : vector<8x256xf32>
    %c64_397 = arith.constant 64 : index
    %c0_398 = arith.constant 0 : index
    %395 = vector.load %arg6[%c64_397, %c0_398] : memref<72x256xf32, #tpu.memory_space<vmem>>, vector<8x256xf32>
    tpu.vector_store %arg6[%c64_397, %c0_398], %394 {strides = array<i32>} : memref<72x256xf32, #tpu.memory_space<vmem>>, vector<8x256xf32>,
    %c6_399 = arith.constant 6 : index
    %c0_400 = arith.constant 0 : index
    %c0_401 = arith.constant 0 : index
    %396 = vector.load %arg2[%c6_399, %c0_400, %c0_401] : memref<10x8x72xf32, #tpu.memory_space<vmem>>, vector<1x8x72xf32>
    %397 = vector.shape_cast %396 : vector<1x8x72xf32> to vector<8x72xf32>
    %c0_402 = arith.constant 0 : index
    %c0_403 = arith.constant 0 : index
    %398 = vector.load %arg6[%c0_402, %c0_403] : memref<72x256xf32, #tpu.memory_space<vmem>>, vector<72x256xf32>
    %cst_404 = arith.constant dense<0.000000e+00> : vector<8x256xf32>
    %399 = tpu.matmul %397, %398, %cst_404 {dimension_numbers = #tpu.dot_dimension_numbers<[1], [0], [0], [1], [0, 0, 1, 1], [], []>} : vector<8x72xf32>, vector<72x256xf32>, vector<8x256xf32> -> vector<8x256xf32>
    %c6_405 = arith.constant 6 : index
    %c0_406 = arith.constant 0 : index
    %c0_407 = arith.constant 0 : index
    %400 = vector.load %arg3[%c6_405, %c0_406, %c0_407] : memref<10x8x1xf32, #tpu.memory_space<vmem>>, vector<1x8x1xf32>
    %401 = vector.shape_cast %400 : vector<1x8x1xf32> to vector<8x1xf32>
    %402 = vector.broadcast %401 : vector<8x1xf32> to vector<8x256xf32>
    %403 = arith.addf %399, %402 : vector<8x256xf32>
    %404 = math.absf %403 : vector<8x256xf32>
    %405 = vector.shape_cast %404 : vector<8x256xf32> to vector<1x8x256xf32>
    %cst_408 = arith.constant dense<0xFF800000> : vector<1xf32>
    %406 = vector.multi_reduction <maximumf>, %405, %cst_408 [1, 2] : vector<1x8x256xf32> to vector<1xf32>
    %407 = vector.shape_cast %406 : vector<1xf32> to vector<1x1x1xf32>
    %408 = vector.extract %407[0, 0, 0] : f32 from vector<1x1x1xf32>
    %cst_409 = arith.constant 1.000000e+00 : f32
    %409 = arith.addf %408, %cst_409 : f32
    %cst_410 = arith.constant 3.000000e+00 : f32
    %410 = arith.divf %cst_410, %409 : f32
    %411 = vector.broadcast %410 : f32 to vector<8x256xf32>
    %412 = arith.mulf %403, %411 : vector<8x256xf32>
    %413 = math.tanh %412 : vector<8x256xf32>
    %c17_i32_411 = arith.constant 17 : i32
    %414 = tpu.dynamic_rotate %413 by %c17_i32_411 dim 1 : vector<8x256xf32>, i32 -> vector<8x256xf32>
    %c0_412 = arith.constant 0 : index
    %c0_413 = arith.constant 0 : index
    %c0_414 = arith.constant 0 : index
    %415 = vector.load %arg4[%c0_412, %c0_413, %c0_414] : memref<9x8x256xf32, #tpu.memory_space<vmem>>, vector<1x8x256xf32>
    %416 = vector.shape_cast %415 : vector<1x8x256xf32> to vector<8x256xf32>
    %417 = arith.mulf %414, %416 : vector<8x256xf32>
    %c0_415 = arith.constant 0 : index
    %c0_416 = arith.constant 0 : index
    %418 = vector.load %arg6[%c0_415, %c0_416] : memref<72x256xf32, #tpu.memory_space<vmem>>, vector<8x256xf32>
    tpu.vector_store %arg6[%c0_415, %c0_416], %417 {strides = array<i32>} : memref<72x256xf32, #tpu.memory_space<vmem>>, vector<8x256xf32>,
    %c16_i32_417 = arith.constant 16 : i32
    %419 = tpu.dynamic_rotate %413 by %c16_i32_417 dim 1 : vector<8x256xf32>, i32 -> vector<8x256xf32>
    %c1_418 = arith.constant 1 : index
    %c0_419 = arith.constant 0 : index
    %c0_420 = arith.constant 0 : index
    %420 = vector.load %arg4[%c1_418, %c0_419, %c0_420] : memref<9x8x256xf32, #tpu.memory_space<vmem>>, vector<1x8x256xf32>
    %421 = vector.shape_cast %420 : vector<1x8x256xf32> to vector<8x256xf32>
    %422 = arith.mulf %419, %421 : vector<8x256xf32>
    %c8_421 = arith.constant 8 : index
    %c0_422 = arith.constant 0 : index
    %423 = vector.load %arg6[%c8_421, %c0_422] : memref<72x256xf32, #tpu.memory_space<vmem>>, vector<8x256xf32>
    tpu.vector_store %arg6[%c8_421, %c0_422], %422 {strides = array<i32>} : memref<72x256xf32, #tpu.memory_space<vmem>>, vector<8x256xf32>,
    %c15_i32_423 = arith.constant 15 : i32
    %424 = tpu.dynamic_rotate %413 by %c15_i32_423 dim 1 : vector<8x256xf32>, i32 -> vector<8x256xf32>
    %c2_424 = arith.constant 2 : index
    %c0_425 = arith.constant 0 : index
    %c0_426 = arith.constant 0 : index
    %425 = vector.load %arg4[%c2_424, %c0_425, %c0_426] : memref<9x8x256xf32, #tpu.memory_space<vmem>>, vector<1x8x256xf32>
    %426 = vector.shape_cast %425 : vector<1x8x256xf32> to vector<8x256xf32>
    %427 = arith.mulf %424, %426 : vector<8x256xf32>
    %c16_427 = arith.constant 16 : index
    %c0_428 = arith.constant 0 : index
    %428 = vector.load %arg6[%c16_427, %c0_428] : memref<72x256xf32, #tpu.memory_space<vmem>>, vector<8x256xf32>
    tpu.vector_store %arg6[%c16_427, %c0_428], %427 {strides = array<i32>} : memref<72x256xf32, #tpu.memory_space<vmem>>, vector<8x256xf32>,
    %c1_i32_429 = arith.constant 1 : i32
    %429 = tpu.dynamic_rotate %413 by %c1_i32_429 dim 1 : vector<8x256xf32>, i32 -> vector<8x256xf32>
    %c3_430 = arith.constant 3 : index
    %c0_431 = arith.constant 0 : index
    %c0_432 = arith.constant 0 : index
    %430 = vector.load %arg4[%c3_430, %c0_431, %c0_432] : memref<9x8x256xf32, #tpu.memory_space<vmem>>, vector<1x8x256xf32>
    %431 = vector.shape_cast %430 : vector<1x8x256xf32> to vector<8x256xf32>
    %432 = arith.mulf %429, %431 : vector<8x256xf32>
    %c24_433 = arith.constant 24 : index
    %c0_434 = arith.constant 0 : index
    %433 = vector.load %arg6[%c24_433, %c0_434] : memref<72x256xf32, #tpu.memory_space<vmem>>, vector<8x256xf32>
    tpu.vector_store %arg6[%c24_433, %c0_434], %432 {strides = array<i32>} : memref<72x256xf32, #tpu.memory_space<vmem>>, vector<8x256xf32>,
    %c32_435 = arith.constant 32 : index
    %c0_436 = arith.constant 0 : index
    %434 = vector.load %arg6[%c32_435, %c0_436] : memref<72x256xf32, #tpu.memory_space<vmem>>, vector<8x256xf32>
    tpu.vector_store %arg6[%c32_435, %c0_436], %413 {strides = array<i32>} : memref<72x256xf32, #tpu.memory_space<vmem>>, vector<8x256xf32>,
    %c255_i32_437 = arith.constant 255 : i32
    %435 = tpu.dynamic_rotate %413 by %c255_i32_437 dim 1 : vector<8x256xf32>, i32 -> vector<8x256xf32>
    %c5_438 = arith.constant 5 : index
    %c0_439 = arith.constant 0 : index
    %c0_440 = arith.constant 0 : index
    %436 = vector.load %arg4[%c5_438, %c0_439, %c0_440] : memref<9x8x256xf32, #tpu.memory_space<vmem>>, vector<1x8x256xf32>
    %437 = vector.shape_cast %436 : vector<1x8x256xf32> to vector<8x256xf32>
    %438 = arith.mulf %435, %437 : vector<8x256xf32>
    %c40_441 = arith.constant 40 : index
    %c0_442 = arith.constant 0 : index
    %439 = vector.load %arg6[%c40_441, %c0_442] : memref<72x256xf32, #tpu.memory_space<vmem>>, vector<8x256xf32>
    tpu.vector_store %arg6[%c40_441, %c0_442], %438 {strides = array<i32>} : memref<72x256xf32, #tpu.memory_space<vmem>>, vector<8x256xf32>,
    %c241_i32_443 = arith.constant 241 : i32
    %440 = tpu.dynamic_rotate %413 by %c241_i32_443 dim 1 : vector<8x256xf32>, i32 -> vector<8x256xf32>
    %c6_444 = arith.constant 6 : index
    %c0_445 = arith.constant 0 : index
    %c0_446 = arith.constant 0 : index
    %441 = vector.load %arg4[%c6_444, %c0_445, %c0_446] : memref<9x8x256xf32, #tpu.memory_space<vmem>>, vector<1x8x256xf32>
    %442 = vector.shape_cast %441 : vector<1x8x256xf32> to vector<8x256xf32>
    %443 = arith.mulf %440, %442 : vector<8x256xf32>
    %c48_447 = arith.constant 48 : index
    %c0_448 = arith.constant 0 : index
    %444 = vector.load %arg6[%c48_447, %c0_448] : memref<72x256xf32, #tpu.memory_space<vmem>>, vector<8x256xf32>
    tpu.vector_store %arg6[%c48_447, %c0_448], %443 {strides = array<i32>} : memref<72x256xf32, #tpu.memory_space<vmem>>, vector<8x256xf32>,
    %c240_i32_449 = arith.constant 240 : i32
    %445 = tpu.dynamic_rotate %413 by %c240_i32_449 dim 1 : vector<8x256xf32>, i32 -> vector<8x256xf32>
    %c7_450 = arith.constant 7 : index
    %c0_451 = arith.constant 0 : index
    %c0_452 = arith.constant 0 : index
    %446 = vector.load %arg4[%c7_450, %c0_451, %c0_452] : memref<9x8x256xf32, #tpu.memory_space<vmem>>, vector<1x8x256xf32>
    %447 = vector.shape_cast %446 : vector<1x8x256xf32> to vector<8x256xf32>
    %448 = arith.mulf %445, %447 : vector<8x256xf32>
    %c56_453 = arith.constant 56 : index
    %c0_454 = arith.constant 0 : index
    %449 = vector.load %arg6[%c56_453, %c0_454] : memref<72x256xf32, #tpu.memory_space<vmem>>, vector<8x256xf32>
    tpu.vector_store %arg6[%c56_453, %c0_454], %448 {strides = array<i32>} : memref<72x256xf32, #tpu.memory_space<vmem>>, vector<8x256xf32>,
    %c239_i32_455 = arith.constant 239 : i32
    %450 = tpu.dynamic_rotate %413 by %c239_i32_455 dim 1 : vector<8x256xf32>, i32 -> vector<8x256xf32>
    %c8_456 = arith.constant 8 : index
    %c0_457 = arith.constant 0 : index
    %c0_458 = arith.constant 0 : index
    %451 = vector.load %arg4[%c8_456, %c0_457, %c0_458] : memref<9x8x256xf32, #tpu.memory_space<vmem>>, vector<1x8x256xf32>
    %452 = vector.shape_cast %451 : vector<1x8x256xf32> to vector<8x256xf32>
    %453 = arith.mulf %450, %452 : vector<8x256xf32>
    %c64_459 = arith.constant 64 : index
    %c0_460 = arith.constant 0 : index
    %454 = vector.load %arg6[%c64_459, %c0_460] : memref<72x256xf32, #tpu.memory_space<vmem>>, vector<8x256xf32>
    tpu.vector_store %arg6[%c64_459, %c0_460], %453 {strides = array<i32>} : memref<72x256xf32, #tpu.memory_space<vmem>>, vector<8x256xf32>,
    %c7_461 = arith.constant 7 : index
    %c0_462 = arith.constant 0 : index
    %c0_463 = arith.constant 0 : index
    %455 = vector.load %arg2[%c7_461, %c0_462, %c0_463] : memref<10x8x72xf32, #tpu.memory_space<vmem>>, vector<1x8x72xf32>
    %456 = vector.shape_cast %455 : vector<1x8x72xf32> to vector<8x72xf32>
    %c0_464 = arith.constant 0 : index
    %c0_465 = arith.constant 0 : index
    %457 = vector.load %arg6[%c0_464, %c0_465] : memref<72x256xf32, #tpu.memory_space<vmem>>, vector<72x256xf32>
    %cst_466 = arith.constant dense<0.000000e+00> : vector<8x256xf32>
    %458 = tpu.matmul %456, %457, %cst_466 {dimension_numbers = #tpu.dot_dimension_numbers<[1], [0], [0], [1], [0, 0, 1, 1], [], []>} : vector<8x72xf32>, vector<72x256xf32>, vector<8x256xf32> -> vector<8x256xf32>
    %c7_467 = arith.constant 7 : index
    %c0_468 = arith.constant 0 : index
    %c0_469 = arith.constant 0 : index
    %459 = vector.load %arg3[%c7_467, %c0_468, %c0_469] : memref<10x8x1xf32, #tpu.memory_space<vmem>>, vector<1x8x1xf32>
    %460 = vector.shape_cast %459 : vector<1x8x1xf32> to vector<8x1xf32>
    %461 = vector.broadcast %460 : vector<8x1xf32> to vector<8x256xf32>
    %462 = arith.addf %458, %461 : vector<8x256xf32>
    %463 = math.absf %462 : vector<8x256xf32>
    %464 = vector.shape_cast %463 : vector<8x256xf32> to vector<1x8x256xf32>
    %cst_470 = arith.constant dense<0xFF800000> : vector<1xf32>
    %465 = vector.multi_reduction <maximumf>, %464, %cst_470 [1, 2] : vector<1x8x256xf32> to vector<1xf32>
    %466 = vector.shape_cast %465 : vector<1xf32> to vector<1x1x1xf32>
    %467 = vector.extract %466[0, 0, 0] : f32 from vector<1x1x1xf32>
    %cst_471 = arith.constant 1.000000e+00 : f32
    %468 = arith.addf %467, %cst_471 : f32
    %cst_472 = arith.constant 3.000000e+00 : f32
    %469 = arith.divf %cst_472, %468 : f32
    %470 = vector.broadcast %469 : f32 to vector<8x256xf32>
    %471 = arith.mulf %462, %470 : vector<8x256xf32>
    %472 = math.tanh %471 : vector<8x256xf32>
    %c17_i32_473 = arith.constant 17 : i32
    %473 = tpu.dynamic_rotate %472 by %c17_i32_473 dim 1 : vector<8x256xf32>, i32 -> vector<8x256xf32>
    %c0_474 = arith.constant 0 : index
    %c0_475 = arith.constant 0 : index
    %c0_476 = arith.constant 0 : index
    %474 = vector.load %arg4[%c0_474, %c0_475, %c0_476] : memref<9x8x256xf32, #tpu.memory_space<vmem>>, vector<1x8x256xf32>
    %475 = vector.shape_cast %474 : vector<1x8x256xf32> to vector<8x256xf32>
    %476 = arith.mulf %473, %475 : vector<8x256xf32>
    %c0_477 = arith.constant 0 : index
    %c0_478 = arith.constant 0 : index
    %477 = vector.load %arg6[%c0_477, %c0_478] : memref<72x256xf32, #tpu.memory_space<vmem>>, vector<8x256xf32>
    tpu.vector_store %arg6[%c0_477, %c0_478], %476 {strides = array<i32>} : memref<72x256xf32, #tpu.memory_space<vmem>>, vector<8x256xf32>,
    %c16_i32_479 = arith.constant 16 : i32
    %478 = tpu.dynamic_rotate %472 by %c16_i32_479 dim 1 : vector<8x256xf32>, i32 -> vector<8x256xf32>
    %c1_480 = arith.constant 1 : index
    %c0_481 = arith.constant 0 : index
    %c0_482 = arith.constant 0 : index
    %479 = vector.load %arg4[%c1_480, %c0_481, %c0_482] : memref<9x8x256xf32, #tpu.memory_space<vmem>>, vector<1x8x256xf32>
    %480 = vector.shape_cast %479 : vector<1x8x256xf32> to vector<8x256xf32>
    %481 = arith.mulf %478, %480 : vector<8x256xf32>
    %c8_483 = arith.constant 8 : index
    %c0_484 = arith.constant 0 : index
    %482 = vector.load %arg6[%c8_483, %c0_484] : memref<72x256xf32, #tpu.memory_space<vmem>>, vector<8x256xf32>
    tpu.vector_store %arg6[%c8_483, %c0_484], %481 {strides = array<i32>} : memref<72x256xf32, #tpu.memory_space<vmem>>, vector<8x256xf32>,
    %c15_i32_485 = arith.constant 15 : i32
    %483 = tpu.dynamic_rotate %472 by %c15_i32_485 dim 1 : vector<8x256xf32>, i32 -> vector<8x256xf32>
    %c2_486 = arith.constant 2 : index
    %c0_487 = arith.constant 0 : index
    %c0_488 = arith.constant 0 : index
    %484 = vector.load %arg4[%c2_486, %c0_487, %c0_488] : memref<9x8x256xf32, #tpu.memory_space<vmem>>, vector<1x8x256xf32>
    %485 = vector.shape_cast %484 : vector<1x8x256xf32> to vector<8x256xf32>
    %486 = arith.mulf %483, %485 : vector<8x256xf32>
    %c16_489 = arith.constant 16 : index
    %c0_490 = arith.constant 0 : index
    %487 = vector.load %arg6[%c16_489, %c0_490] : memref<72x256xf32, #tpu.memory_space<vmem>>, vector<8x256xf32>
    tpu.vector_store %arg6[%c16_489, %c0_490], %486 {strides = array<i32>} : memref<72x256xf32, #tpu.memory_space<vmem>>, vector<8x256xf32>,
    %c1_i32_491 = arith.constant 1 : i32
    %488 = tpu.dynamic_rotate %472 by %c1_i32_491 dim 1 : vector<8x256xf32>, i32 -> vector<8x256xf32>
    %c3_492 = arith.constant 3 : index
    %c0_493 = arith.constant 0 : index
    %c0_494 = arith.constant 0 : index
    %489 = vector.load %arg4[%c3_492, %c0_493, %c0_494] : memref<9x8x256xf32, #tpu.memory_space<vmem>>, vector<1x8x256xf32>
    %490 = vector.shape_cast %489 : vector<1x8x256xf32> to vector<8x256xf32>
    %491 = arith.mulf %488, %490 : vector<8x256xf32>
    %c24_495 = arith.constant 24 : index
    %c0_496 = arith.constant 0 : index
    %492 = vector.load %arg6[%c24_495, %c0_496] : memref<72x256xf32, #tpu.memory_space<vmem>>, vector<8x256xf32>
    tpu.vector_store %arg6[%c24_495, %c0_496], %491 {strides = array<i32>} : memref<72x256xf32, #tpu.memory_space<vmem>>, vector<8x256xf32>,
    %c32_497 = arith.constant 32 : index
    %c0_498 = arith.constant 0 : index
    %493 = vector.load %arg6[%c32_497, %c0_498] : memref<72x256xf32, #tpu.memory_space<vmem>>, vector<8x256xf32>
    tpu.vector_store %arg6[%c32_497, %c0_498], %472 {strides = array<i32>} : memref<72x256xf32, #tpu.memory_space<vmem>>, vector<8x256xf32>,
    %c255_i32_499 = arith.constant 255 : i32
    %494 = tpu.dynamic_rotate %472 by %c255_i32_499 dim 1 : vector<8x256xf32>, i32 -> vector<8x256xf32>
    %c5_500 = arith.constant 5 : index
    %c0_501 = arith.constant 0 : index
    %c0_502 = arith.constant 0 : index
    %495 = vector.load %arg4[%c5_500, %c0_501, %c0_502] : memref<9x8x256xf32, #tpu.memory_space<vmem>>, vector<1x8x256xf32>
    %496 = vector.shape_cast %495 : vector<1x8x256xf32> to vector<8x256xf32>
    %497 = arith.mulf %494, %496 : vector<8x256xf32>
    %c40_503 = arith.constant 40 : index
    %c0_504 = arith.constant 0 : index
    %498 = vector.load %arg6[%c40_503, %c0_504] : memref<72x256xf32, #tpu.memory_space<vmem>>, vector<8x256xf32>
    tpu.vector_store %arg6[%c40_503, %c0_504], %497 {strides = array<i32>} : memref<72x256xf32, #tpu.memory_space<vmem>>, vector<8x256xf32>,
    %c241_i32_505 = arith.constant 241 : i32
    %499 = tpu.dynamic_rotate %472 by %c241_i32_505 dim 1 : vector<8x256xf32>, i32 -> vector<8x256xf32>
    %c6_506 = arith.constant 6 : index
    %c0_507 = arith.constant 0 : index
    %c0_508 = arith.constant 0 : index
    %500 = vector.load %arg4[%c6_506, %c0_507, %c0_508] : memref<9x8x256xf32, #tpu.memory_space<vmem>>, vector<1x8x256xf32>
    %501 = vector.shape_cast %500 : vector<1x8x256xf32> to vector<8x256xf32>
    %502 = arith.mulf %499, %501 : vector<8x256xf32>
    %c48_509 = arith.constant 48 : index
    %c0_510 = arith.constant 0 : index
    %503 = vector.load %arg6[%c48_509, %c0_510] : memref<72x256xf32, #tpu.memory_space<vmem>>, vector<8x256xf32>
    tpu.vector_store %arg6[%c48_509, %c0_510], %502 {strides = array<i32>} : memref<72x256xf32, #tpu.memory_space<vmem>>, vector<8x256xf32>,
    %c240_i32_511 = arith.constant 240 : i32
    %504 = tpu.dynamic_rotate %472 by %c240_i32_511 dim 1 : vector<8x256xf32>, i32 -> vector<8x256xf32>
    %c7_512 = arith.constant 7 : index
    %c0_513 = arith.constant 0 : index
    %c0_514 = arith.constant 0 : index
    %505 = vector.load %arg4[%c7_512, %c0_513, %c0_514] : memref<9x8x256xf32, #tpu.memory_space<vmem>>, vector<1x8x256xf32>
    %506 = vector.shape_cast %505 : vector<1x8x256xf32> to vector<8x256xf32>
    %507 = arith.mulf %504, %506 : vector<8x256xf32>
    %c56_515 = arith.constant 56 : index
    %c0_516 = arith.constant 0 : index
    %508 = vector.load %arg6[%c56_515, %c0_516] : memref<72x256xf32, #tpu.memory_space<vmem>>, vector<8x256xf32>
    tpu.vector_store %arg6[%c56_515, %c0_516], %507 {strides = array<i32>} : memref<72x256xf32, #tpu.memory_space<vmem>>, vector<8x256xf32>,
    %c239_i32_517 = arith.constant 239 : i32
    %509 = tpu.dynamic_rotate %472 by %c239_i32_517 dim 1 : vector<8x256xf32>, i32 -> vector<8x256xf32>
    %c8_518 = arith.constant 8 : index
    %c0_519 = arith.constant 0 : index
    %c0_520 = arith.constant 0 : index
    %510 = vector.load %arg4[%c8_518, %c0_519, %c0_520] : memref<9x8x256xf32, #tpu.memory_space<vmem>>, vector<1x8x256xf32>
    %511 = vector.shape_cast %510 : vector<1x8x256xf32> to vector<8x256xf32>
    %512 = arith.mulf %509, %511 : vector<8x256xf32>
    %c64_521 = arith.constant 64 : index
    %c0_522 = arith.constant 0 : index
    %513 = vector.load %arg6[%c64_521, %c0_522] : memref<72x256xf32, #tpu.memory_space<vmem>>, vector<8x256xf32>
    tpu.vector_store %arg6[%c64_521, %c0_522], %512 {strides = array<i32>} : memref<72x256xf32, #tpu.memory_space<vmem>>, vector<8x256xf32>,
    %c8_523 = arith.constant 8 : index
    %c0_524 = arith.constant 0 : index
    %c0_525 = arith.constant 0 : index
    %514 = vector.load %arg2[%c8_523, %c0_524, %c0_525] : memref<10x8x72xf32, #tpu.memory_space<vmem>>, vector<1x8x72xf32>
    %515 = vector.shape_cast %514 : vector<1x8x72xf32> to vector<8x72xf32>
    %c0_526 = arith.constant 0 : index
    %c0_527 = arith.constant 0 : index
    %516 = vector.load %arg6[%c0_526, %c0_527] : memref<72x256xf32, #tpu.memory_space<vmem>>, vector<72x256xf32>
    %cst_528 = arith.constant dense<0.000000e+00> : vector<8x256xf32>
    %517 = tpu.matmul %515, %516, %cst_528 {dimension_numbers = #tpu.dot_dimension_numbers<[1], [0], [0], [1], [0, 0, 1, 1], [], []>} : vector<8x72xf32>, vector<72x256xf32>, vector<8x256xf32> -> vector<8x256xf32>
    %c8_529 = arith.constant 8 : index
    %c0_530 = arith.constant 0 : index
    %c0_531 = arith.constant 0 : index
    %518 = vector.load %arg3[%c8_529, %c0_530, %c0_531] : memref<10x8x1xf32, #tpu.memory_space<vmem>>, vector<1x8x1xf32>
    %519 = vector.shape_cast %518 : vector<1x8x1xf32> to vector<8x1xf32>
    %520 = vector.broadcast %519 : vector<8x1xf32> to vector<8x256xf32>
    %521 = arith.addf %517, %520 : vector<8x256xf32>
    %522 = math.absf %521 : vector<8x256xf32>
    %523 = vector.shape_cast %522 : vector<8x256xf32> to vector<1x8x256xf32>
    %cst_532 = arith.constant dense<0xFF800000> : vector<1xf32>
    %524 = vector.multi_reduction <maximumf>, %523, %cst_532 [1, 2] : vector<1x8x256xf32> to vector<1xf32>
    %525 = vector.shape_cast %524 : vector<1xf32> to vector<1x1x1xf32>
    %526 = vector.extract %525[0, 0, 0] : f32 from vector<1x1x1xf32>
    %cst_533 = arith.constant 1.000000e+00 : f32
    %527 = arith.addf %526, %cst_533 : f32
    %cst_534 = arith.constant 3.000000e+00 : f32
    %528 = arith.divf %cst_534, %527 : f32
    %529 = vector.broadcast %528 : f32 to vector<8x256xf32>
    %530 = arith.mulf %521, %529 : vector<8x256xf32>
    %531 = math.tanh %530 : vector<8x256xf32>
    %c17_i32_535 = arith.constant 17 : i32
    %532 = tpu.dynamic_rotate %531 by %c17_i32_535 dim 1 : vector<8x256xf32>, i32 -> vector<8x256xf32>
    %c0_536 = arith.constant 0 : index
    %c0_537 = arith.constant 0 : index
    %c0_538 = arith.constant 0 : index
    %533 = vector.load %arg4[%c0_536, %c0_537, %c0_538] : memref<9x8x256xf32, #tpu.memory_space<vmem>>, vector<1x8x256xf32>
    %534 = vector.shape_cast %533 : vector<1x8x256xf32> to vector<8x256xf32>
    %535 = arith.mulf %532, %534 : vector<8x256xf32>
    %c0_539 = arith.constant 0 : index
    %c0_540 = arith.constant 0 : index
    %536 = vector.load %arg6[%c0_539, %c0_540] : memref<72x256xf32, #tpu.memory_space<vmem>>, vector<8x256xf32>
    tpu.vector_store %arg6[%c0_539, %c0_540], %535 {strides = array<i32>} : memref<72x256xf32, #tpu.memory_space<vmem>>, vector<8x256xf32>,
    %c16_i32_541 = arith.constant 16 : i32
    %537 = tpu.dynamic_rotate %531 by %c16_i32_541 dim 1 : vector<8x256xf32>, i32 -> vector<8x256xf32>
    %c1_542 = arith.constant 1 : index
    %c0_543 = arith.constant 0 : index
    %c0_544 = arith.constant 0 : index
    %538 = vector.load %arg4[%c1_542, %c0_543, %c0_544] : memref<9x8x256xf32, #tpu.memory_space<vmem>>, vector<1x8x256xf32>
    %539 = vector.shape_cast %538 : vector<1x8x256xf32> to vector<8x256xf32>
    %540 = arith.mulf %537, %539 : vector<8x256xf32>
    %c8_545 = arith.constant 8 : index
    %c0_546 = arith.constant 0 : index
    %541 = vector.load %arg6[%c8_545, %c0_546] : memref<72x256xf32, #tpu.memory_space<vmem>>, vector<8x256xf32>
    tpu.vector_store %arg6[%c8_545, %c0_546], %540 {strides = array<i32>} : memref<72x256xf32, #tpu.memory_space<vmem>>, vector<8x256xf32>,
    %c15_i32_547 = arith.constant 15 : i32
    %542 = tpu.dynamic_rotate %531 by %c15_i32_547 dim 1 : vector<8x256xf32>, i32 -> vector<8x256xf32>
    %c2_548 = arith.constant 2 : index
    %c0_549 = arith.constant 0 : index
    %c0_550 = arith.constant 0 : index
    %543 = vector.load %arg4[%c2_548, %c0_549, %c0_550] : memref<9x8x256xf32, #tpu.memory_space<vmem>>, vector<1x8x256xf32>
    %544 = vector.shape_cast %543 : vector<1x8x256xf32> to vector<8x256xf32>
    %545 = arith.mulf %542, %544 : vector<8x256xf32>
    %c16_551 = arith.constant 16 : index
    %c0_552 = arith.constant 0 : index
    %546 = vector.load %arg6[%c16_551, %c0_552] : memref<72x256xf32, #tpu.memory_space<vmem>>, vector<8x256xf32>
    tpu.vector_store %arg6[%c16_551, %c0_552], %545 {strides = array<i32>} : memref<72x256xf32, #tpu.memory_space<vmem>>, vector<8x256xf32>,
    %c1_i32_553 = arith.constant 1 : i32
    %547 = tpu.dynamic_rotate %531 by %c1_i32_553 dim 1 : vector<8x256xf32>, i32 -> vector<8x256xf32>
    %c3_554 = arith.constant 3 : index
    %c0_555 = arith.constant 0 : index
    %c0_556 = arith.constant 0 : index
    %548 = vector.load %arg4[%c3_554, %c0_555, %c0_556] : memref<9x8x256xf32, #tpu.memory_space<vmem>>, vector<1x8x256xf32>
    %549 = vector.shape_cast %548 : vector<1x8x256xf32> to vector<8x256xf32>
    %550 = arith.mulf %547, %549 : vector<8x256xf32>
    %c24_557 = arith.constant 24 : index
    %c0_558 = arith.constant 0 : index
    %551 = vector.load %arg6[%c24_557, %c0_558] : memref<72x256xf32, #tpu.memory_space<vmem>>, vector<8x256xf32>
    tpu.vector_store %arg6[%c24_557, %c0_558], %550 {strides = array<i32>} : memref<72x256xf32, #tpu.memory_space<vmem>>, vector<8x256xf32>,
    %c32_559 = arith.constant 32 : index
    %c0_560 = arith.constant 0 : index
    %552 = vector.load %arg6[%c32_559, %c0_560] : memref<72x256xf32, #tpu.memory_space<vmem>>, vector<8x256xf32>
    tpu.vector_store %arg6[%c32_559, %c0_560], %531 {strides = array<i32>} : memref<72x256xf32, #tpu.memory_space<vmem>>, vector<8x256xf32>,
    %c255_i32_561 = arith.constant 255 : i32
    %553 = tpu.dynamic_rotate %531 by %c255_i32_561 dim 1 : vector<8x256xf32>, i32 -> vector<8x256xf32>
    %c5_562 = arith.constant 5 : index
    %c0_563 = arith.constant 0 : index
    %c0_564 = arith.constant 0 : index
    %554 = vector.load %arg4[%c5_562, %c0_563, %c0_564] : memref<9x8x256xf32, #tpu.memory_space<vmem>>, vector<1x8x256xf32>
    %555 = vector.shape_cast %554 : vector<1x8x256xf32> to vector<8x256xf32>
    %556 = arith.mulf %553, %555 : vector<8x256xf32>
    %c40_565 = arith.constant 40 : index
    %c0_566 = arith.constant 0 : index
    %557 = vector.load %arg6[%c40_565, %c0_566] : memref<72x256xf32, #tpu.memory_space<vmem>>, vector<8x256xf32>
    tpu.vector_store %arg6[%c40_565, %c0_566], %556 {strides = array<i32>} : memref<72x256xf32, #tpu.memory_space<vmem>>, vector<8x256xf32>,
    %c241_i32_567 = arith.constant 241 : i32
    %558 = tpu.dynamic_rotate %531 by %c241_i32_567 dim 1 : vector<8x256xf32>, i32 -> vector<8x256xf32>
    %c6_568 = arith.constant 6 : index
    %c0_569 = arith.constant 0 : index
    %c0_570 = arith.constant 0 : index
    %559 = vector.load %arg4[%c6_568, %c0_569, %c0_570] : memref<9x8x256xf32, #tpu.memory_space<vmem>>, vector<1x8x256xf32>
    %560 = vector.shape_cast %559 : vector<1x8x256xf32> to vector<8x256xf32>
    %561 = arith.mulf %558, %560 : vector<8x256xf32>
    %c48_571 = arith.constant 48 : index
    %c0_572 = arith.constant 0 : index
    %562 = vector.load %arg6[%c48_571, %c0_572] : memref<72x256xf32, #tpu.memory_space<vmem>>, vector<8x256xf32>
    tpu.vector_store %arg6[%c48_571, %c0_572], %561 {strides = array<i32>} : memref<72x256xf32, #tpu.memory_space<vmem>>, vector<8x256xf32>,
    %c240_i32_573 = arith.constant 240 : i32
    %563 = tpu.dynamic_rotate %531 by %c240_i32_573 dim 1 : vector<8x256xf32>, i32 -> vector<8x256xf32>
    %c7_574 = arith.constant 7 : index
    %c0_575 = arith.constant 0 : index
    %c0_576 = arith.constant 0 : index
    %564 = vector.load %arg4[%c7_574, %c0_575, %c0_576] : memref<9x8x256xf32, #tpu.memory_space<vmem>>, vector<1x8x256xf32>
    %565 = vector.shape_cast %564 : vector<1x8x256xf32> to vector<8x256xf32>
    %566 = arith.mulf %563, %565 : vector<8x256xf32>
    %c56_577 = arith.constant 56 : index
    %c0_578 = arith.constant 0 : index
    %567 = vector.load %arg6[%c56_577, %c0_578] : memref<72x256xf32, #tpu.memory_space<vmem>>, vector<8x256xf32>
    tpu.vector_store %arg6[%c56_577, %c0_578], %566 {strides = array<i32>} : memref<72x256xf32, #tpu.memory_space<vmem>>, vector<8x256xf32>,
    %c239_i32_579 = arith.constant 239 : i32
    %568 = tpu.dynamic_rotate %531 by %c239_i32_579 dim 1 : vector<8x256xf32>, i32 -> vector<8x256xf32>
    %c8_580 = arith.constant 8 : index
    %c0_581 = arith.constant 0 : index
    %c0_582 = arith.constant 0 : index
    %569 = vector.load %arg4[%c8_580, %c0_581, %c0_582] : memref<9x8x256xf32, #tpu.memory_space<vmem>>, vector<1x8x256xf32>
    %570 = vector.shape_cast %569 : vector<1x8x256xf32> to vector<8x256xf32>
    %571 = arith.mulf %568, %570 : vector<8x256xf32>
    %c64_583 = arith.constant 64 : index
    %c0_584 = arith.constant 0 : index
    %572 = vector.load %arg6[%c64_583, %c0_584] : memref<72x256xf32, #tpu.memory_space<vmem>>, vector<8x256xf32>
    tpu.vector_store %arg6[%c64_583, %c0_584], %571 {strides = array<i32>} : memref<72x256xf32, #tpu.memory_space<vmem>>, vector<8x256xf32>,
    %c9 = arith.constant 9 : index
    %c0_585 = arith.constant 0 : index
    %c0_586 = arith.constant 0 : index
    %573 = vector.load %arg2[%c9, %c0_585, %c0_586] : memref<10x8x72xf32, #tpu.memory_space<vmem>>, vector<1x8x72xf32>
    %574 = vector.shape_cast %573 : vector<1x8x72xf32> to vector<8x72xf32>
    %c0_587 = arith.constant 0 : index
    %c0_588 = arith.constant 0 : index
    %575 = vector.load %arg6[%c0_587, %c0_588] : memref<72x256xf32, #tpu.memory_space<vmem>>, vector<72x256xf32>
    %cst_589 = arith.constant dense<0.000000e+00> : vector<8x256xf32>
    %576 = tpu.matmul %574, %575, %cst_589 {dimension_numbers = #tpu.dot_dimension_numbers<[1], [0], [0], [1], [0, 0, 1, 1], [], []>} : vector<8x72xf32>, vector<72x256xf32>, vector<8x256xf32> -> vector<8x256xf32>
    %c9_590 = arith.constant 9 : index
    %c0_591 = arith.constant 0 : index
    %c0_592 = arith.constant 0 : index
    %577 = vector.load %arg3[%c9_590, %c0_591, %c0_592] : memref<10x8x1xf32, #tpu.memory_space<vmem>>, vector<1x8x1xf32>
    %578 = vector.shape_cast %577 : vector<1x8x1xf32> to vector<8x1xf32>
    %579 = vector.broadcast %578 : vector<8x1xf32> to vector<8x256xf32>
    %580 = arith.addf %576, %579 : vector<8x256xf32>
    %581 = math.absf %580 : vector<8x256xf32>
    %582 = vector.shape_cast %581 : vector<8x256xf32> to vector<1x8x256xf32>
    %cst_593 = arith.constant dense<0xFF800000> : vector<1xf32>
    %583 = vector.multi_reduction <maximumf>, %582, %cst_593 [1, 2] : vector<1x8x256xf32> to vector<1xf32>
    %584 = vector.shape_cast %583 : vector<1xf32> to vector<1x1x1xf32>
    %585 = vector.extract %584[0, 0, 0] : f32 from vector<1x1x1xf32>
    %cst_594 = arith.constant 1.000000e+00 : f32
    %586 = arith.addf %585, %cst_594 : f32
    %cst_595 = arith.constant 3.000000e+00 : f32
    %587 = arith.divf %cst_595, %586 : f32
    %588 = vector.broadcast %587 : f32 to vector<8x256xf32>
    %589 = arith.mulf %580, %588 : vector<8x256xf32>
    %590 = math.tanh %589 : vector<8x256xf32>
    %cst_596 = arith.constant 5.000000e-01 : f32
    %591 = vector.broadcast %cst_596 : f32 to vector<8x256xf32>
    %cst_597 = arith.constant 5.000000e-01 : f32
    %592 = vector.broadcast %cst_597 : f32 to vector<8x256xf32>
    %593 = arith.subf %590, %592 : vector<8x256xf32>
    %594 = math.absf %593 : vector<8x256xf32>
    %cst_598 = arith.constant 3.000000e-01 : f32
    %595 = vector.broadcast %cst_598 : f32 to vector<8x256xf32>
    %596 = arith.cmpf ole, %594, %595 : vector<8x256xf32>
    %cst_599 = arith.constant 1.000000e+00 : f32
    %597 = vector.broadcast %cst_599 : f32 to vector<8x256xf32>
    %598 = arith.select %596, %597, %591 : vector<8x256xi1>, vector<8x256xf32>
    %cst_600 = arith.constant 5.000000e-01 : f32
    %599 = vector.broadcast %cst_600 : f32 to vector<8x256xf32>
    %600 = arith.addf %590, %599 : vector<8x256xf32>
    %601 = math.absf %600 : vector<8x256xf32>
    %cst_601 = arith.constant 3.000000e-01 : f32
    %602 = vector.broadcast %cst_601 : f32 to vector<8x256xf32>
    %603 = arith.cmpf ole, %601, %602 : vector<8x256xf32>
    %cst_602 = arith.constant 0.000000e+00 : f32
    %604 = vector.broadcast %cst_602 : f32 to vector<8x256xf32>
    %605 = arith.select %603, %604, %598 : vector<8x256xi1>, vector<8x256xf32>
    %c0_603 = arith.constant 0 : index
    %c0_604 = arith.constant 0 : index
    %606 = vector.load %arg5[%c0_603, %c0_604] : memref<8x256xf32, #tpu.memory_space<vmem>>, vector<8x256xf32>
    tpu.vector_store %arg5[%c0_603, %c0_604], %605 {strides = array<i32>} : memref<8x256xf32, #tpu.memory_space<vmem>>, vector<8x256xf32>,
    return
  }
  func.func @transform_0(%arg0: i32) -> (i32, i32) {
    %c0_i32 = arith.constant 0 : i32
    %c0_i32_0 = arith.constant 0 : i32
    %c0_i32_1 = arith.constant 0 : i32
    return %c0_i32, %c0_i32_0 : i32, i32
  }
  func.func @transform_1(%arg0: i32) -> (i32, i32, i32) {
    %c0_i32 = arith.constant 0 : i32
    %c0_i32_0 = arith.constant 0 : i32
    %c0_i32_1 = arith.constant 0 : i32
    %c0_i32_2 = arith.constant 0 : i32
    return %c0_i32, %c0_i32_0, %c0_i32_1 : i32, i32, i32
  }
  func.func @transform_2(%arg0: i32) -> (i32, i32, i32) {
    %c0_i32 = arith.constant 0 : i32
    %c0_i32_0 = arith.constant 0 : i32
    %c0_i32_1 = arith.constant 0 : i32
    %c0_i32_2 = arith.constant 0 : i32
    return %c0_i32, %c0_i32_0, %c0_i32_1 : i32, i32, i32
  }
  func.func @transform_3(%arg0: i32) -> (i32, i32, i32) {
    %c0_i32 = arith.constant 0 : i32
    %c0_i32_0 = arith.constant 0 : i32
    %c0_i32_1 = arith.constant 0 : i32
    %c0_i32_2 = arith.constant 0 : i32
    return %c0_i32, %c0_i32_0, %c0_i32_1 : i32, i32, i32
  }
  func.func @transform_4(%arg0: i32) -> (i32, i32) {
    %c0_i32 = arith.constant 0 : i32
    %c0_i32_0 = arith.constant 0 : i32
    %c0_i32_1 = arith.constant 0 : i32
    return %c0_i32, %c0_i32_0 : i32, i32
  }
}

</mosaic_0001>

<llo_original>
// kernel: bstc_forward.1
$region0: #{bstc_forward.1}
  #allocation0 [shape = 'u32[]', space=smem, size = 0x4, offset = 0x4, fixed_abs, tag = 'smem constant byte address 0x4 - core index']
  #allocation1 [shape = 'u32[72,128]{1,0:T(1,128)}', space=vmem, size = 0x9000, scoped, tag = 'internal scratch']
  #allocation2 [shape = 'f32[72,256]{1,0:T(8,128)}', space=vmem, size = 0x12000, scoped, tag = 'scratch operand']
  %s0 = inlined_call_operand.vmem [shape: f32[8,256], index: 0, kind: input, shape index: {}]
  %s1 = inlined_call_operand.vmem [shape: f32[10,8,72], index: 1, kind: input, shape index: {}]
  %s2 = inlined_call_operand.vmem [shape: f32[10,8,1], index: 2, kind: input, shape index: {}]
  %s3 = inlined_call_operand.vmem [shape: f32[9,8,256], index: 3, kind: input, shape index: {}]
  %s4 = inlined_call_operand.vmem [shape: f32[8,256], index: 4, kind: output, shape index: {}]
  %s5 = sld [smem:[#allocation0]]
  $region26: #{bstc_forward.1} parent=0
    _
  %s7 = ssub.s32 1, %s5
  %s8 = scalar_select 0, %s7, %s5
  // Predicated region
  $region2: #{bstc_forward.1} parent=0 // pred_check
    _
  $region3: #{bstc_forward.1} parent=0 // pred_check_branch
    %10 = sbr.rel (0) target = $region5
  $region4: #{bstc_forward.1} parent=0 // pred_region
    _
  $region5: #{bstc_forward.1} parent=0 // pred_fallthru
    _
  // Predicated region
  $region6: #{bstc_forward.1} parent=0 // pred_check
    _
  $region7: #{bstc_forward.1} parent=0 // pred_check_branch
    %12 = sbr.rel (0) target = $region9
  $region8: #{bstc_forward.1} parent=0 // pred_region
    _
  $region9: #{bstc_forward.1} parent=0 // pred_fallthru
    _
  // Predicated region
  $region10: #{bstc_forward.1} parent=0 // pred_check
    _
  $region11: #{bstc_forward.1} parent=0 // pred_check_branch
    %14 = sbr.rel (0) target = $region13
  $region12: #{bstc_forward.1} parent=0 // pred_region
    _
  $region13: #{bstc_forward.1} parent=0 // pred_fallthru
    _
  // Predicated region
  $region14: #{bstc_forward.1} parent=0 // pred_check
    _
  $region15: #{bstc_forward.1} parent=0 // pred_check_branch
    %16 = sbr.rel (0) target = $region17
  $region16: #{bstc_forward.1} parent=0 // pred_region
    _
  $region17: #{bstc_forward.1} parent=0 // pred_fallthru
    _
  %v17 = vld [vmem:[%s0] sm:$0xff]
  %v18 = vld [vmem:[%s0 + $0x8] sm:$0xff]
  %19 = vrot.lane.b32.xlu0 %v17, 17
  %v20 = vpop.permute.xlu0 %19
  %21 = vrot.lane.b32.xlu0 %v18, 17
  %v22 = vpop.permute.xlu0 %21
  %v23 = vlaneseq
  %v24 = vand.u32 %v23, 127
  %vm25 = vcmp.lt.s32.totalorder %v24, 17
  %v26 = vsel %vm25, %v20, %v22
  %v27 = vsel %vm25, %v22, %v20
  %v28 = vld [vmem:[%s3] sm:$0xff]
  %v29 = vld [vmem:[%s3 + $0x8] sm:$0xff]
  %v30 = vmul.f32 %v27, %v28
  %v31 = vmul.f32 %v26, %v29
  %32 = vst [vmem:[#allocation2] sm:$0xff] %v30
  %33 = vst [vmem:[#allocation2 + $0x8] sm:$0xff] %v31
  %34 = vrot.lane.b32.xlu0 %v17, 16
  %v35 = vpop.permute.xlu0 %34
  %36 = vrot.lane.b32.xlu0 %v18, 16
  %v37 = vpop.permute.xlu0 %36
  %vm38 = vcmp.lt.s32.totalorder %v24, 16
  %v39 = vsel %vm38, %v35, %v37
  %v40 = vsel %vm38, %v37, %v35
  %s41 = scalar_lea.vmem %s3, 16
  %v42 = vld [vmem:[%s41] sm:$0xff]
  %v43 = vld [vmem:[%s41 + $0x8] sm:$0xff]
  %v44 = vmul.f32 %v40, %v42
  %v45 = vmul.f32 %v39, %v43
  %46 = vst [vmem:[#allocation2 + $0x10] sm:$0xff] %v44
  %47 = vst [vmem:[#allocation2 + $0x18] sm:$0xff] %v45
  %48 = vrot.lane.b32.xlu0 %v17, 15
  %v49 = vpop.permute.xlu0 %48
  %50 = vrot.lane.b32.xlu0 %v18, 15
  %v51 = vpop.permute.xlu0 %50
  %vm52 = vcmp.lt.s32.totalorder %v24, 15
  %v53 = vsel %vm52, %v49, %v51
  %v54 = vsel %vm52, %v51, %v49
  %s55 = scalar_lea.vmem %s3, 32
  %v56 = vld [vmem:[%s55] sm:$0xff]
  %v57 = vld [vmem:[%s55 + $0x8] sm:$0xff]
  %v58 = vmul.f32 %v54, %v56
  %v59 = vmul.f32 %v53, %v57
  %60 = vst [vmem:[#allocation2 + $0x20] sm:$0xff] %v58
  %61 = vst [vmem:[#allocation2 + $0x28] sm:$0xff] %v59
  %62 = vrot.lane.b32.xlu0 %v17, 1
  %v63 = vpop.permute.xlu0 %62
  %64 = vrot.lane.b32.xlu0 %v18, 1
  %v65 = vpop.permute.xlu0 %64
  %vm66 = vcmp.lt.s32.totalorder %v24, 1
  %v67 = vsel %vm66, %v63, %v65
  %v68 = vsel %vm66, %v65, %v63
  %s69 = scalar_lea.vmem %s3, 48
  %v70 = vld [vmem:[%s69] sm:$0xff]
  %v71 = vld [vmem:[%s69 + $0x8] sm:$0xff]
  %v72 = vmul.f32 %v68, %v70
  %v73 = vmul.f32 %v67, %v71
  %74 = vst [vmem:[#allocation2 + $0x30] sm:$0xff] %v72
  %75 = vst [vmem:[#allocation2 + $0x38] sm:$0xff] %v73
  %76 = vst [vmem:[#allocation2 + $0x40] sm:$0xff] %v17
  %77 = vst [vmem:[#allocation2 + $0x48] sm:$0xff] %v18
  %78 = vrot.lane.b32.xlu0 %v17, 127
  %v79 = vpop.permute.xlu0 %78
  %80 = vrot.lane.b32.xlu0 %v18, 127
  %v81 = vpop.permute.xlu0 %80
  %vm82 = vcmp.lt.s32.totalorder %v24, 127
  %v83 = vsel %vm82, %v79, %v81
  %v84 = vsel %vm82, %v81, %v79
  %s85 = scalar_lea.vmem %s3, 80
  %v86 = vld [vmem:[%s85] sm:$0xff]
  %v87 = vld [vmem:[%s85 + $0x8] sm:$0xff]
  %v88 = vmul.f32 %v83, %v86
  %v89 = vmul.f32 %v84, %v87
  %90 = vst [vmem:[#allocation2 + $0x50] sm:$0xff] %v88
  %91 = vst [vmem:[#allocation2 + $0x58] sm:$0xff] %v89
  %92 = vrot.lane.b32.xlu0 %v17, 113
  %v93 = vpop.permute.xlu0 %92
  %94 = vrot.lane.b32.xlu0 %v18, 113
  %v95 = vpop.permute.xlu0 %94
  %vm96 = vcmp.lt.s32.totalorder %v24, 113
  %v97 = vsel %vm96, %v93, %v95
  %v98 = vsel %vm96, %v95, %v93
  %s99 = scalar_lea.vmem %s3, 96
  %v100 = vld [vmem:[%s99] sm:$0xff]
  %v101 = vld [vmem:[%s99 + $0x8] sm:$0xff]
  %v102 = vmul.f32 %v97, %v100
  %v103 = vmul.f32 %v98, %v101
  %104 = vst [vmem:[#allocation2 + $0x60] sm:$0xff] %v102
  %105 = vst [vmem:[#allocation2 + $0x68] sm:$0xff] %v103
  %106 = vrot.lane.b32.xlu0 %v17, 112
  %v107 = vpop.permute.xlu0 %106
  %108 = vrot.lane.b32.xlu0 %v18, 112
  %v109 = vpop.permute.xlu0 %108
  %vm110 = vcmp.lt.s32.totalorder %v24, 112
  %v111 = vsel %vm110, %v107, %v109
  %v112 = vsel %vm110, %v109, %v107
  %s113 = scalar_lea.vmem %s3, 112
  %v114 = vld [vmem:[%s113] sm:$0xff]
  %v115 = vld [vmem:[%s113 + $0x8] sm:$0xff]
  %v116 = vmul.f32 %v111, %v114
  %v117 = vmul.f32 %v112, %v115
  %118 = vst [vmem:[#allocation2 + $0x70] sm:$0xff] %v116
  %119 = vst [vmem:[#allocation2 + $0x78] sm:$0xff] %v117
  %120 = vrot.lane.b32.xlu0 %v17, 111
  %v121 = vpop.permute.xlu0 %120
  %122 = vrot.lane.b32.xlu0 %v18, 111
  %v123 = vpop.permute.xlu0 %122
  %vm124 = vcmp.lt.s32.totalorder %v24, 111
  %v125 = vsel %vm124, %v121, %v123
  %v126 = vsel %vm124, %v123, %v121
  %s127 = scalar_lea.vmem %s3, 128
  %v128 = vld [vmem:[%s127] sm:$0xff]
  %v129 = vld [vmem:[%s127 + $0x8] sm:$0xff]
  %v130 = vmul.f32 %v125, %v128
  %v131 = vmul.f32 %v126, %v129
  %132 = vst [vmem:[#allocation2 + $0x80] sm:$0xff] %v130
  %133 = vst [vmem:[#allocation2 + $0x88] sm:$0xff] %v131
  %v134 = vld [vmem:[%s1] sm:$0xff]
  %v135 = vld [vmem:[#allocation2] sm:$0xff]
  %v136 = vld [vmem:[#allocation2 + $0x8] sm:$0xff]
  %v137 = vld [vmem:[#allocation2 + $0x10] sm:$0xff]
  %v138 = vld [vmem:[#allocation2 + $0x18] sm:$0xff]
  %v139 = vld [vmem:[#allocation2 + $0x20] sm:$0xff]
  %v140 = vld [vmem:[#allocation2 + $0x28] sm:$0xff]
  %v141 = vld [vmem:[#allocation2 + $0x30] sm:$0xff]
  %v142 = vld [vmem:[#allocation2 + $0x38] sm:$0xff]
  %v143 = vld [vmem:[#allocation2 + $0x40] sm:$0xff]
  %v144 = vld [vmem:[#allocation2 + $0x48] sm:$0xff]
  %v145 = vld [vmem:[#allocation2 + $0x50] sm:$0xff]
  %v146 = vld [vmem:[#allocation2 + $0x58] sm:$0xff]
  %v147 = vld [vmem:[#allocation2 + $0x60] sm:$0xff]
  %v148 = vld [vmem:[#allocation2 + $0x68] sm:$0xff]
  %v149 = vld [vmem:[#allocation2 + $0x70] sm:$0xff]
  %v150 = vld [vmem:[#allocation2 + $0x78] sm:$0xff]
  %v151 = vld [vmem:[#allocation2 + $0x80] sm:$0xff]
  %v152 = vld [vmem:[#allocation2 + $0x88] sm:$0xff]
  %v153 = vld [vmem:[%s2] sm:$0xff]
  %155 = vset.pattern.permute.xlu0 0
  %156 = vperm.xlu0 %155, %v153
  %v157 = vpop.permute.xlu0 %156
  %vm159 = vcmask 588800
  %v161 = vsel %vm159, %v134, 0
  %163 = vmatpush.msra.mxu0 0.0
  %164 = vmatpush.msra.mxu0 0.0
  %165 = vmatpush.msra.mxu0 0.0
  %166 = vmatpush.msra.mxu0 0.0
  %167 = vmatpush.msra.mxu0 0.0
  %168 = vmatpush.msra.mxu0 0.0
  %169 = vmatpush.msra.mxu0 0.0
  %170 = vmatpush.msra.mxu0 %v151
  %171 = vmatpush.msra.mxu0 %v149
  %172 = vmatpush.msra.mxu0 %v147
  %173 = vmatpush.msra.mxu0 %v145
  %174 = vmatpush.msra.mxu0 %v143
  %175 = vmatpush.msra.mxu0 %v141
  %176 = vmatpush.msra.mxu0 %v139
  %177 = vmatpush.msra.mxu0 %v137
  %178 = vmatpush.msra.mxu0 %v135
  %179 = vmatmul.f32.gmra.mxu0 %v161
  %v180 = vpop.f32.mrf.mxu0
  %v181 = vadd.f32 %v157, %v180
  %182 = vdwg.mxu0
  %183 = vmatpush.msra.mxu0 0.0
  %184 = vmatpush.msra.mxu0 0.0
  %185 = vmatpush.msra.mxu0 0.0
  %186 = vmatpush.msra.mxu0 0.0
  %187 = vmatpush.msra.mxu0 0.0
  %188 = vmatpush.msra.mxu0 0.0
  %189 = vmatpush.msra.mxu0 0.0
  %190 = vmatpush.msra.mxu0 %v152
  %191 = vmatpush.msra.mxu0 %v150
  %192 = vmatpush.msra.mxu0 %v148
  %193 = vmatpush.msra.mxu0 %v146
  %194 = vmatpush.msra.mxu0 %v144
  %195 = vmatpush.msra.mxu0 %v142
  %196 = vmatpush.msra.mxu0 %v140
  %197 = vmatpush.msra.mxu0 %v138
  %198 = vmatpush.msra.mxu0 %v136
  %199 = vmatmul.f32.gmra.mxu0 %v161
  %v200 = vpop.f32.mrf.mxu0
  %v201 = vadd.f32 %v157, %v200
  %202 = vdwg.mxu0
  %v203 = vand.u32 2147483647, %v181
  %v204 = vand.u32 2147483647, %v201
  %v205 = vmax.f32 %v203, %v204
  %206 = vmax.xlane.f32.xlu0 %v205
  %v207 = vpop.xlane.xlu0 %206
  %v208 = vrot.slane %v207, 4
  %v209 = vmax.f32 %v207, %v208
  %v210 = vrot.slane %v209, 2
  %v211 = vmax.f32 %v209, %v210
  %v212 = vrot.slane %v211, 1
  %v213 = vmax.f32 %v211, %v212
  %s214 = vtos %v213
  %s215 = sadd.f32 %s214, 1.0
  %v216 = vstv %s215
  %v217 = vrcp.pop %v216
  %v218 = vmul.f32 %v216, %v217
  %v219 = vsub.f32 1.0, %v218
  %v220 = vmul.f32 %v217, %v219
  %v221 = vadd.f32 %v217, %v220
  %vm222 = vweird.f32 %v216
  %vm223 = vweird.f32 %v217
  %vm224 = vmor %vm222, %vm223
  %v225 = vsel %vm224, %v217, %v221
  %v226 = vand.u32 2147483647, %v216
  %vm227 = vcmp.eq.f32.partialorder %v226, 8.507059e+37
  %v228 = vand.u32 %v216, 2147483648
  %v229 = vor.u32 1.1754944e-38, %v228
  %v230 = vsel %vm227, %v229, %v225
  %s231 = vtos %v230
  %s232 = smul.f32 3.0, %s231
  %v233 = vstv %s232
  %v234 = vmul.f32 %v181, %v233
  %v235 = vmul.f32 %v201, %v233
  %v236 = vtanh.pop %v234
  %v237 = vtanh.pop %v235
  %238 = vrot.lane.b32.xlu0 %v236, 17
  %v239 = vpop.permute.xlu0 %238
  %240 = vrot.lane.b32.xlu0 %v237, 17
  %v241 = vpop.permute.xlu0 %240
  %v242 = vsel %vm25, %v239, %v241
  %v243 = vsel %vm25, %v241, %v239
  %v244 = vld [vmem:[%s3] sm:$0xff]
  %v245 = vld [vmem:[%s3 + $0x8] sm:$0xff]
  %v246 = vmul.f32 %v243, %v244
  %v247 = vmul.f32 %v242, %v245
  %248 = vst [vmem:[#allocation2] sm:$0xff] %v246
  %249 = vst [vmem:[#allocation2 + $0x8] sm:$0xff] %v247
  %250 = vrot.lane.b32.xlu0 %v236, 16
  %v251 = vpop.permute.xlu0 %250
  %252 = vrot.lane.b32.xlu0 %v237, 16
  %v253 = vpop.permute.xlu0 %252
  %v254 = vsel %vm38, %v251, %v253
  %v255 = vsel %vm38, %v253, %v251
  %v256 = vld [vmem:[%s41] sm:$0xff]
  %v257 = vld [vmem:[%s41 + $0x8] sm:$0xff]
  %v258 = vmul.f32 %v255, %v256
  %v259 = vmul.f32 %v254, %v257
  %260 = vst [vmem:[#allocation2 + $0x10] sm:$0xff] %v258
  %261 = vst [vmem:[#allocation2 + $0x18] sm:$0xff] %v259
  %262 = vrot.lane.b32.xlu0 %v236, 15
  %v263 = vpop.permute.xlu0 %262
  %264 = vrot.lane.b32.xlu0 %v237, 15
  %v265 = vpop.permute.xlu0 %264
  %v266 = vsel %vm52, %v263, %v265
  %v267 = vsel %vm52, %v265, %v263
  %v268 = vld [vmem:[%s55] sm:$0xff]
  %v269 = vld [vmem:[%s55 + $0x8] sm:$0xff]
  %v270 = vmul.f32 %v267, %v268
  %v271 = vmul.f32 %v266, %v269
  %272 = vst [vmem:[#allocation2 + $0x20] sm:$0xff] %v270
  %273 = vst [vmem:[#allocation2 + $0x28] sm:$0xff] %v271
  %274 = vrot.lane.b32.xlu0 %v236, 1
  %v275 = vpop.permute.xlu0 %274
  %276 = vrot.lane.b32.xlu0 %v237, 1
  %v277 = vpop.permute.xlu0 %276
  %v278 = vsel %vm66, %v275, %v277
  %v279 = vsel %vm66, %v277, %v275
  %v280 = vld [vmem:[%s69] sm:$0xff]
  %v281 = vld [vmem:[%s69 + $0x8] sm:$0xff]
  %v282 = vmul.f32 %v279, %v280
  %v283 = vmul.f32 %v278, %v281
  %284 = vst [vmem:[#allocation2 + $0x30] sm:$0xff] %v282
  %285 = vst [vmem:[#allocation2 + $0x38] sm:$0xff] %v283
  %286 = vst [vmem:[#allocation2 + $0x40] sm:$0xff] %v236
  %287 = vst [vmem:[#allocation2 + $0x48] sm:$0xff] %v237
  %288 = vrot.lane.b32.xlu0 %v236, 127
  %v289 = vpop.permute.xlu0 %288
  %290 = vrot.lane.b32.xlu0 %v237, 127
  %v291 = vpop.permute.xlu0 %290
  %v292 = vsel %vm82, %v289, %v291
  %v293 = vsel %vm82, %v291, %v289
  %v294 = vld [vmem:[%s85] sm:$0xff]
  %v295 = vld [vmem:[%s85 + $0x8] sm:$0xff]
  %v296 = vmul.f32 %v292, %v294
  %v297 = vmul.f32 %v293, %v295
  %298 = vst [vmem:[#allocation2 + $0x50] sm:$0xff] %v296
  %299 = vst [vmem:[#allocation2 + $0x58] sm:$0xff] %v297
  %300 = vrot.lane.b32.xlu0 %v236, 113
  %v301 = vpop.permute.xlu0 %300
  %302 = vrot.lane.b32.xlu0 %v237, 113
  %v303 = vpop.permute.xlu0 %302
  %v304 = vsel %vm96, %v301, %v303
  %v305 = vsel %vm96, %v303, %v301
  %v306 = vld [vmem:[%s99] sm:$0xff]
  %v307 = vld [vmem:[%s99 + $0x8] sm:$0xff]
  %v308 = vmul.f32 %v304, %v306
  %v309 = vmul.f32 %v305, %v307
  %310 = vst [vmem:[#allocation2 + $0x60] sm:$0xff] %v308
  %311 = vst [vmem:[#allocation2 + $0x68] sm:$0xff] %v309
  %312 = vrot.lane.b32.xlu0 %v236, 112
  %v313 = vpop.permute.xlu0 %312
  %314 = vrot.lane.b32.xlu0 %v237, 112
  %v315 = vpop.permute.xlu0 %314
  %v316 = vsel %vm110, %v313, %v315
  %v317 = vsel %vm110, %v315, %v313
  %v318 = vld [vmem:[%s113] sm:$0xff]
  %v319 = vld [vmem:[%s113 + $0x8] sm:$0xff]
  %v320 = vmul.f32 %v316, %v318
  %v321 = vmul.f32 %v317, %v319
  %322 = vst [vmem:[#allocation2 + $0x70] sm:$0xff] %v320
  %323 = vst [vmem:[#allocation2 + $0x78] sm:$0xff] %v321
  %324 = vrot.lane.b32.xlu0 %v236, 111
  %v325 = vpop.permute.xlu0 %324
  %326 = vrot.lane.b32.xlu0 %v237, 111
  %v327 = vpop.permute.xlu0 %326
  %v328 = vsel %vm124, %v325, %v327
  %v329 = vsel %vm124, %v327, %v325
  %v330 = vld [vmem:[%s127] sm:$0xff]
  %v331 = vld [vmem:[%s127 + $0x8] sm:$0xff]
  %v332 = vmul.f32 %v328, %v330
  %v333 = vmul.f32 %v329, %v331
  %334 = vst [vmem:[#allocation2 + $0x80] sm:$0xff] %v332
  %335 = vst [vmem:[#allocation2 + $0x88] sm:$0xff] %v333
  %s336 = scalar_lea.vmem %s1, 8
  %v337 = vld [vmem:[%s336] sm:$0xff]
  %v338 = vld [vmem:[#allocation2] sm:$0xff]
  %v339 = vld [vmem:[#allocation2 + $0x8] sm:$0xff]
  %v340 = vld [vmem:[#allocation2 + $0x10] sm:$0xff]
  %v341 = vld [vmem:[#allocation2 + $0x18] sm:$0xff]
  %v342 = vld [vmem:[#allocation2 + $0x20] sm:$0xff]
  %v343 = vld [vmem:[#allocation2 + $0x28] sm:$0xff]
  %v344 = vld [vmem:[#allocation2 + $0x30] sm:$0xff]
  %v345 = vld [vmem:[#allocation2 + $0x38] sm:$0xff]
  %v346 = vld [vmem:[#allocation2 + $0x40] sm:$0xff]
  %v347 = vld [vmem:[#allocation2 + $0x48] sm:$0xff]
  %v348 = vld [vmem:[#allocation2 + $0x50] sm:$0xff]
  %v349 = vld [vmem:[#allocation2 + $0x58] sm:$0xff]
  %v350 = vld [vmem:[#allocation2 + $0x60] sm:$0xff]
  %v351 = vld [vmem:[#allocation2 + $0x68] sm:$0xff]
  %v352 = vld [vmem:[#allocation2 + $0x70] sm:$0xff]
  %v353 = vld [vmem:[#allocation2 + $0x78] sm:$0xff]
  %v354 = vld [vmem:[#allocation2 + $0x80] sm:$0xff]
  %v355 = vld [vmem:[#allocation2 + $0x88] sm:$0xff]
  %s356 = scalar_lea.vmem %s2, 8
  %v357 = vld [vmem:[%s356] sm:$0xff]
  %359 = vset.pattern.permute.xlu0 0
  %360 = vperm.xlu0 %359, %v357
  %v361 = vpop.permute.xlu0 %360
  %v364 = vsel %vm159, %v337, 0
  %366 = vmatpush.msra.mxu0 0.0
  %367 = vmatpush.msra.mxu0 0.0
  %368 = vmatpush.msra.mxu0 0.0
  %369 = vmatpush.msra.mxu0 0.0
  %370 = vmatpush.msra.mxu0 0.0
  %371 = vmatpush.msra.mxu0 0.0
  %372 = vmatpush.msra.mxu0 0.0
  %373 = vmatpush.msra.mxu0 %v354
  %374 = vmatpush.msra.mxu0 %v352
  %375 = vmatpush.msra.mxu0 %v350
  %376 = vmatpush.msra.mxu0 %v348
  %377 = vmatpush.msra.mxu0 %v346
  %378 = vmatpush.msra.mxu0 %v344
  %379 = vmatpush.msra.mxu0 %v342
  %380 = vmatpush.msra.mxu0 %v340
  %381 = vmatpush.msra.mxu0 %v338
  %382 = vmatmul.f32.gmra.mxu0 %v364
  %v383 = vpop.f32.mrf.mxu0
  %v384 = vadd.f32 %v361, %v383
  %385 = vdwg.mxu0
  %386 = vmatpush.msra.mxu0 0.0
  %387 = vmatpush.msra.mxu0 0.0
  %388 = vmatpush.msra.mxu0 0.0
  %389 = vmatpush.msra.mxu0 0.0
  %390 = vmatpush.msra.mxu0 0.0
  %391 = vmatpush.msra.mxu0 0.0
  %392 = vmatpush.msra.mxu0 0.0
  %393 = vmatpush.msra.mxu0 %v355
  %394 = vmatpush.msra.mxu0 %v353
  %395 = vmatpush.msra.mxu0 %v351
  %396 = vmatpush.msra.mxu0 %v349
  %397 = vmatpush.msra.mxu0 %v347
  %398 = vmatpush.msra.mxu0 %v345
  %399 = vmatpush.msra.mxu0 %v343
  %400 = vmatpush.msra.mxu0 %v341
  %401 = vmatpush.msra.mxu0 %v339
  %402 = vmatmul.f32.gmra.mxu0 %v364
  %v403 = vpop.f32.mrf.mxu0
  %v404 = vadd.f32 %v361, %v403
  %405 = vdwg.mxu0
  %v406 = vand.u32 2147483647, %v384
  %v407 = vand.u32 2147483647, %v404
  %v408 = vmax.f32 %v406, %v407
  %409 = vmax.xlane.f32.xlu0 %v408
  %v410 = vpop.xlane.xlu0 %409
  %v411 = vrot.slane %v410, 4
  %v412 = vmax.f32 %v410, %v411
  %v413 = vrot.slane %v412, 2
  %v414 = vmax.f32 %v412, %v413
  %v415 = vrot.slane %v414, 1
  %v416 = vmax.f32 %v414, %v415
  %s417 = vtos %v416
  %s418 = sadd.f32 %s417, 1.0
  %v419 = vstv %s418
  %v420 = vrcp.pop %v419
  %v421 = vmul.f32 %v419, %v420
  %v422 = vsub.f32 1.0, %v421
  %v423 = vmul.f32 %v420, %v422
  %v424 = vadd.f32 %v420, %v423
  %vm425 = vweird.f32 %v419
  %vm426 = vweird.f32 %v420
  %vm427 = vmor %vm425, %vm426
  %v428 = vsel %vm427, %v420, %v424
  %v429 = vand.u32 2147483647, %v419
  %vm430 = vcmp.eq.f32.partialorder %v429, 8.507059e+37
  %v431 = vand.u32 %v419, 2147483648
  %v432 = vor.u32 1.1754944e-38, %v431
  %v433 = vsel %vm430, %v432, %v428
  %s434 = vtos %v433
  %s435 = smul.f32 3.0, %s434
  %v436 = vstv %s435
  %v437 = vmul.f32 %v384, %v436
  %v438 = vmul.f32 %v404, %v436
  %v439 = vtanh.pop %v437
  %v440 = vtanh.pop %v438
  %441 = vrot.lane.b32.xlu0 %v439, 17
  %v442 = vpop.permute.xlu0 %441
  %443 = vrot.lane.b32.xlu0 %v440, 17
  %v444 = vpop.permute.xlu0 %443
  %v445 = vsel %vm25, %v442, %v444
  %v446 = vsel %vm25, %v444, %v442
  %v447 = vld [vmem:[%s3] sm:$0xff]
  %v448 = vld [vmem:[%s3 + $0x8] sm:$0xff]
  %v449 = vmul.f32 %v446, %v447
  %v450 = vmul.f32 %v445, %v448
  %451 = vst [vmem:[#allocation2] sm:$0xff] %v449
  %452 = vst [vmem:[#allocation2 + $0x8] sm:$0xff] %v450
  %453 = vrot.lane.b32.xlu0 %v439, 16
  %v454 = vpop.permute.xlu0 %453
  %455 = vrot.lane.b32.xlu0 %v440, 16
  %v456 = vpop.permute.xlu0 %455
  %v457 = vsel %vm38, %v454, %v456
  %v458 = vsel %vm38, %v456, %v454
  %v459 = vld [vmem:[%s41] sm:$0xff]
  %v460 = vld [vmem:[%s41 + $0x8] sm:$0xff]
  %v461 = vmul.f32 %v458, %v459
  %v462 = vmul.f32 %v457, %v460
  %463 = vst [vmem:[#allocation2 + $0x10] sm:$0xff] %v461
  %464 = vst [vmem:[#allocation2 + $0x18] sm:$0xff] %v462
  %465 = vrot.lane.b32.xlu0 %v439, 15
  %v466 = vpop.permute.xlu0 %465
  %467 = vrot.lane.b32.xlu0 %v440, 15
  %v468 = vpop.permute.xlu0 %467
  %v469 = vsel %vm52, %v466, %v468
  %v470 = vsel %vm52, %v468, %v466
  %v471 = vld [vmem:[%s55] sm:$0xff]
  %v472 = vld [vmem:[%s55 + $0x8] sm:$0xff]
  %v473 = vmul.f32 %v470, %v471
  %v474 = vmul.f32 %v469, %v472
  %475 = vst [vmem:[#allocation2 + $0x20] sm:$0xff] %v473
  %476 = vst [vmem:[#allocation2 + $0x28] sm:$0xff] %v474
  %477 = vrot.lane.b32.xlu0 %v439, 1
  %v478 = vpop.permute.xlu0 %477
  %479 = vrot.lane.b32.xlu0 %v440, 1
  %v480 = vpop.permute.xlu0 %479
  %v481 = vsel %vm66, %v478, %v480
  %v482 = vsel %vm66, %v480, %v478
  %v483 = vld [vmem:[%s69] sm:$0xff]
  %v484 = vld [vmem:[%s69 + $0x8] sm:$0xff]
  %v485 = vmul.f32 %v482, %v483
  %v486 = vmul.f32 %v481, %v484
  %487 = vst [vmem:[#allocation2 + $0x30] sm:$0xff] %v485
  %488 = vst [vmem:[#allocation2 + $0x38] sm:$0xff] %v486
  %489 = vst [vmem:[#allocation2 + $0x40] sm:$0xff] %v439
  %490 = vst [vmem:[#allocation2 + $0x48] sm:$0xff] %v440
  %491 = vrot.lane.b32.xlu0 %v439, 127
  %v492 = vpop.permute.xlu0 %491
  %493 = vrot.lane.b32.xlu0 %v440, 127
  %v494 = vpop.permute.xlu0 %493
  %v495 = vsel %vm82, %v492, %v494
  %v496 = vsel %vm82, %v494, %v492
  %v497 = vld [vmem:[%s85] sm:$0xff]
  %v498 = vld [vmem:[%s85 + $0x8] sm:$0xff]
  %v499 = vmul.f32 %v495, %v497
  %v500 = vmul.f32 %v496, %v498
  %501 = vst [vmem:[#allocation2 + $0x50] sm:$0xff] %v499
  %502 = vst [vmem:[#allocation2 + $0x58] sm:$0xff] %v500
  %503 = vrot.lane.b32.xlu0 %v439, 113
  %v504 = vpop.permute.xlu0 %503
  %505 = vrot.lane.b32.xlu0 %v440, 113
  %v506 = vpop.permute.xlu0 %505
  %v507 = vsel %vm96, %v504, %v506
  %v508 = vsel %vm96, %v506, %v504
  %v509 = vld [vmem:[%s99] sm:$0xff]
  %v510 = vld [vmem:[%s99 + $0x8] sm:$0xff]
  %v511 = vmul.f32 %v507, %v509
  %v512 = vmul.f32 %v508, %v510
  %513 = vst [vmem:[#allocation2 + $0x60] sm:$0xff] %v511
  %514 = vst [vmem:[#allocation2 + $0x68] sm:$0xff] %v512
  %515 = vrot.lane.b32.xlu0 %v439, 112
  %v516 = vpop.permute.xlu0 %515
  %517 = vrot.lane.b32.xlu0 %v440, 112
  %v518 = vpop.permute.xlu0 %517
  %v519 = vsel %vm110, %v516, %v518
  %v520 = vsel %vm110, %v518, %v516
  %v521 = vld [vmem:[%s113] sm:$0xff]
  %v522 = vld [vmem:[%s113 + $0x8] sm:$0xff]
  %v523 = vmul.f32 %v519, %v521
  %v524 = vmul.f32 %v520, %v522
  %525 = vst [vmem:[#allocation2 + $0x70] sm:$0xff] %v523
  %526 = vst [vmem:[#allocation2 + $0x78] sm:$0xff] %v524
  %527 = vrot.lane.b32.xlu0 %v439, 111
  %v528 = vpop.permute.xlu0 %527
  %529 = vrot.lane.b32.xlu0 %v440, 111
  %v530 = vpop.permute.xlu0 %529
  %v531 = vsel %vm124, %v528, %v530
  %v532 = vsel %vm124, %v530, %v528
  %v533 = vld [vmem:[%s127] sm:$0xff]
  %v534 = vld [vmem:[%s127 + $0x8] sm:$0xff]
  %v535 = vmul.f32 %v531, %v533
  %v536 = vmul.f32 %v532, %v534
  %537 = vst [vmem:[#allocation2 + $0x80] sm:$0xff] %v535
  %538 = vst [vmem:[#allocation2 + $0x88] sm:$0xff] %v536
  %s539 = scalar_lea.vmem %s1, 16
  %v540 = vld [vmem:[%s539] sm:$0xff]
  %v541 = vld [vmem:[#allocation2] sm:$0xff]
  %v542 = vld [vmem:[#allocation2 + $0x8] sm:$0xff]
  %v543 = vld [vmem:[#allocation2 + $0x10] sm:$0xff]
  %v544 = vld [vmem:[#allocation2 + $0x18] sm:$0xff]
  %v545 = vld [vmem:[#allocation2 + $0x20] sm:$0xff]
  %v546 = vld [vmem:[#allocation2 + $0x28] sm:$0xff]
  %v547 = vld [vmem:[#allocation2 + $0x30] sm:$0xff]
  %v548 = vld [vmem:[#allocation2 + $0x38] sm:$0xff]
  %v549 = vld [vmem:[#allocation2 + $0x40] sm:$0xff]
  %v550 = vld [vmem:[#allocation2 + $0x48] sm:$0xff]
  %v551 = vld [vmem:[#allocation2 + $0x50] sm:$0xff]
  %v552 = vld [vmem:[#allocation2 + $0x58] sm:$0xff]
  %v553 = vld [vmem:[#allocation2 + $0x60] sm:$0xff]
  %v554 = vld [vmem:[#allocation2 + $0x68] sm:$0xff]
  %v555 = vld [vmem:[#allocation2 + $0x70] sm:$0xff]
  %v556 = vld [vmem:[#allocation2 + $0x78] sm:$0xff]
  %v557 = vld [vmem:[#allocation2 + $0x80] sm:$0xff]
  %v558 = vld [vmem:[#allocation2 + $0x88] sm:$0xff]
  %s559 = scalar_lea.vmem %s2, 16
  %v560 = vld [vmem:[%s559] sm:$0xff]
  %562 = vset.pattern.permute.xlu0 0
  %563 = vperm.xlu0 %562, %v560
  %v564 = vpop.permute.xlu0 %563
  %v567 = vsel %vm159, %v540, 0
  %569 = vmatpush.msra.mxu0 0.0
  %570 = vmatpush.msra.mxu0 0.0
  %571 = vmatpush.msra.mxu0 0.0
  %572 = vmatpush.msra.mxu0 0.0
  %573 = vmatpush.msra.mxu0 0.0
  %574 = vmatpush.msra.mxu0 0.0
  %575 = vmatpush.msra.mxu0 0.0
  %576 = vmatpush.msra.mxu0 %v557
  %577 = vmatpush.msra.mxu0 %v555
  %578 = vmatpush.msra.mxu0 %v553
  %579 = vmatpush.msra.mxu0 %v551
  %580 = vmatpush.msra.mxu0 %v549
  %581 = vmatpush.msra.mxu0 %v547
  %582 = vmatpush.msra.mxu0 %v545
  %583 = vmatpush.msra.mxu0 %v543
  %584 = vmatpush.msra.mxu0 %v541
  %585 = vmatmul.f32.gmra.mxu0 %v567
  %v586 = vpop.f32.mrf.mxu0
  %v587 = vadd.f32 %v564, %v586
  %588 = vdwg.mxu0
  %589 = vmatpush.msra.mxu0 0.0
  %590 = vmatpush.msra.mxu0 0.0
  %591 = vmatpush.msra.mxu0 0.0
  %592 = vmatpush.msra.mxu0 0.0
  %593 = vmatpush.msra.mxu0 0.0
  %594 = vmatpush.msra.mxu0 0.0
  %595 = vmatpush.msra.mxu0 0.0
  %596 = vmatpush.msra.mxu0 %v558
  %597 = vmatpush.msra.mxu0 %v556
  %598 = vmatpush.msra.mxu0 %v554
  %599 = vmatpush.msra.mxu0 %v552
  %600 = vmatpush.msra.mxu0 %v550
  %601 = vmatpush.msra.mxu0 %v548
  %602 = vmatpush.msra.mxu0 %v546
  %603 = vmatpush.msra.mxu0 %v544
  %604 = vmatpush.msra.mxu0 %v542
  %605 = vmatmul.f32.gmra.mxu0 %v567
  %v606 = vpop.f32.mrf.mxu0
  %v607 = vadd.f32 %v564, %v606
  %608 = vdwg.mxu0
  %v609 = vand.u32 2147483647, %v587
  %v610 = vand.u32 2147483647, %v607
  %v611 = vmax.f32 %v609, %v610
  %612 = vmax.xlane.f32.xlu0 %v611
  %v613 = vpop.xlane.xlu0 %612
  %v614 = vrot.slane %v613, 4
  %v615 = vmax.f32 %v613, %v614
  %v616 = vrot.slane %v615, 2
  %v617 = vmax.f32 %v615, %v616
  %v618 = vrot.slane %v617, 1
  %v619 = vmax.f32 %v617, %v618
  %s620 = vtos %v619
  %s621 = sadd.f32 %s620, 1.0
  %v622 = vstv %s621
  %v623 = vrcp.pop %v622
  %v624 = vmul.f32 %v622, %v623
  %v625 = vsub.f32 1.0, %v624
  %v626 = vmul.f32 %v623, %v625
  %v627 = vadd.f32 %v623, %v626
  %vm628 = vweird.f32 %v622
  %vm629 = vweird.f32 %v623
  %vm630 = vmor %vm628, %vm629
  %v631 = vsel %vm630, %v623, %v627
  %v632 = vand.u32 2147483647, %v622
  %vm633 = vcmp.eq.f32.partialorder %v632, 8.507059e+37
  %v634 = vand.u32 %v622, 2147483648
  %v635 = vor.u32 1.1754944e-38, %v634
  %v636 = vsel %vm633, %v635, %v631
  %s637 = vtos %v636
  %s638 = smul.f32 3.0, %s637
  %v639 = vstv %s638
  %v640 = vmul.f32 %v587, %v639
  %v641 = vmul.f32 %v607, %v639
  %v642 = vtanh.pop %v640
  %v643 = vtanh.pop %v641
  %644 = vrot.lane.b32.xlu0 %v642, 17
  %v645 = vpop.permute.xlu0 %644
  %646 = vrot.lane.b32.xlu0 %v643, 17
  %v647 = vpop.permute.xlu0 %646
  %v648 = vsel %vm25, %v645, %v647
  %v649 = vsel %vm25, %v647, %v645
  %v650 = vld [vmem:[%s3] sm:$0xff]
  %v651 = vld [vmem:[%s3 + $0x8] sm:$0xff]
  %v652 = vmul.f32 %v649, %v650
  %v653 = vmul.f32 %v648, %v651
  %654 = vst [vmem:[#allocation2] sm:$0xff] %v652
  %655 = vst [vmem:[#allocation2 + $0x8] sm:$0xff] %v653
  %656 = vrot.lane.b32.xlu0 %v642, 16
  %v657 = vpop.permute.xlu0 %656
  %658 = vrot.lane.b32.xlu0 %v643, 16
  %v659 = vpop.permute.xlu0 %658
  %v660 = vsel %vm38, %v657, %v659
  %v661 = vsel %vm38, %v659, %v657
  %v662 = vld [vmem:[%s41] sm:$0xff]
  %v663 = vld [vmem:[%s41 + $0x8] sm:$0xff]
  %v664 = vmul.f32 %v661, %v662
  %v665 = vmul.f32 %v660, %v663
  %666 = vst [vmem:[#allocation2 + $0x10] sm:$0xff] %v664
  %667 = vst [vmem:[#allocation2 + $0x18] sm:$0xff] %v665
  %668 = vrot.lane.b32.xlu0 %v642, 15
  %v669 = vpop.permute.xlu0 %668
  %670 = vrot.lane.b32.xlu0 %v643, 15
  %v671 = vpop.permute.xlu0 %670
  %v672 = vsel %vm52, %v669, %v671
  %v673 = vsel %vm52, %v671, %v669
  %v674 = vld [vmem:[%s55] sm:$0xff]
  %v675 = vld [vmem:[%s55 + $0x8] sm:$0xff]
  %v676 = vmul.f32 %v673, %v674
  %v677 = vmul.f32 %v672, %v675
  %678 = vst [vmem:[#allocation2 + $0x20] sm:$0xff] %v676
  %679 = vst [vmem:[#allocation2 + $0x28] sm:$0xff] %v677
  %680 = vrot.lane.b32.xlu0 %v642, 1
  %v681 = vpop.permute.xlu0 %680
  %682 = vrot.lane.b32.xlu0 %v643, 1
  %v683 = vpop.permute.xlu0 %682
  %v684 = vsel %vm66, %v681, %v683
  %v685 = vsel %vm66, %v683, %v681
  %v686 = vld [vmem:[%s69] sm:$0xff]
  %v687 = vld [vmem:[%s69 + $0x8] sm:$0xff]
  %v688 = vmul.f32 %v685, %v686
  %v689 = vmul.f32 %v684, %v687
  %690 = vst [vmem:[#allocation2 + $0x30] sm:$0xff] %v688
  %691 = vst [vmem:[#allocation2 + $0x38] sm:$0xff] %v689
  %692 = vst [vmem:[#allocation2 + $0x40] sm:$0xff] %v642
  %693 = vst [vmem:[#allocation2 + $0x48] sm:$0xff] %v643
  %694 = vrot.lane.b32.xlu0 %v642, 127
  %v695 = vpop.permute.xlu0 %694
  %696 = vrot.lane.b32.xlu0 %v643, 127
  %v697 = vpop.permute.xlu0 %696
  %v698 = vsel %vm82, %v695, %v697
  %v699 = vsel %vm82, %v697, %v695
  %v700 = vld [vmem:[%s85] sm:$0xff]
  %v701 = vld [vmem:[%s85 + $0x8] sm:$0xff]
  %v702 = vmul.f32 %v698, %v700
  %v703 = vmul.f32 %v699, %v701
  %704 = vst [vmem:[#allocation2 + $0x50] sm:$0xff] %v702
  %705 = vst [vmem:[#allocation2 + $0x58] sm:$0xff] %v703
  %706 = vrot.lane.b32.xlu0 %v642, 113
  %v707 = vpop.permute.xlu0 %706
  %708 = vrot.lane.b32.xlu0 %v643, 113
  %v709 = vpop.permute.xlu0 %708
  %v710 = vsel %vm96, %v707, %v709
  %v711 = vsel %vm96, %v709, %v707
  %v712 = vld [vmem:[%s99] sm:$0xff]
  %v713 = vld [vmem:[%s99 + $0x8] sm:$0xff]
  %v714 = vmul.f32 %v710, %v712
  %v715 = vmul.f32 %v711, %v713
  %716 = vst [vmem:[#allocation2 + $0x60] sm:$0xff] %v714
  %717 = vst [vmem:[#allocation2 + $0x68] sm:$0xff] %v715
  %718 = vrot.lane.b32.xlu0 %v642, 112
  %v719 = vpop.permute.xlu0 %718
  %720 = vrot.lane.b32.xlu0 %v643, 112
  %v721 = vpop.permute.xlu0 %720
  %v722 = vsel %vm110, %v719, %v721
  %v723 = vsel %vm110, %v721, %v719
  %v724 = vld [vmem:[%s113] sm:$0xff]
  %v725 = vld [vmem:[%s113 + $0x8] sm:$0xff]
  %v726 = vmul.f32 %v722, %v724
  %v727 = vmul.f32 %v723, %v725
  %728 = vst [vmem:[#allocation2 + $0x70] sm:$0xff] %v726
  %729 = vst [vmem:[#allocation2 + $0x78] sm:$0xff] %v727
  %730 = vrot.lane.b32.xlu0 %v642, 111
  %v731 = vpop.permute.xlu0 %730
  %732 = vrot.lane.b32.xlu0 %v643, 111
  %v733 = vpop.permute.xlu0 %732
  %v734 = vsel %vm124, %v731, %v733
  %v735 = vsel %vm124, %v733, %v731
  %v736 = vld [vmem:[%s127] sm:$0xff]
  %v737 = vld [vmem:[%s127 + $0x8] sm:$0xff]
  %v738 = vmul.f32 %v734, %v736
  %v739 = vmul.f32 %v735, %v737
  %740 = vst [vmem:[#allocation2 + $0x80] sm:$0xff] %v738
  %741 = vst [vmem:[#allocation2 + $0x88] sm:$0xff] %v739
  %s742 = scalar_lea.vmem %s1, 24
  %v743 = vld [vmem:[%s742] sm:$0xff]
  %v744 = vld [vmem:[#allocation2] sm:$0xff]
  %v745 = vld [vmem:[#allocation2 + $0x8] sm:$0xff]
  %v746 = vld [vmem:[#allocation2 + $0x10] sm:$0xff]
  %v747 = vld [vmem:[#allocation2 + $0x18] sm:$0xff]
  %v748 = vld [vmem:[#allocation2 + $0x20] sm:$0xff]
  %v749 = vld [vmem:[#allocation2 + $0x28] sm:$0xff]
  %v750 = vld [vmem:[#allocation2 + $0x30] sm:$0xff]
  %v751 = vld [vmem:[#allocation2 + $0x38] sm:$0xff]
  %v752 = vld [vmem:[#allocation2 + $0x40] sm:$0xff]
  %v753 = vld [vmem:[#allocation2 + $0x48] sm:$0xff]
  %v754 = vld [vmem:[#allocation2 + $0x50] sm:$0xff]
  %v755 = vld [vmem:[#allocation2 + $0x58] sm:$0xff]
  %v756 = vld [vmem:[#allocation2 + $0x60] sm:$0xff]
  %v757 = vld [vmem:[#allocation2 + $0x68] sm:$0xff]
  %v758 = vld [vmem:[#allocation2 + $0x70] sm:$0xff]
  %v759 = vld [vmem:[#allocation2 + $0x78] sm:$0xff]
  %v760 = vld [vmem:[#allocation2 + $0x80] sm:$0xff]
  %v761 = vld [vmem:[#allocation2 + $0x88] sm:$0xff]
  %s762 = scalar_lea.vmem %s2, 24
  %v763 = vld [vmem:[%s762] sm:$0xff]
  %765 = vset.pattern.permute.xlu0 0
  %766 = vperm.xlu0 %765, %v763
  %v767 = vpop.permute.xlu0 %766
  %v770 = vsel %vm159, %v743, 0
  %772 = vmatpush.msra.mxu0 0.0
  %773 = vmatpush.msra.mxu0 0.0
  %774 = vmatpush.msra.mxu0 0.0
  %775 = vmatpush.msra.mxu0 0.0
  %776 = vmatpush.msra.mxu0 0.0
  %777 = vmatpush.msra.mxu0 0.0
  %778 = vmatpush.msra.mxu0 0.0
  %779 = vmatpush.msra.mxu0 %v760
  %780 = vmatpush.msra.mxu0 %v758
  %781 = vmatpush.msra.mxu0 %v756
  %782 = vmatpush.msra.mxu0 %v754
  %783 = vmatpush.msra.mxu0 %v752
  %784 = vmatpush.msra.mxu0 %v750
  %785 = vmatpush.msra.mxu0 %v748
  %786 = vmatpush.msra.mxu0 %v746
  %787 = vmatpush.msra.mxu0 %v744
  %788 = vmatmul.f32.gmra.mxu0 %v770
  %v789 = vpop.f32.mrf.mxu0
  %v790 = vadd.f32 %v767, %v789
  %791 = vdwg.mxu0
  %792 = vmatpush.msra.mxu0 0.0
  %793 = vmatpush.msra.mxu0 0.0
  %794 = vmatpush.msra.mxu0 0.0
  %795 = vmatpush.msra.mxu0 0.0
  %796 = vmatpush.msra.mxu0 0.0
  %797 = vmatpush.msra.mxu0 0.0
  %798 = vmatpush.msra.mxu0 0.0
  %799 = vmatpush.msra.mxu0 %v761
  %800 = vmatpush.msra.mxu0 %v759
  %801 = vmatpush.msra.mxu0 %v757
  %802 = vmatpush.msra.mxu0 %v755
  %803 = vmatpush.msra.mxu0 %v753
  %804 = vmatpush.msra.mxu0 %v751
  %805 = vmatpush.msra.mxu0 %v749
  %806 = vmatpush.msra.mxu0 %v747
  %807 = vmatpush.msra.mxu0 %v745
  %808 = vmatmul.f32.gmra.mxu0 %v770
  %v809 = vpop.f32.mrf.mxu0
  %v810 = vadd.f32 %v767, %v809
  %811 = vdwg.mxu0
  %v812 = vand.u32 2147483647, %v790
  %v813 = vand.u32 2147483647, %v810
  %v814 = vmax.f32 %v812, %v813
  %815 = vmax.xlane.f32.xlu0 %v814
  %v816 = vpop.xlane.xlu0 %815
  %v817 = vrot.slane %v816, 4
  %v818 = vmax.f32 %v816, %v817
  %v819 = vrot.slane %v818, 2
  %v820 = vmax.f32 %v818, %v819
  %v821 = vrot.slane %v820, 1
  %v822 = vmax.f32 %v820, %v821
  %s823 = vtos %v822
  %s824 = sadd.f32 %s823, 1.0
  %v825 = vstv %s824
  %v826 = vrcp.pop %v825
  %v827 = vmul.f32 %v825, %v826
  %v828 = vsub.f32 1.0, %v827
  %v829 = vmul.f32 %v826, %v828
  %v830 = vadd.f32 %v826, %v829
  %vm831 = vweird.f32 %v825
  %vm832 = vweird.f32 %v826
  %vm833 = vmor %vm831, %vm832
  %v834 = vsel %vm833, %v826, %v830
  %v835 = vand.u32 2147483647, %v825
  %vm836 = vcmp.eq.f32.partialorder %v835, 8.507059e+37
  %v837 = vand.u32 %v825, 2147483648
  %v838 = vor.u32 1.1754944e-38, %v837
  %v839 = vsel %vm836, %v838, %v834
  %s840 = vtos %v839
  %s841 = smul.f32 3.0, %s840
  %v842 = vstv %s841
  %v843 = vmul.f32 %v790, %v842
  %v844 = vmul.f32 %v810, %v842
  %v845 = vtanh.pop %v843
  %v846 = vtanh.pop %v844
  %847 = vrot.lane.b32.xlu0 %v845, 17
  %v848 = vpop.permute.xlu0 %847
  %849 = vrot.lane.b32.xlu0 %v846, 17
  %v850 = vpop.permute.xlu0 %849
  %v851 = vsel %vm25, %v848, %v850
  %v852 = vsel %vm25, %v850, %v848
  %v853 = vld [vmem:[%s3] sm:$0xff]
  %v854 = vld [vmem:[%s3 + $0x8] sm:$0xff]
  %v855 = vmul.f32 %v852, %v853
  %v856 = vmul.f32 %v851, %v854
  %857 = vst [vmem:[#allocation2] sm:$0xff] %v855
  %858 = vst [vmem:[#allocation2 + $0x8] sm:$0xff] %v856
  %859 = vrot.lane.b32.xlu0 %v845, 16
  %v860 = vpop.permute.xlu0 %859
  %861 = vrot.lane.b32.xlu0 %v846, 16
  %v862 = vpop.permute.xlu0 %861
  %v863 = vsel %vm38, %v860, %v862
  %v864 = vsel %vm38, %v862, %v860
  %v865 = vld [vmem:[%s41] sm:$0xff]
  %v866 = vld [vmem:[%s41 + $0x8] sm:$0xff]
  %v867 = vmul.f32 %v864, %v865
  %v868 = vmul.f32 %v863, %v866
  %869 = vst [vmem:[#allocation2 + $0x10] sm:$0xff] %v867
  %870 = vst [vmem:[#allocation2 + $0x18] sm:$0xff] %v868
  %871 = vrot.lane.b32.xlu0 %v845, 15
  %v872 = vpop.permute.xlu0 %871
  %873 = vrot.lane.b32.xlu0 %v846, 15
  %v874 = vpop.permute.xlu0 %873
  %v875 = vsel %vm52, %v872, %v874
  %v876 = vsel %vm52, %v874, %v872
  %v877 = vld [vmem:[%s55] sm:$0xff]
  %v878 = vld [vmem:[%s55 + $0x8] sm:$0xff]
  %v879 = vmul.f32 %v876, %v877
  %v880 = vmul.f32 %v875, %v878
  %881 = vst [vmem:[#allocation2 + $0x20] sm:$0xff] %v879
  %882 = vst [vmem:[#allocation2 + $0x28] sm:$0xff] %v880
  %883 = vrot.lane.b32.xlu0 %v845, 1
  %v884 = vpop.permute.xlu0 %883
  %885 = vrot.lane.b32.xlu0 %v846, 1
  %v886 = vpop.permute.xlu0 %885
  %v887 = vsel %vm66, %v884, %v886
  %v888 = vsel %vm66, %v886, %v884
  %v889 = vld [vmem:[%s69] sm:$0xff]
  %v890 = vld [vmem:[%s69 + $0x8] sm:$0xff]
  %v891 = vmul.f32 %v888, %v889
  %v892 = vmul.f32 %v887, %v890
  %893 = vst [vmem:[#allocation2 + $0x30] sm:$0xff] %v891
  %894 = vst [vmem:[#allocation2 + $0x38] sm:$0xff] %v892
  %895 = vst [vmem:[#allocation2 + $0x40] sm:$0xff] %v845
  %896 = vst [vmem:[#allocation2 + $0x48] sm:$0xff] %v846
  %897 = vrot.lane.b32.xlu0 %v845, 127
  %v898 = vpop.permute.xlu0 %897
  %899 = vrot.lane.b32.xlu0 %v846, 127
  %v900 = vpop.permute.xlu0 %899
  %v901 = vsel %vm82, %v898, %v900
  %v902 = vsel %vm82, %v900, %v898
  %v903 = vld [vmem:[%s85] sm:$0xff]
  %v904 = vld [vmem:[%s85 + $0x8] sm:$0xff]
  %v905 = vmul.f32 %v901, %v903
  %v906 = vmul.f32 %v902, %v904
  %907 = vst [vmem:[#allocation2 + $0x50] sm:$0xff] %v905
  %908 = vst [vmem:[#allocation2 + $0x58] sm:$0xff] %v906
  %909 = vrot.lane.b32.xlu0 %v845, 113
  %v910 = vpop.permute.xlu0 %909
  %911 = vrot.lane.b32.xlu0 %v846, 113
  %v912 = vpop.permute.xlu0 %911
  %v913 = vsel %vm96, %v910, %v912
  %v914 = vsel %vm96, %v912, %v910
  %v915 = vld [vmem:[%s99] sm:$0xff]
  %v916 = vld [vmem:[%s99 + $0x8] sm:$0xff]
  %v917 = vmul.f32 %v913, %v915
  %v918 = vmul.f32 %v914, %v916
  %919 = vst [vmem:[#allocation2 + $0x60] sm:$0xff] %v917
  %920 = vst [vmem:[#allocation2 + $0x68] sm:$0xff] %v918
  %921 = vrot.lane.b32.xlu0 %v845, 112
  %v922 = vpop.permute.xlu0 %921
  %923 = vrot.lane.b32.xlu0 %v846, 112
  %v924 = vpop.permute.xlu0 %923
  %v925 = vsel %vm110, %v922, %v924
  %v926 = vsel %vm110, %v924, %v922
  %v927 = vld [vmem:[%s113] sm:$0xff]
  %v928 = vld [vmem:[%s113 + $0x8] sm:$0xff]
  %v929 = vmul.f32 %v925, %v927
  %v930 = vmul.f32 %v926, %v928
  %931 = vst [vmem:[#allocation2 + $0x70] sm:$0xff] %v929
  %932 = vst [vmem:[#allocation2 + $0x78] sm:$0xff] %v930
  %933 = vrot.lane.b32.xlu0 %v845, 111
  %v934 = vpop.permute.xlu0 %933
  %935 = vrot.lane.b32.xlu0 %v846, 111
  %v936 = vpop.permute.xlu0 %935
  %v937 = vsel %vm124, %v934, %v936
  %v938 = vsel %vm124, %v936, %v934
  %v939 = vld [vmem:[%s127] sm:$0xff]
  %v940 = vld [vmem:[%s127 + $0x8] sm:$0xff]
  %v941 = vmul.f32 %v937, %v939
  %v942 = vmul.f32 %v938, %v940
  %943 = vst [vmem:[#allocation2 + $0x80] sm:$0xff] %v941
  %944 = vst [vmem:[#allocation2 + $0x88] sm:$0xff] %v942
  %s945 = scalar_lea.vmem %s1, 32
  %v946 = vld [vmem:[%s945] sm:$0xff]
  %v947 = vld [vmem:[#allocation2] sm:$0xff]
  %v948 = vld [vmem:[#allocation2 + $0x8] sm:$0xff]
  %v949 = vld [vmem:[#allocation2 + $0x10] sm:$0xff]
  %v950 = vld [vmem:[#allocation2 + $0x18] sm:$0xff]
  %v951 = vld [vmem:[#allocation2 + $0x20] sm:$0xff]
  %v952 = vld [vmem:[#allocation2 + $0x28] sm:$0xff]
  %v953 = vld [vmem:[#allocation2 + $0x30] sm:$0xff]
  %v954 = vld [vmem:[#allocation2 + $0x38] sm:$0xff]
  %v955 = vld [vmem:[#allocation2 + $0x40] sm:$0xff]
  %v956 = vld [vmem:[#allocation2 + $0x48] sm:$0xff]
  %v957 = vld [vmem:[#allocation2 + $0x50] sm:$0xff]
  %v958 = vld [vmem:[#allocation2 + $0x58] sm:$0xff]
  %v959 = vld [vmem:[#allocation2 + $0x60] sm:$0xff]
  %v960 = vld [vmem:[#allocation2 + $0x68] sm:$0xff]
  %v961 = vld [vmem:[#allocation2 + $0x70] sm:$0xff]
  %v962 = vld [vmem:[#allocation2 + $0x78] sm:$0xff]
  %v963 = vld [vmem:[#allocation2 + $0x80] sm:$0xff]
  %v964 = vld [vmem:[#allocation2 + $0x88] sm:$0xff]
  %s965 = scalar_lea.vmem %s2, 32
  %v966 = vld [vmem:[%s965] sm:$0xff]
  %968 = vset.pattern.permute.xlu0 0
  %969 = vperm.xlu0 %968, %v966
  %v970 = vpop.permute.xlu0 %969
  %v973 = vsel %vm159, %v946, 0
  %975 = vmatpush.msra.mxu0 0.0
  %976 = vmatpush.msra.mxu0 0.0
  %977 = vmatpush.msra.mxu0 0.0
  %978 = vmatpush.msra.mxu0 0.0
  %979 = vmatpush.msra.mxu0 0.0
  %980 = vmatpush.msra.mxu0 0.0
  %981 = vmatpush.msra.mxu0 0.0
  %982 = vmatpush.msra.mxu0 %v963
  %983 = vmatpush.msra.mxu0 %v961
  %984 = vmatpush.msra.mxu0 %v959
  %985 = vmatpush.msra.mxu0 %v957
  %986 = vmatpush.msra.mxu0 %v955
  %987 = vmatpush.msra.mxu0 %v953
  %988 = vmatpush.msra.mxu0 %v951
  %989 = vmatpush.msra.mxu0 %v949
  %990 = vmatpush.msra.mxu0 %v947
  %991 = vmatmul.f32.gmra.mxu0 %v973
  %v992 = vpop.f32.mrf.mxu0
  %v993 = vadd.f32 %v970, %v992
  %994 = vdwg.mxu0
  %995 = vmatpush.msra.mxu0 0.0
  %996 = vmatpush.msra.mxu0 0.0
  %997 = vmatpush.msra.mxu0 0.0
  %998 = vmatpush.msra.mxu0 0.0
  %999 = vmatpush.msra.mxu0 0.0
  %1000 = vmatpush.msra.mxu0 0.0
  %1001 = vmatpush.msra.mxu0 0.0
  %1002 = vmatpush.msra.mxu0 %v964
  %1003 = vmatpush.msra.mxu0 %v962
  %1004 = vmatpush.msra.mxu0 %v960
  %1005 = vmatpush.msra.mxu0 %v958
  %1006 = vmatpush.msra.mxu0 %v956
  %1007 = vmatpush.msra.mxu0 %v954
  %1008 = vmatpush.msra.mxu0 %v952
  %1009 = vmatpush.msra.mxu0 %v950
  %1010 = vmatpush.msra.mxu0 %v948
  %1011 = vmatmul.f32.gmra.mxu0 %v973
  %v1012 = vpop.f32.mrf.mxu0
  %v1013 = vadd.f32 %v970, %v1012
  %1014 = vdwg.mxu0
  %v1015 = vand.u32 2147483647, %v993
  %v1016 = vand.u32 2147483647, %v1013
  %v1017 = vmax.f32 %v1015, %v1016
  %1018 = vmax.xlane.f32.xlu0 %v1017
  %v1019 = vpop.xlane.xlu0 %1018
  %v1020 = vrot.slane %v1019, 4
  %v1021 = vmax.f32 %v1019, %v1020
  %v1022 = vrot.slane %v1021, 2
  %v1023 = vmax.f32 %v1021, %v1022
  %v1024 = vrot.slane %v1023, 1
  %v1025 = vmax.f32 %v1023, %v1024
  %s1026 = vtos %v1025
  %s1027 = sadd.f32 %s1026, 1.0
  %v1028 = vstv %s1027
  %v1029 = vrcp.pop %v1028
  %v1030 = vmul.f32 %v1028, %v1029
  %v1031 = vsub.f32 1.0, %v1030
  %v1032 = vmul.f32 %v1029, %v1031
  %v1033 = vadd.f32 %v1029, %v1032
  %vm1034 = vweird.f32 %v1028
  %vm1035 = vweird.f32 %v1029
  %vm1036 = vmor %vm1034, %vm1035
  %v1037 = vsel %vm1036, %v1029, %v1033
  %v1038 = vand.u32 2147483647, %v1028
  %vm1039 = vcmp.eq.f32.partialorder %v1038, 8.507059e+37
  %v1040 = vand.u32 %v1028, 2147483648
  %v1041 = vor.u32 1.1754944e-38, %v1040
  %v1042 = vsel %vm1039, %v1041, %v1037
  %s1043 = vtos %v1042
  %s1044 = smul.f32 3.0, %s1043
  %v1045 = vstv %s1044
  %v1046 = vmul.f32 %v993, %v1045
  %v1047 = vmul.f32 %v1013, %v1045
  %v1048 = vtanh.pop %v1046
  %v1049 = vtanh.pop %v1047
  %1050 = vrot.lane.b32.xlu0 %v1048, 17
  %v1051 = vpop.permute.xlu0 %1050
  %1052 = vrot.lane.b32.xlu0 %v1049, 17
  %v1053 = vpop.permute.xlu0 %1052
  %v1054 = vsel %vm25, %v1051, %v1053
  %v1055 = vsel %vm25, %v1053, %v1051
  %v1056 = vld [vmem:[%s3] sm:$0xff]
  %v1057 = vld [vmem:[%s3 + $0x8] sm:$0xff]
  %v1058 = vmul.f32 %v1055, %v1056
  %v1059 = vmul.f32 %v1054, %v1057
  %1060 = vst [vmem:[#allocation2] sm:$0xff] %v1058
  %1061 = vst [vmem:[#allocation2 + $0x8] sm:$0xff] %v1059
  %1062 = vrot.lane.b32.xlu0 %v1048, 16
  %v1063 = vpop.permute.xlu0 %1062
  %1064 = vrot.lane.b32.xlu0 %v1049, 16
  %v1065 = vpop.permute.xlu0 %1064
  %v1066 = vsel %vm38, %v1063, %v1065
  %v1067 = vsel %vm38, %v1065, %v1063
  %v1068 = vld [vmem:[%s41] sm:$0xff]
  %v1069 = vld [vmem:[%s41 + $0x8] sm:$0xff]
  %v1070 = vmul.f32 %v1067, %v1068
  %v1071 = vmul.f32 %v1066, %v1069
  %1072 = vst [vmem:[#allocation2 + $0x10] sm:$0xff] %v1070
  %1073 = vst [vmem:[#allocation2 + $0x18] sm:$0xff] %v1071
  %1074 = vrot.lane.b32.xlu0 %v1048, 15
  %v1075 = vpop.permute.xlu0 %1074
  %1076 = vrot.lane.b32.xlu0 %v1049, 15
  %v1077 = vpop.permute.xlu0 %1076
  %v1078 = vsel %vm52, %v1075, %v1077
  %v1079 = vsel %vm52, %v1077, %v1075
  %v1080 = vld [vmem:[%s55] sm:$0xff]
  %v1081 = vld [vmem:[%s55 + $0x8] sm:$0xff]
  %v1082 = vmul.f32 %v1079, %v1080
  %v1083 = vmul.f32 %v1078, %v1081
  %1084 = vst [vmem:[#allocation2 + $0x20] sm:$0xff] %v1082
  %1085 = vst [vmem:[#allocation2 + $0x28] sm:$0xff] %v1083
  %1086 = vrot.lane.b32.xlu0 %v1048, 1
  %v1087 = vpop.permute.xlu0 %1086
  %1088 = vrot.lane.b32.xlu0 %v1049, 1
  %v1089 = vpop.permute.xlu0 %1088
  %v1090 = vsel %vm66, %v1087, %v1089
  %v1091 = vsel %vm66, %v1089, %v1087
  %v1092 = vld [vmem:[%s69] sm:$0xff]
  %v1093 = vld [vmem:[%s69 + $0x8] sm:$0xff]
  %v1094 = vmul.f32 %v1091, %v1092
  %v1095 = vmul.f32 %v1090, %v1093
  %1096 = vst [vmem:[#allocation2 + $0x30] sm:$0xff] %v1094
  %1097 = vst [vmem:[#allocation2 + $0x38] sm:$0xff] %v1095
  %1098 = vst [vmem:[#allocation2 + $0x40] sm:$0xff] %v1048
  %1099 = vst [vmem:[#allocation2 + $0x48] sm:$0xff] %v1049
  %1100 = vrot.lane.b32.xlu0 %v1048, 127
  %v1101 = vpop.permute.xlu0 %1100
  %1102 = vrot.lane.b32.xlu0 %v1049, 127
  %v1103 = vpop.permute.xlu0 %1102
  %v1104 = vsel %vm82, %v1101, %v1103
  %v1105 = vsel %vm82, %v1103, %v1101
  %v1106 = vld [vmem:[%s85] sm:$0xff]
  %v1107 = vld [vmem:[%s85 + $0x8] sm:$0xff]
  %v1108 = vmul.f32 %v1104, %v1106
  %v1109 = vmul.f32 %v1105, %v1107
  %1110 = vst [vmem:[#allocation2 + $0x50] sm:$0xff] %v1108
  %1111 = vst [vmem:[#allocation2 + $0x58] sm:$0xff] %v1109
  %1112 = vrot.lane.b32.xlu0 %v1048, 113
  %v1113 = vpop.permute.xlu0 %1112
  %1114 = vrot.lane.b32.xlu0 %v1049, 113
  %v1115 = vpop.permute.xlu0 %1114
  %v1116 = vsel %vm96, %v1113, %v1115
  %v1117 = vsel %vm96, %v1115, %v1113
  %v1118 = vld [vmem:[%s99] sm:$0xff]
  %v1119 = vld [vmem:[%s99 + $0x8] sm:$0xff]
  %v1120 = vmul.f32 %v1116, %v1118
  %v1121 = vmul.f32 %v1117, %v1119
  %1122 = vst [vmem:[#allocation2 + $0x60] sm:$0xff] %v1120
  %1123 = vst [vmem:[#allocation2 + $0x68] sm:$0xff] %v1121
  %1124 = vrot.lane.b32.xlu0 %v1048, 112
  %v1125 = vpop.permute.xlu0 %1124
  %1126 = vrot.lane.b32.xlu0 %v1049, 112
  %v1127 = vpop.permute.xlu0 %1126
  %v1128 = vsel %vm110, %v1125, %v1127
  %v1129 = vsel %vm110, %v1127, %v1125
  %v1130 = vld [vmem:[%s113] sm:$0xff]
  %v1131 = vld [vmem:[%s113 + $0x8] sm:$0xff]
  %v1132 = vmul.f32 %v1128, %v1130
  %v1133 = vmul.f32 %v1129, %v1131
  %1134 = vst [vmem:[#allocation2 + $0x70] sm:$0xff] %v1132
  %1135 = vst [vmem:[#allocation2 + $0x78] sm:$0xff] %v1133
  %1136 = vrot.lane.b32.xlu0 %v1048, 111
  %v1137 = vpop.permute.xlu0 %1136
  %1138 = vrot.lane.b32.xlu0 %v1049, 111
  %v1139 = vpop.permute.xlu0 %1138
  %v1140 = vsel %vm124, %v1137, %v1139
  %v1141 = vsel %vm124, %v1139, %v1137
  %v1142 = vld [vmem:[%s127] sm:$0xff]
  %v1143 = vld [vmem:[%s127 + $0x8] sm:$0xff]
  %v1144 = vmul.f32 %v1140, %v1142
  %v1145 = vmul.f32 %v1141, %v1143
  %1146 = vst [vmem:[#allocation2 + $0x80] sm:$0xff] %v1144
  %1147 = vst [vmem:[#allocation2 + $0x88] sm:$0xff] %v1145
  %s1148 = scalar_lea.vmem %s1, 40
  %v1149 = vld [vmem:[%s1148] sm:$0xff]
  %v1150 = vld [vmem:[#allocation2] sm:$0xff]
  %v1151 = vld [vmem:[#allocation2 + $0x8] sm:$0xff]
  %v1152 = vld [vmem:[#allocation2 + $0x10] sm:$0xff]
  %v1153 = vld [vmem:[#allocation2 + $0x18] sm:$0xff]
  %v1154 = vld [vmem:[#allocation2 + $0x20] sm:$0xff]
  %v1155 = vld [vmem:[#allocation2 + $0x28] sm:$0xff]
  %v1156 = vld [vmem:[#allocation2 + $0x30] sm:$0xff]
  %v1157 = vld [vmem:[#allocation2 + $0x38] sm:$0xff]
  %v1158 = vld [vmem:[#allocation2 + $0x40] sm:$0xff]
  %v1159 = vld [vmem:[#allocation2 + $0x48] sm:$0xff]
  %v1160 = vld [vmem:[#allocation2 + $0x50] sm:$0xff]
  %v1161 = vld [vmem:[#allocation2 + $0x58] sm:$0xff]
  %v1162 = vld [vmem:[#allocation2 + $0x60] sm:$0xff]
  %v1163 = vld [vmem:[#allocation2 + $0x68] sm:$0xff]
  %v1164 = vld [vmem:[#allocation2 + $0x70] sm:$0xff]
  %v1165 = vld [vmem:[#allocation2 + $0x78] sm:$0xff]
  %v1166 = vld [vmem:[#allocation2 + $0x80] sm:$0xff]
  %v1167 = vld [vmem:[#allocation2 + $0x88] sm:$0xff]
  %s1168 = scalar_lea.vmem %s2, 40
  %v1169 = vld [vmem:[%s1168] sm:$0xff]
  %1171 = vset.pattern.permute.xlu0 0
  %1172 = vperm.xlu0 %1171, %v1169
  %v1173 = vpop.permute.xlu0 %1172
  %v1176 = vsel %vm159, %v1149, 0
  %1178 = vmatpush.msra.mxu0 0.0
  %1179 = vmatpush.msra.mxu0 0.0
  %1180 = vmatpush.msra.mxu0 0.0
  %1181 = vmatpush.msra.mxu0 0.0
  %1182 = vmatpush.msra.mxu0 0.0
  %1183 = vmatpush.msra.mxu0 0.0
  %1184 = vmatpush.msra.mxu0 0.0
  %1185 = vmatpush.msra.mxu0 %v1166
  %1186 = vmatpush.msra.mxu0 %v1164
  %1187 = vmatpush.msra.mxu0 %v1162
  %1188 = vmatpush.msra.mxu0 %v1160
  %1189 = vmatpush.msra.mxu0 %v1158
  %1190 = vmatpush.msra.mxu0 %v1156
  %1191 = vmatpush.msra.mxu0 %v1154
  %1192 = vmatpush.msra.mxu0 %v1152
  %1193 = vmatpush.msra.mxu0 %v1150
  %1194 = vmatmul.f32.gmra.mxu0 %v1176
  %v1195 = vpop.f32.mrf.mxu0
  %v1196 = vadd.f32 %v1173, %v1195
  %1197 = vdwg.mxu0
  %1198 = vmatpush.msra.mxu0 0.0
  %1199 = vmatpush.msra.mxu0 0.0
  %1200 = vmatpush.msra.mxu0 0.0
  %1201 = vmatpush.msra.mxu0 0.0
  %1202 = vmatpush.msra.mxu0 0.0
  %1203 = vmatpush.msra.mxu0 0.0
  %1204 = vmatpush.msra.mxu0 0.0
  %1205 = vmatpush.msra.mxu0 %v1167
  %1206 = vmatpush.msra.mxu0 %v1165
  %1207 = vmatpush.msra.mxu0 %v1163
  %1208 = vmatpush.msra.mxu0 %v1161
  %1209 = vmatpush.msra.mxu0 %v1159
  %1210 = vmatpush.msra.mxu0 %v1157
  %1211 = vmatpush.msra.mxu0 %v1155
  %1212 = vmatpush.msra.mxu0 %v1153
  %1213 = vmatpush.msra.mxu0 %v1151
  %1214 = vmatmul.f32.gmra.mxu0 %v1176
  %v1215 = vpop.f32.mrf.mxu0
  %v1216 = vadd.f32 %v1173, %v1215
  %1217 = vdwg.mxu0
  %v1218 = vand.u32 2147483647, %v1196
  %v1219 = vand.u32 2147483647, %v1216
  %v1220 = vmax.f32 %v1218, %v1219
  %1221 = vmax.xlane.f32.xlu0 %v1220
  %v1222 = vpop.xlane.xlu0 %1221
  %v1223 = vrot.slane %v1222, 4
  %v1224 = vmax.f32 %v1222, %v1223
  %v1225 = vrot.slane %v1224, 2
  %v1226 = vmax.f32 %v1224, %v1225
  %v1227 = vrot.slane %v1226, 1
  %v1228 = vmax.f32 %v1226, %v1227
  %s1229 = vtos %v1228
  %s1230 = sadd.f32 %s1229, 1.0
  %v1231 = vstv %s1230
  %v1232 = vrcp.pop %v1231
  %v1233 = vmul.f32 %v1231, %v1232
  %v1234 = vsub.f32 1.0, %v1233
  %v1235 = vmul.f32 %v1232, %v1234
  %v1236 = vadd.f32 %v1232, %v1235
  %vm1237 = vweird.f32 %v1231
  %vm1238 = vweird.f32 %v1232
  %vm1239 = vmor %vm1237, %vm1238
  %v1240 = vsel %vm1239, %v1232, %v1236
  %v1241 = vand.u32 2147483647, %v1231
  %vm1242 = vcmp.eq.f32.partialorder %v1241, 8.507059e+37
  %v1243 = vand.u32 %v1231, 2147483648
  %v1244 = vor.u32 1.1754944e-38, %v1243
  %v1245 = vsel %vm1242, %v1244, %v1240
  %s1246 = vtos %v1245
  %s1247 = smul.f32 3.0, %s1246
  %v1248 = vstv %s1247
  %v1249 = vmul.f32 %v1196, %v1248
  %v1250 = vmul.f32 %v1216, %v1248
  %v1251 = vtanh.pop %v1249
  %v1252 = vtanh.pop %v1250
  %1253 = vrot.lane.b32.xlu0 %v1251, 17
  %v1254 = vpop.permute.xlu0 %1253
  %1255 = vrot.lane.b32.xlu0 %v1252, 17
  %v1256 = vpop.permute.xlu0 %1255
  %v1257 = vsel %vm25, %v1254, %v1256
  %v1258 = vsel %vm25, %v1256, %v1254
  %v1259 = vld [vmem:[%s3] sm:$0xff]
  %v1260 = vld [vmem:[%s3 + $0x8] sm:$0xff]
  %v1261 = vmul.f32 %v1258, %v1259
  %v1262 = vmul.f32 %v1257, %v1260
  %1263 = vst [vmem:[#allocation2] sm:$0xff] %v1261
  %1264 = vst [vmem:[#allocation2 + $0x8] sm:$0xff] %v1262
  %1265 = vrot.lane.b32.xlu0 %v1251, 16
  %v1266 = vpop.permute.xlu0 %1265
  %1267 = vrot.lane.b32.xlu0 %v1252, 16
  %v1268 = vpop.permute.xlu0 %1267
  %v1269 = vsel %vm38, %v1266, %v1268
  %v1270 = vsel %vm38, %v1268, %v1266
  %v1271 = vld [vmem:[%s41] sm:$0xff]
  %v1272 = vld [vmem:[%s41 + $0x8] sm:$0xff]
  %v1273 = vmul.f32 %v1270, %v1271
  %v1274 = vmul.f32 %v1269, %v1272
  %1275 = vst [vmem:[#allocation2 + $0x10] sm:$0xff] %v1273
  %1276 = vst [vmem:[#allocation2 + $0x18] sm:$0xff] %v1274
  %1277 = vrot.lane.b32.xlu0 %v1251, 15
  %v1278 = vpop.permute.xlu0 %1277
  %1279 = vrot.lane.b32.xlu0 %v1252, 15
  %v1280 = vpop.permute.xlu0 %1279
  %v1281 = vsel %vm52, %v1278, %v1280
  %v1282 = vsel %vm52, %v1280, %v1278
  %v1283 = vld [vmem:[%s55] sm:$0xff]
  %v1284 = vld [vmem:[%s55 + $0x8] sm:$0xff]
  %v1285 = vmul.f32 %v1282, %v1283
  %v1286 = vmul.f32 %v1281, %v1284
  %1287 = vst [vmem:[#allocation2 + $0x20] sm:$0xff] %v1285
  %1288 = vst [vmem:[#allocation2 + $0x28] sm:$0xff] %v1286
  %1289 = vrot.lane.b32.xlu0 %v1251, 1
  %v1290 = vpop.permute.xlu0 %1289
  %1291 = vrot.lane.b32.xlu0 %v1252, 1
  %v1292 = vpop.permute.xlu0 %1291
  %v1293 = vsel %vm66, %v1290, %v1292
  %v1294 = vsel %vm66, %v1292, %v1290
  %v1295 = vld [vmem:[%s69] sm:$0xff]
  %v1296 = vld [vmem:[%s69 + $0x8] sm:$0xff]
  %v1297 = vmul.f32 %v1294, %v1295
  %v1298 = vmul.f32 %v1293, %v1296
  %1299 = vst [vmem:[#allocation2 + $0x30] sm:$0xff] %v1297
  %1300 = vst [vmem:[#allocation2 + $0x38] sm:$0xff] %v1298
  %1301 = vst [vmem:[#allocation2 + $0x40] sm:$0xff] %v1251
  %1302 = vst [vmem:[#allocation2 + $0x48] sm:$0xff] %v1252
  %1303 = vrot.lane.b32.xlu0 %v1251, 127
  %v1304 = vpop.permute.xlu0 %1303
  %1305 = vrot.lane.b32.xlu0 %v1252, 127
  %v1306 = vpop.permute.xlu0 %1305
  %v1307 = vsel %vm82, %v1304, %v1306
  %v1308 = vsel %vm82, %v1306, %v1304
  %v1309 = vld [vmem:[%s85] sm:$0xff]
  %v1310 = vld [vmem:[%s85 + $0x8] sm:$0xff]
  %v1311 = vmul.f32 %v1307, %v1309
  %v1312 = vmul.f32 %v1308, %v1310
  %1313 = vst [vmem:[#allocation2 + $0x50] sm:$0xff] %v1311
  %1314 = vst [vmem:[#allocation2 + $0x58] sm:$0xff] %v1312
  %1315 = vrot.lane.b32.xlu0 %v1251, 113
  %v1316 = vpop.permute.xlu0 %1315
  %1317 = vrot.lane.b32.xlu0 %v1252, 113
  %v1318 = vpop.permute.xlu0 %1317
  %v1319 = vsel %vm96, %v1316, %v1318
  %v1320 = vsel %vm96, %v1318, %v1316
  %v1321 = vld [vmem:[%s99] sm:$0xff]
  %v1322 = vld [vmem:[%s99 + $0x8] sm:$0xff]
  %v1323 = vmul.f32 %v1319, %v1321
  %v1324 = vmul.f32 %v1320, %v1322
  %1325 = vst [vmem:[#allocation2 + $0x60] sm:$0xff] %v1323
  %1326 = vst [vmem:[#allocation2 + $0x68] sm:$0xff] %v1324
  %1327 = vrot.lane.b32.xlu0 %v1251, 112
  %v1328 = vpop.permute.xlu0 %1327
  %1329 = vrot.lane.b32.xlu0 %v1252, 112
  %v1330 = vpop.permute.xlu0 %1329
  %v1331 = vsel %vm110, %v1328, %v1330
  %v1332 = vsel %vm110, %v1330, %v1328
  %v1333 = vld [vmem:[%s113] sm:$0xff]
  %v1334 = vld [vmem:[%s113 + $0x8] sm:$0xff]
  %v1335 = vmul.f32 %v1331, %v1333
  %v1336 = vmul.f32 %v1332, %v1334
  %1337 = vst [vmem:[#allocation2 + $0x70] sm:$0xff] %v1335
  %1338 = vst [vmem:[#allocation2 + $0x78] sm:$0xff] %v1336
  %1339 = vrot.lane.b32.xlu0 %v1251, 111
  %v1340 = vpop.permute.xlu0 %1339
  %1341 = vrot.lane.b32.xlu0 %v1252, 111
  %v1342 = vpop.permute.xlu0 %1341
  %v1343 = vsel %vm124, %v1340, %v1342
  %v1344 = vsel %vm124, %v1342, %v1340
  %v1345 = vld [vmem:[%s127] sm:$0xff]
  %v1346 = vld [vmem:[%s127 + $0x8] sm:$0xff]
  %v1347 = vmul.f32 %v1343, %v1345
  %v1348 = vmul.f32 %v1344, %v1346
  %1349 = vst [vmem:[#allocation2 + $0x80] sm:$0xff] %v1347
  %1350 = vst [vmem:[#allocation2 + $0x88] sm:$0xff] %v1348
  %s1351 = scalar_lea.vmem %s1, 48
  %v1352 = vld [vmem:[%s1351] sm:$0xff]
  %v1353 = vld [vmem:[#allocation2] sm:$0xff]
  %v1354 = vld [vmem:[#allocation2 + $0x8] sm:$0xff]
  %v1355 = vld [vmem:[#allocation2 + $0x10] sm:$0xff]
  %v1356 = vld [vmem:[#allocation2 + $0x18] sm:$0xff]
  %v1357 = vld [vmem:[#allocation2 + $0x20] sm:$0xff]
  %v1358 = vld [vmem:[#allocation2 + $0x28] sm:$0xff]
  %v1359 = vld [vmem:[#allocation2 + $0x30] sm:$0xff]
  %v1360 = vld [vmem:[#allocation2 + $0x38] sm:$0xff]
  %v1361 = vld [vmem:[#allocation2 + $0x40] sm:$0xff]
  %v1362 = vld [vmem:[#allocation2 + $0x48] sm:$0xff]
  %v1363 = vld [vmem:[#allocation2 + $0x50] sm:$0xff]
  %v1364 = vld [vmem:[#allocation2 + $0x58] sm:$0xff]
  %v1365 = vld [vmem:[#allocation2 + $0x60] sm:$0xff]
  %v1366 = vld [vmem:[#allocation2 + $0x68] sm:$0xff]
  %v1367 = vld [vmem:[#allocation2 + $0x70] sm:$0xff]
  %v1368 = vld [vmem:[#allocation2 + $0x78] sm:$0xff]
  %v1369 = vld [vmem:[#allocation2 + $0x80] sm:$0xff]
  %v1370 = vld [vmem:[#allocation2 + $0x88] sm:$0xff]
  %s1371 = scalar_lea.vmem %s2, 48
  %v1372 = vld [vmem:[%s1371] sm:$0xff]
  %1374 = vset.pattern.permute.xlu0 0
  %1375 = vperm.xlu0 %1374, %v1372
  %v1376 = vpop.permute.xlu0 %1375
  %v1379 = vsel %vm159, %v1352, 0
  %1381 = vmatpush.msra.mxu0 0.0
  %1382 = vmatpush.msra.mxu0 0.0
  %1383 = vmatpush.msra.mxu0 0.0
  %1384 = vmatpush.msra.mxu0 0.0
  %1385 = vmatpush.msra.mxu0 0.0
  %1386 = vmatpush.msra.mxu0 0.0
  %1387 = vmatpush.msra.mxu0 0.0
  %1388 = vmatpush.msra.mxu0 %v1369
  %1389 = vmatpush.msra.mxu0 %v1367
  %1390 = vmatpush.msra.mxu0 %v1365
  %1391 = vmatpush.msra.mxu0 %v1363
  %1392 = vmatpush.msra.mxu0 %v1361
  %1393 = vmatpush.msra.mxu0 %v1359
  %1394 = vmatpush.msra.mxu0 %v1357
  %1395 = vmatpush.msra.mxu0 %v1355
  %1396 = vmatpush.msra.mxu0 %v1353
  %1397 = vmatmul.f32.gmra.mxu0 %v1379
  %v1398 = vpop.f32.mrf.mxu0
  %v1399 = vadd.f32 %v1376, %v1398
  %1400 = vdwg.mxu0
  %1401 = vmatpush.msra.mxu0 0.0
  %1402 = vmatpush.msra.mxu0 0.0
  %1403 = vmatpush.msra.mxu0 0.0
  %1404 = vmatpush.msra.mxu0 0.0
  %1405 = vmatpush.msra.mxu0 0.0
  %1406 = vmatpush.msra.mxu0 0.0
  %1407 = vmatpush.msra.mxu0 0.0
  %1408 = vmatpush.msra.mxu0 %v1370
  %1409 = vmatpush.msra.mxu0 %v1368
  %1410 = vmatpush.msra.mxu0 %v1366
  %1411 = vmatpush.msra.mxu0 %v1364
  %1412 = vmatpush.msra.mxu0 %v1362
  %1413 = vmatpush.msra.mxu0 %v1360
  %1414 = vmatpush.msra.mxu0 %v1358
  %1415 = vmatpush.msra.mxu0 %v1356
  %1416 = vmatpush.msra.mxu0 %v1354
  %1417 = vmatmul.f32.gmra.mxu0 %v1379
  %v1418 = vpop.f32.mrf.mxu0
  %v1419 = vadd.f32 %v1376, %v1418
  %1420 = vdwg.mxu0
  %v1421 = vand.u32 2147483647, %v1399
  %v1422 = vand.u32 2147483647, %v1419
  %v1423 = vmax.f32 %v1421, %v1422
  %1424 = vmax.xlane.f32.xlu0 %v1423
  %v1425 = vpop.xlane.xlu0 %1424
  %v1426 = vrot.slane %v1425, 4
  %v1427 = vmax.f32 %v1425, %v1426
  %v1428 = vrot.slane %v1427, 2
  %v1429 = vmax.f32 %v1427, %v1428
  %v1430 = vrot.slane %v1429, 1
  %v1431 = vmax.f32 %v1429, %v1430
  %s1432 = vtos %v1431
  %s1433 = sadd.f32 %s1432, 1.0
  %v1434 = vstv %s1433
  %v1435 = vrcp.pop %v1434
  %v1436 = vmul.f32 %v1434, %v1435
  %v1437 = vsub.f32 1.0, %v1436
  %v1438 = vmul.f32 %v1435, %v1437
  %v1439 = vadd.f32 %v1435, %v1438
  %vm1440 = vweird.f32 %v1434
  %vm1441 = vweird.f32 %v1435
  %vm1442 = vmor %vm1440, %vm1441
  %v1443 = vsel %vm1442, %v1435, %v1439
  %v1444 = vand.u32 2147483647, %v1434
  %vm1445 = vcmp.eq.f32.partialorder %v1444, 8.507059e+37
  %v1446 = vand.u32 %v1434, 2147483648
  %v1447 = vor.u32 1.1754944e-38, %v1446
  %v1448 = vsel %vm1445, %v1447, %v1443
  %s1449 = vtos %v1448
  %s1450 = smul.f32 3.0, %s1449
  %v1451 = vstv %s1450
  %v1452 = vmul.f32 %v1399, %v1451
  %v1453 = vmul.f32 %v1419, %v1451
  %v1454 = vtanh.pop %v1452
  %v1455 = vtanh.pop %v1453
  %1456 = vrot.lane.b32.xlu0 %v1454, 17
  %v1457 = vpop.permute.xlu0 %1456
  %1458 = vrot.lane.b32.xlu0 %v1455, 17
  %v1459 = vpop.permute.xlu0 %1458
  %v1460 = vsel %vm25, %v1457, %v1459
  %v1461 = vsel %vm25, %v1459, %v1457
  %v1462 = vld [vmem:[%s3] sm:$0xff]
  %v1463 = vld [vmem:[%s3 + $0x8] sm:$0xff]
  %v1464 = vmul.f32 %v1461, %v1462
  %v1465 = vmul.f32 %v1460, %v1463
  %1466 = vst [vmem:[#allocation2] sm:$0xff] %v1464
  %1467 = vst [vmem:[#allocation2 + $0x8] sm:$0xff] %v1465
  %1468 = vrot.lane.b32.xlu0 %v1454, 16
  %v1469 = vpop.permute.xlu0 %1468
  %1470 = vrot.lane.b32.xlu0 %v1455, 16
  %v1471 = vpop.permute.xlu0 %1470
  %v1472 = vsel %vm38, %v1469, %v1471
  %v1473 = vsel %vm38, %v1471, %v1469
  %v1474 = vld [vmem:[%s41] sm:$0xff]
  %v1475 = vld [vmem:[%s41 + $0x8] sm:$0xff]
  %v1476 = vmul.f32 %v1473, %v1474
  %v1477 = vmul.f32 %v1472, %v1475
  %1478 = vst [vmem:[#allocation2 + $0x10] sm:$0xff] %v1476
  %1479 = vst [vmem:[#allocation2 + $0x18] sm:$0xff] %v1477
  %1480 = vrot.lane.b32.xlu0 %v1454, 15
  %v1481 = vpop.permute.xlu0 %1480
  %1482 = vrot.lane.b32.xlu0 %v1455, 15
  %v1483 = vpop.permute.xlu0 %1482
  %v1484 = vsel %vm52, %v1481, %v1483
  %v1485 = vsel %vm52, %v1483, %v1481
  %v1486 = vld [vmem:[%s55] sm:$0xff]
  %v1487 = vld [vmem:[%s55 + $0x8] sm:$0xff]
  %v1488 = vmul.f32 %v1485, %v1486
  %v1489 = vmul.f32 %v1484, %v1487
  %1490 = vst [vmem:[#allocation2 + $0x20] sm:$0xff] %v1488
  %1491 = vst [vmem:[#allocation2 + $0x28] sm:$0xff] %v1489
  %1492 = vrot.lane.b32.xlu0 %v1454, 1
  %v1493 = vpop.permute.xlu0 %1492
  %1494 = vrot.lane.b32.xlu0 %v1455, 1
  %v1495 = vpop.permute.xlu0 %1494
  %v1496 = vsel %vm66, %v1493, %v1495
  %v1497 = vsel %vm66, %v1495, %v1493
  %v1498 = vld [vmem:[%s69] sm:$0xff]
  %v1499 = vld [vmem:[%s69 + $0x8] sm:$0xff]
  %v1500 = vmul.f32 %v1497, %v1498
  %v1501 = vmul.f32 %v1496, %v1499
  %1502 = vst [vmem:[#allocation2 + $0x30] sm:$0xff] %v1500
  %1503 = vst [vmem:[#allocation2 + $0x38] sm:$0xff] %v1501
  %1504 = vst [vmem:[#allocation2 + $0x40] sm:$0xff] %v1454
  %1505 = vst [vmem:[#allocation2 + $0x48] sm:$0xff] %v1455
  %1506 = vrot.lane.b32.xlu0 %v1454, 127
  %v1507 = vpop.permute.xlu0 %1506
  %1508 = vrot.lane.b32.xlu0 %v1455, 127
  %v1509 = vpop.permute.xlu0 %1508
  %v1510 = vsel %vm82, %v1507, %v1509
  %v1511 = vsel %vm82, %v1509, %v1507
  %v1512 = vld [vmem:[%s85] sm:$0xff]
  %v1513 = vld [vmem:[%s85 + $0x8] sm:$0xff]
  %v1514 = vmul.f32 %v1510, %v1512
  %v1515 = vmul.f32 %v1511, %v1513
  %1516 = vst [vmem:[#allocation2 + $0x50] sm:$0xff] %v1514
  %1517 = vst [vmem:[#allocation2 + $0x58] sm:$0xff] %v1515
  %1518 = vrot.lane.b32.xlu0 %v1454, 113
  %v1519 = vpop.permute.xlu0 %1518
  %1520 = vrot.lane.b32.xlu0 %v1455, 113
  %v1521 = vpop.permute.xlu0 %1520
  %v1522 = vsel %vm96, %v1519, %v1521
  %v1523 = vsel %vm96, %v1521, %v1519
  %v1524 = vld [vmem:[%s99] sm:$0xff]
  %v1525 = vld [vmem:[%s99 + $0x8] sm:$0xff]
  %v1526 = vmul.f32 %v1522, %v1524
  %v1527 = vmul.f32 %v1523, %v1525
  %1528 = vst [vmem:[#allocation2 + $0x60] sm:$0xff] %v1526
  %1529 = vst [vmem:[#allocation2 + $0x68] sm:$0xff] %v1527
  %1530 = vrot.lane.b32.xlu0 %v1454, 112
  %v1531 = vpop.permute.xlu0 %1530
  %1532 = vrot.lane.b32.xlu0 %v1455, 112
  %v1533 = vpop.permute.xlu0 %1532
  %v1534 = vsel %vm110, %v1531, %v1533
  %v1535 = vsel %vm110, %v1533, %v1531
  %v1536 = vld [vmem:[%s113] sm:$0xff]
  %v1537 = vld [vmem:[%s113 + $0x8] sm:$0xff]
  %v1538 = vmul.f32 %v1534, %v1536
  %v1539 = vmul.f32 %v1535, %v1537
  %1540 = vst [vmem:[#allocation2 + $0x70] sm:$0xff] %v1538
  %1541 = vst [vmem:[#allocation2 + $0x78] sm:$0xff] %v1539
  %1542 = vrot.lane.b32.xlu0 %v1454, 111
  %v1543 = vpop.permute.xlu0 %1542
  %1544 = vrot.lane.b32.xlu0 %v1455, 111
  %v1545 = vpop.permute.xlu0 %1544
  %v1546 = vsel %vm124, %v1543, %v1545
  %v1547 = vsel %vm124, %v1545, %v1543
  %v1548 = vld [vmem:[%s127] sm:$0xff]
  %v1549 = vld [vmem:[%s127 + $0x8] sm:$0xff]
  %v1550 = vmul.f32 %v1546, %v1548
  %v1551 = vmul.f32 %v1547, %v1549
  %1552 = vst [vmem:[#allocation2 + $0x80] sm:$0xff] %v1550
  %1553 = vst [vmem:[#allocation2 + $0x88] sm:$0xff] %v1551
  %s1554 = scalar_lea.vmem %s1, 56
  %v1555 = vld [vmem:[%s1554] sm:$0xff]
  %v1556 = vld [vmem:[#allocation2] sm:$0xff]
  %v1557 = vld [vmem:[#allocation2 + $0x8] sm:$0xff]
  %v1558 = vld [vmem:[#allocation2 + $0x10] sm:$0xff]
  %v1559 = vld [vmem:[#allocation2 + $0x18] sm:$0xff]
  %v1560 = vld [vmem:[#allocation2 + $0x20] sm:$0xff]
  %v1561 = vld [vmem:[#allocation2 + $0x28] sm:$0xff]
  %v1562 = vld [vmem:[#allocation2 + $0x30] sm:$0xff]
  %v1563 = vld [vmem:[#allocation2 + $0x38] sm:$0xff]
  %v1564 = vld [vmem:[#allocation2 + $0x40] sm:$0xff]
  %v1565 = vld [vmem:[#allocation2 + $0x48] sm:$0xff]
  %v1566 = vld [vmem:[#allocation2 + $0x50] sm:$0xff]
  %v1567 = vld [vmem:[#allocation2 + $0x58] sm:$0xff]
  %v1568 = vld [vmem:[#allocation2 + $0x60] sm:$0xff]
  %v1569 = vld [vmem:[#allocation2 + $0x68] sm:$0xff]
  %v1570 = vld [vmem:[#allocation2 + $0x70] sm:$0xff]
  %v1571 = vld [vmem:[#allocation2 + $0x78] sm:$0xff]
  %v1572 = vld [vmem:[#allocation2 + $0x80] sm:$0xff]
  %v1573 = vld [vmem:[#allocation2 + $0x88] sm:$0xff]
  %s1574 = scalar_lea.vmem %s2, 56
  %v1575 = vld [vmem:[%s1574] sm:$0xff]
  %1577 = vset.pattern.permute.xlu0 0
  %1578 = vperm.xlu0 %1577, %v1575
  %v1579 = vpop.permute.xlu0 %1578
  %v1582 = vsel %vm159, %v1555, 0
  %1584 = vmatpush.msra.mxu0 0.0
  %1585 = vmatpush.msra.mxu0 0.0
  %1586 = vmatpush.msra.mxu0 0.0
  %1587 = vmatpush.msra.mxu0 0.0
  %1588 = vmatpush.msra.mxu0 0.0
  %1589 = vmatpush.msra.mxu0 0.0
  %1590 = vmatpush.msra.mxu0 0.0
  %1591 = vmatpush.msra.mxu0 %v1572
  %1592 = vmatpush.msra.mxu0 %v1570
  %1593 = vmatpush.msra.mxu0 %v1568
  %1594 = vmatpush.msra.mxu0 %v1566
  %1595 = vmatpush.msra.mxu0 %v1564
  %1596 = vmatpush.msra.mxu0 %v1562
  %1597 = vmatpush.msra.mxu0 %v1560
  %1598 = vmatpush.msra.mxu0 %v1558
  %1599 = vmatpush.msra.mxu0 %v1556
  %1600 = vmatmul.f32.gmra.mxu0 %v1582
  %v1601 = vpop.f32.mrf.mxu0
  %v1602 = vadd.f32 %v1579, %v1601
  %1603 = vdwg.mxu0
  %1604 = vmatpush.msra.mxu0 0.0
  %1605 = vmatpush.msra.mxu0 0.0
  %1606 = vmatpush.msra.mxu0 0.0
  %1607 = vmatpush.msra.mxu0 0.0
  %1608 = vmatpush.msra.mxu0 0.0
  %1609 = vmatpush.msra.mxu0 0.0
  %1610 = vmatpush.msra.mxu0 0.0
  %1611 = vmatpush.msra.mxu0 %v1573
  %1612 = vmatpush.msra.mxu0 %v1571
  %1613 = vmatpush.msra.mxu0 %v1569
  %1614 = vmatpush.msra.mxu0 %v1567
  %1615 = vmatpush.msra.mxu0 %v1565
  %1616 = vmatpush.msra.mxu0 %v1563
  %1617 = vmatpush.msra.mxu0 %v1561
  %1618 = vmatpush.msra.mxu0 %v1559
  %1619 = vmatpush.msra.mxu0 %v1557
  %1620 = vmatmul.f32.gmra.mxu0 %v1582
  %v1621 = vpop.f32.mrf.mxu0
  %v1622 = vadd.f32 %v1579, %v1621
  %1623 = vdwg.mxu0
  %v1624 = vand.u32 2147483647, %v1602
  %v1625 = vand.u32 2147483647, %v1622
  %v1626 = vmax.f32 %v1624, %v1625
  %1627 = vmax.xlane.f32.xlu0 %v1626
  %v1628 = vpop.xlane.xlu0 %1627
  %v1629 = vrot.slane %v1628, 4
  %v1630 = vmax.f32 %v1628, %v1629
  %v1631 = vrot.slane %v1630, 2
  %v1632 = vmax.f32 %v1630, %v1631
  %v1633 = vrot.slane %v1632, 1
  %v1634 = vmax.f32 %v1632, %v1633
  %s1635 = vtos %v1634
  %s1636 = sadd.f32 %s1635, 1.0
  %v1637 = vstv %s1636
  %v1638 = vrcp.pop %v1637
  %v1639 = vmul.f32 %v1637, %v1638
  %v1640 = vsub.f32 1.0, %v1639
  %v1641 = vmul.f32 %v1638, %v1640
  %v1642 = vadd.f32 %v1638, %v1641
  %vm1643 = vweird.f32 %v1637
  %vm1644 = vweird.f32 %v1638
  %vm1645 = vmor %vm1643, %vm1644
  %v1646 = vsel %vm1645, %v1638, %v1642
  %v1647 = vand.u32 2147483647, %v1637
  %vm1648 = vcmp.eq.f32.partialorder %v1647, 8.507059e+37
  %v1649 = vand.u32 %v1637, 2147483648
  %v1650 = vor.u32 1.1754944e-38, %v1649
  %v1651 = vsel %vm1648, %v1650, %v1646
  %s1652 = vtos %v1651
  %s1653 = smul.f32 3.0, %s1652
  %v1654 = vstv %s1653
  %v1655 = vmul.f32 %v1602, %v1654
  %v1656 = vmul.f32 %v1622, %v1654
  %v1657 = vtanh.pop %v1655
  %v1658 = vtanh.pop %v1656
  %1659 = vrot.lane.b32.xlu0 %v1657, 17
  %v1660 = vpop.permute.xlu0 %1659
  %1661 = vrot.lane.b32.xlu0 %v1658, 17
  %v1662 = vpop.permute.xlu0 %1661
  %v1663 = vsel %vm25, %v1660, %v1662
  %v1664 = vsel %vm25, %v1662, %v1660
  %v1665 = vld [vmem:[%s3] sm:$0xff]
  %v1666 = vld [vmem:[%s3 + $0x8] sm:$0xff]
  %v1667 = vmul.f32 %v1664, %v1665
  %v1668 = vmul.f32 %v1663, %v1666
  %1669 = vst [vmem:[#allocation2] sm:$0xff] %v1667
  %1670 = vst [vmem:[#allocation2 + $0x8] sm:$0xff] %v1668
  %1671 = vrot.lane.b32.xlu0 %v1657, 16
  %v1672 = vpop.permute.xlu0 %1671
  %1673 = vrot.lane.b32.xlu0 %v1658, 16
  %v1674 = vpop.permute.xlu0 %1673
  %v1675 = vsel %vm38, %v1672, %v1674
  %v1676 = vsel %vm38, %v1674, %v1672
  %v1677 = vld [vmem:[%s41] sm:$0xff]
  %v1678 = vld [vmem:[%s41 + $0x8] sm:$0xff]
  %v1679 = vmul.f32 %v1676, %v1677
  %v1680 = vmul.f32 %v1675, %v1678
  %1681 = vst [vmem:[#allocation2 + $0x10] sm:$0xff] %v1679
  %1682 = vst [vmem:[#allocation2 + $0x18] sm:$0xff] %v1680
  %1683 = vrot.lane.b32.xlu0 %v1657, 15
  %v1684 = vpop.permute.xlu0 %1683
  %1685 = vrot.lane.b32.xlu0 %v1658, 15
  %v1686 = vpop.permute.xlu0 %1685
  %v1687 = vsel %vm52, %v1684, %v1686
  %v1688 = vsel %vm52, %v1686, %v1684
  %v1689 = vld [vmem:[%s55] sm:$0xff]
  %v1690 = vld [vmem:[%s55 + $0x8] sm:$0xff]
  %v1691 = vmul.f32 %v1688, %v1689
  %v1692 = vmul.f32 %v1687, %v1690
  %1693 = vst [vmem:[#allocation2 + $0x20] sm:$0xff] %v1691
  %1694 = vst [vmem:[#allocation2 + $0x28] sm:$0xff] %v1692
  %1695 = vrot.lane.b32.xlu0 %v1657, 1
  %v1696 = vpop.permute.xlu0 %1695
  %1697 = vrot.lane.b32.xlu0 %v1658, 1
  %v1698 = vpop.permute.xlu0 %1697
  %v1699 = vsel %vm66, %v1696, %v1698
  %v1700 = vsel %vm66, %v1698, %v1696
  %v1701 = vld [vmem:[%s69] sm:$0xff]
  %v1702 = vld [vmem:[%s69 + $0x8] sm:$0xff]
  %v1703 = vmul.f32 %v1700, %v1701
  %v1704 = vmul.f32 %v1699, %v1702
  %1705 = vst [vmem:[#allocation2 + $0x30] sm:$0xff] %v1703
  %1706 = vst [vmem:[#allocation2 + $0x38] sm:$0xff] %v1704
  %1707 = vst [vmem:[#allocation2 + $0x40] sm:$0xff] %v1657
  %1708 = vst [vmem:[#allocation2 + $0x48] sm:$0xff] %v1658
  %1709 = vrot.lane.b32.xlu0 %v1657, 127
  %v1710 = vpop.permute.xlu0 %1709
  %1711 = vrot.lane.b32.xlu0 %v1658, 127
  %v1712 = vpop.permute.xlu0 %1711
  %v1713 = vsel %vm82, %v1710, %v1712
  %v1714 = vsel %vm82, %v1712, %v1710
  %v1715 = vld [vmem:[%s85] sm:$0xff]
  %v1716 = vld [vmem:[%s85 + $0x8] sm:$0xff]
  %v1717 = vmul.f32 %v1713, %v1715
  %v1718 = vmul.f32 %v1714, %v1716
  %1719 = vst [vmem:[#allocation2 + $0x50] sm:$0xff] %v1717
  %1720 = vst [vmem:[#allocation2 + $0x58] sm:$0xff] %v1718
  %1721 = vrot.lane.b32.xlu0 %v1657, 113
  %v1722 = vpop.permute.xlu0 %1721
  %1723 = vrot.lane.b32.xlu0 %v1658, 113
  %v1724 = vpop.permute.xlu0 %1723
  %v1725 = vsel %vm96, %v1722, %v1724
  %v1726 = vsel %vm96, %v1724, %v1722
  %v1727 = vld [vmem:[%s99] sm:$0xff]
  %v1728 = vld [vmem:[%s99 + $0x8] sm:$0xff]
  %v1729 = vmul.f32 %v1725, %v1727
  %v1730 = vmul.f32 %v1726, %v1728
  %1731 = vst [vmem:[#allocation2 + $0x60] sm:$0xff] %v1729
  %1732 = vst [vmem:[#allocation2 + $0x68] sm:$0xff] %v1730
  %1733 = vrot.lane.b32.xlu0 %v1657, 112
  %v1734 = vpop.permute.xlu0 %1733
  %1735 = vrot.lane.b32.xlu0 %v1658, 112
  %v1736 = vpop.permute.xlu0 %1735
  %v1737 = vsel %vm110, %v1734, %v1736
  %v1738 = vsel %vm110, %v1736, %v1734
  %v1739 = vld [vmem:[%s113] sm:$0xff]
  %v1740 = vld [vmem:[%s113 + $0x8] sm:$0xff]
  %v1741 = vmul.f32 %v1737, %v1739
  %v1742 = vmul.f32 %v1738, %v1740
  %1743 = vst [vmem:[#allocation2 + $0x70] sm:$0xff] %v1741
  %1744 = vst [vmem:[#allocation2 + $0x78] sm:$0xff] %v1742
  %1745 = vrot.lane.b32.xlu0 %v1657, 111
  %v1746 = vpop.permute.xlu0 %1745
  %1747 = vrot.lane.b32.xlu0 %v1658, 111
  %v1748 = vpop.permute.xlu0 %1747
  %v1749 = vsel %vm124, %v1746, %v1748
  %v1750 = vsel %vm124, %v1748, %v1746
  %v1751 = vld [vmem:[%s127] sm:$0xff]
  %v1752 = vld [vmem:[%s127 + $0x8] sm:$0xff]
  %v1753 = vmul.f32 %v1749, %v1751
  %v1754 = vmul.f32 %v1750, %v1752
  %1755 = vst [vmem:[#allocation2 + $0x80] sm:$0xff] %v1753
  %1756 = vst [vmem:[#allocation2 + $0x88] sm:$0xff] %v1754
  %s1757 = scalar_lea.vmem %s1, 64
  %v1758 = vld [vmem:[%s1757] sm:$0xff]
  %v1759 = vld [vmem:[#allocation2] sm:$0xff]
  %v1760 = vld [vmem:[#allocation2 + $0x8] sm:$0xff]
  %v1761 = vld [vmem:[#allocation2 + $0x10] sm:$0xff]
  %v1762 = vld [vmem:[#allocation2 + $0x18] sm:$0xff]
  %v1763 = vld [vmem:[#allocation2 + $0x20] sm:$0xff]
  %v1764 = vld [vmem:[#allocation2 + $0x28] sm:$0xff]
  %v1765 = vld [vmem:[#allocation2 + $0x30] sm:$0xff]
  %v1766 = vld [vmem:[#allocation2 + $0x38] sm:$0xff]
  %v1767 = vld [vmem:[#allocation2 + $0x40] sm:$0xff]
  %v1768 = vld [vmem:[#allocation2 + $0x48] sm:$0xff]
  %v1769 = vld [vmem:[#allocation2 + $0x50] sm:$0xff]
  %v1770 = vld [vmem:[#allocation2 + $0x58] sm:$0xff]
  %v1771 = vld [vmem:[#allocation2 + $0x60] sm:$0xff]
  %v1772 = vld [vmem:[#allocation2 + $0x68] sm:$0xff]
  %v1773 = vld [vmem:[#allocation2 + $0x70] sm:$0xff]
  %v1774 = vld [vmem:[#allocation2 + $0x78] sm:$0xff]
  %v1775 = vld [vmem:[#allocation2 + $0x80] sm:$0xff]
  %v1776 = vld [vmem:[#allocation2 + $0x88] sm:$0xff]
  %s1777 = scalar_lea.vmem %s2, 64
  %v1778 = vld [vmem:[%s1777] sm:$0xff]
  %1780 = vset.pattern.permute.xlu0 0
  %1781 = vperm.xlu0 %1780, %v1778
  %v1782 = vpop.permute.xlu0 %1781
  %v1785 = vsel %vm159, %v1758, 0
  %1787 = vmatpush.msra.mxu0 0.0
  %1788 = vmatpush.msra.mxu0 0.0
  %1789 = vmatpush.msra.mxu0 0.0
  %1790 = vmatpush.msra.mxu0 0.0
  %1791 = vmatpush.msra.mxu0 0.0
  %1792 = vmatpush.msra.mxu0 0.0
  %1793 = vmatpush.msra.mxu0 0.0
  %1794 = vmatpush.msra.mxu0 %v1775
  %1795 = vmatpush.msra.mxu0 %v1773
  %1796 = vmatpush.msra.mxu0 %v1771
  %1797 = vmatpush.msra.mxu0 %v1769
  %1798 = vmatpush.msra.mxu0 %v1767
  %1799 = vmatpush.msra.mxu0 %v1765
  %1800 = vmatpush.msra.mxu0 %v1763
  %1801 = vmatpush.msra.mxu0 %v1761
  %1802 = vmatpush.msra.mxu0 %v1759
  %1803 = vmatmul.f32.gmra.mxu0 %v1785
  %v1804 = vpop.f32.mrf.mxu0
  %v1805 = vadd.f32 %v1782, %v1804
  %1806 = vdwg.mxu0
  %1807 = vmatpush.msra.mxu0 0.0
  %1808 = vmatpush.msra.mxu0 0.0
  %1809 = vmatpush.msra.mxu0 0.0
  %1810 = vmatpush.msra.mxu0 0.0
  %1811 = vmatpush.msra.mxu0 0.0
  %1812 = vmatpush.msra.mxu0 0.0
  %1813 = vmatpush.msra.mxu0 0.0
  %1814 = vmatpush.msra.mxu0 %v1776
  %1815 = vmatpush.msra.mxu0 %v1774
  %1816 = vmatpush.msra.mxu0 %v1772
  %1817 = vmatpush.msra.mxu0 %v1770
  %1818 = vmatpush.msra.mxu0 %v1768
  %1819 = vmatpush.msra.mxu0 %v1766
  %1820 = vmatpush.msra.mxu0 %v1764
  %1821 = vmatpush.msra.mxu0 %v1762
  %1822 = vmatpush.msra.mxu0 %v1760
  %1823 = vmatmul.f32.gmra.mxu0 %v1785
  %v1824 = vpop.f32.mrf.mxu0
  %v1825 = vadd.f32 %v1782, %v1824
  %1826 = vdwg.mxu0
  %v1827 = vand.u32 2147483647, %v1805
  %v1828 = vand.u32 2147483647, %v1825
  %v1829 = vmax.f32 %v1827, %v1828
  %1830 = vmax.xlane.f32.xlu0 %v1829
  %v1831 = vpop.xlane.xlu0 %1830
  %v1832 = vrot.slane %v1831, 4
  %v1833 = vmax.f32 %v1831, %v1832
  %v1834 = vrot.slane %v1833, 2
  %v1835 = vmax.f32 %v1833, %v1834
  %v1836 = vrot.slane %v1835, 1
  %v1837 = vmax.f32 %v1835, %v1836
  %s1838 = vtos %v1837
  %s1839 = sadd.f32 %s1838, 1.0
  %v1840 = vstv %s1839
  %v1841 = vrcp.pop %v1840
  %v1842 = vmul.f32 %v1840, %v1841
  %v1843 = vsub.f32 1.0, %v1842
  %v1844 = vmul.f32 %v1841, %v1843
  %v1845 = vadd.f32 %v1841, %v1844
  %vm1846 = vweird.f32 %v1840
  %vm1847 = vweird.f32 %v1841
  %vm1848 = vmor %vm1846, %vm1847
  %v1849 = vsel %vm1848, %v1841, %v1845
  %v1850 = vand.u32 2147483647, %v1840
  %vm1851 = vcmp.eq.f32.partialorder %v1850, 8.507059e+37
  %v1852 = vand.u32 %v1840, 2147483648
  %v1853 = vor.u32 1.1754944e-38, %v1852
  %v1854 = vsel %vm1851, %v1853, %v1849
  %s1855 = vtos %v1854
  %s1856 = smul.f32 3.0, %s1855
  %v1857 = vstv %s1856
  %v1858 = vmul.f32 %v1805, %v1857
  %v1859 = vmul.f32 %v1825, %v1857
  %v1860 = vtanh.pop %v1858
  %v1861 = vtanh.pop %v1859
  %1862 = vrot.lane.b32.xlu0 %v1860, 17
  %v1863 = vpop.permute.xlu0 %1862
  %1864 = vrot.lane.b32.xlu0 %v1861, 17
  %v1865 = vpop.permute.xlu0 %1864
  %v1866 = vsel %vm25, %v1863, %v1865
  %v1867 = vsel %vm25, %v1865, %v1863
  %v1868 = vld [vmem:[%s3] sm:$0xff]
  %v1869 = vld [vmem:[%s3 + $0x8] sm:$0xff]
  %v1870 = vmul.f32 %v1867, %v1868
  %v1871 = vmul.f32 %v1866, %v1869
  %1872 = vst [vmem:[#allocation2] sm:$0xff] %v1870
  %1873 = vst [vmem:[#allocation2 + $0x8] sm:$0xff] %v1871
  %1874 = vrot.lane.b32.xlu0 %v1860, 16
  %v1875 = vpop.permute.xlu0 %1874
  %1876 = vrot.lane.b32.xlu0 %v1861, 16
  %v1877 = vpop.permute.xlu0 %1876
  %v1878 = vsel %vm38, %v1875, %v1877
  %v1879 = vsel %vm38, %v1877, %v1875
  %v1880 = vld [vmem:[%s41] sm:$0xff]
  %v1881 = vld [vmem:[%s41 + $0x8] sm:$0xff]
  %v1882 = vmul.f32 %v1879, %v1880
  %v1883 = vmul.f32 %v1878, %v1881
  %1884 = vst [vmem:[#allocation2 + $0x10] sm:$0xff] %v1882
  %1885 = vst [vmem:[#allocation2 + $0x18] sm:$0xff] %v1883
  %1886 = vrot.lane.b32.xlu0 %v1860, 15
  %v1887 = vpop.permute.xlu0 %1886
  %1888 = vrot.lane.b32.xlu0 %v1861, 15
  %v1889 = vpop.permute.xlu0 %1888
  %v1890 = vsel %vm52, %v1887, %v1889
  %v1891 = vsel %vm52, %v1889, %v1887
  %v1892 = vld [vmem:[%s55] sm:$0xff]
  %v1893 = vld [vmem:[%s55 + $0x8] sm:$0xff]
  %v1894 = vmul.f32 %v1891, %v1892
  %v1895 = vmul.f32 %v1890, %v1893
  %1896 = vst [vmem:[#allocation2 + $0x20] sm:$0xff] %v1894
  %1897 = vst [vmem:[#allocation2 + $0x28] sm:$0xff] %v1895
  %1898 = vrot.lane.b32.xlu0 %v1860, 1
  %v1899 = vpop.permute.xlu0 %1898
  %1900 = vrot.lane.b32.xlu0 %v1861, 1
  %v1901 = vpop.permute.xlu0 %1900
  %v1902 = vsel %vm66, %v1899, %v1901
  %v1903 = vsel %vm66, %v1901, %v1899
  %v1904 = vld [vmem:[%s69] sm:$0xff]
  %v1905 = vld [vmem:[%s69 + $0x8] sm:$0xff]
  %v1906 = vmul.f32 %v1903, %v1904
  %v1907 = vmul.f32 %v1902, %v1905
  %1908 = vst [vmem:[#allocation2 + $0x30] sm:$0xff] %v1906
  %1909 = vst [vmem:[#allocation2 + $0x38] sm:$0xff] %v1907
  %1910 = vst [vmem:[#allocation2 + $0x40] sm:$0xff] %v1860
  %1911 = vst [vmem:[#allocation2 + $0x48] sm:$0xff] %v1861
  %1912 = vrot.lane.b32.xlu0 %v1860, 127
  %v1913 = vpop.permute.xlu0 %1912
  %1914 = vrot.lane.b32.xlu0 %v1861, 127
  %v1915 = vpop.permute.xlu0 %1914
  %v1916 = vsel %vm82, %v1913, %v1915
  %v1917 = vsel %vm82, %v1915, %v1913
  %v1918 = vld [vmem:[%s85] sm:$0xff]
  %v1919 = vld [vmem:[%s85 + $0x8] sm:$0xff]
  %v1920 = vmul.f32 %v1916, %v1918
  %v1921 = vmul.f32 %v1917, %v1919
  %1922 = vst [vmem:[#allocation2 + $0x50] sm:$0xff] %v1920
  %1923 = vst [vmem:[#allocation2 + $0x58] sm:$0xff] %v1921
  %1924 = vrot.lane.b32.xlu0 %v1860, 113
  %v1925 = vpop.permute.xlu0 %1924
  %1926 = vrot.lane.b32.xlu0 %v1861, 113
  %v1927 = vpop.permute.xlu0 %1926
  %v1928 = vsel %vm96, %v1925, %v1927
  %v1929 = vsel %vm96, %v1927, %v1925
  %v1930 = vld [vmem:[%s99] sm:$0xff]
  %v1931 = vld [vmem:[%s99 + $0x8] sm:$0xff]
  %v1932 = vmul.f32 %v1928, %v1930
  %v1933 = vmul.f32 %v1929, %v1931
  %1934 = vst [vmem:[#allocation2 + $0x60] sm:$0xff] %v1932
  %1935 = vst [vmem:[#allocation2 + $0x68] sm:$0xff] %v1933
  %1936 = vrot.lane.b32.xlu0 %v1860, 112
  %v1937 = vpop.permute.xlu0 %1936
  %1938 = vrot.lane.b32.xlu0 %v1861, 112
  %v1939 = vpop.permute.xlu0 %1938
  %v1940 = vsel %vm110, %v1937, %v1939
  %v1941 = vsel %vm110, %v1939, %v1937
  %v1942 = vld [vmem:[%s113] sm:$0xff]
  %v1943 = vld [vmem:[%s113 + $0x8] sm:$0xff]
  %v1944 = vmul.f32 %v1940, %v1942
  %v1945 = vmul.f32 %v1941, %v1943
  %1946 = vst [vmem:[#allocation2 + $0x70] sm:$0xff] %v1944
  %1947 = vst [vmem:[#allocation2 + $0x78] sm:$0xff] %v1945
  %1948 = vrot.lane.b32.xlu0 %v1860, 111
  %v1949 = vpop.permute.xlu0 %1948
  %1950 = vrot.lane.b32.xlu0 %v1861, 111
  %v1951 = vpop.permute.xlu0 %1950
  %v1952 = vsel %vm124, %v1949, %v1951
  %v1953 = vsel %vm124, %v1951, %v1949
  %v1954 = vld [vmem:[%s127] sm:$0xff]
  %v1955 = vld [vmem:[%s127 + $0x8] sm:$0xff]
  %v1956 = vmul.f32 %v1952, %v1954
  %v1957 = vmul.f32 %v1953, %v1955
  %1958 = vst [vmem:[#allocation2 + $0x80] sm:$0xff] %v1956
  %1959 = vst [vmem:[#allocation2 + $0x88] sm:$0xff] %v1957
  %s1960 = scalar_lea.vmem %s1, 72
  %v1961 = vld [vmem:[%s1960] sm:$0xff]
  %v1962 = vld [vmem:[#allocation2] sm:$0xff]
  %v1963 = vld [vmem:[#allocation2 + $0x8] sm:$0xff]
  %v1964 = vld [vmem:[#allocation2 + $0x10] sm:$0xff]
  %v1965 = vld [vmem:[#allocation2 + $0x18] sm:$0xff]
  %v1966 = vld [vmem:[#allocation2 + $0x20] sm:$0xff]
  %v1967 = vld [vmem:[#allocation2 + $0x28] sm:$0xff]
  %v1968 = vld [vmem:[#allocation2 + $0x30] sm:$0xff]
  %v1969 = vld [vmem:[#allocation2 + $0x38] sm:$0xff]
  %v1970 = vld [vmem:[#allocation2 + $0x40] sm:$0xff]
  %v1971 = vld [vmem:[#allocation2 + $0x48] sm:$0xff]
  %v1972 = vld [vmem:[#allocation2 + $0x50] sm:$0xff]
  %v1973 = vld [vmem:[#allocation2 + $0x58] sm:$0xff]
  %v1974 = vld [vmem:[#allocation2 + $0x60] sm:$0xff]
  %v1975 = vld [vmem:[#allocation2 + $0x68] sm:$0xff]
  %v1976 = vld [vmem:[#allocation2 + $0x70] sm:$0xff]
  %v1977 = vld [vmem:[#allocation2 + $0x78] sm:$0xff]
  %v1978 = vld [vmem:[#allocation2 + $0x80] sm:$0xff]
  %v1979 = vld [vmem:[#allocation2 + $0x88] sm:$0xff]
  %s1980 = scalar_lea.vmem %s2, 72
  %v1981 = vld [vmem:[%s1980] sm:$0xff]
  %1983 = vset.pattern.permute.xlu0 0
  %1984 = vperm.xlu0 %1983, %v1981
  %v1985 = vpop.permute.xlu0 %1984
  %v1988 = vsel %vm159, %v1961, 0
  %1990 = vmatpush.msra.mxu0 0.0
  %1991 = vmatpush.msra.mxu0 0.0
  %1992 = vmatpush.msra.mxu0 0.0
  %1993 = vmatpush.msra.mxu0 0.0
  %1994 = vmatpush.msra.mxu0 0.0
  %1995 = vmatpush.msra.mxu0 0.0
  %1996 = vmatpush.msra.mxu0 0.0
  %1997 = vmatpush.msra.mxu0 %v1978
  %1998 = vmatpush.msra.mxu0 %v1976
  %1999 = vmatpush.msra.mxu0 %v1974
  %2000 = vmatpush.msra.mxu0 %v1972
  %2001 = vmatpush.msra.mxu0 %v1970
  %2002 = vmatpush.msra.mxu0 %v1968
  %2003 = vmatpush.msra.mxu0 %v1966
  %2004 = vmatpush.msra.mxu0 %v1964
  %2005 = vmatpush.msra.mxu0 %v1962
  %2006 = vmatmul.f32.gmra.mxu0 %v1988
  %v2007 = vpop.f32.mrf.mxu0
  %v2008 = vadd.f32 %v1985, %v2007
  %2009 = vdwg.mxu0
  %2010 = vmatpush.msra.mxu0 0.0
  %2011 = vmatpush.msra.mxu0 0.0
  %2012 = vmatpush.msra.mxu0 0.0
  %2013 = vmatpush.msra.mxu0 0.0
  %2014 = vmatpush.msra.mxu0 0.0
  %2015 = vmatpush.msra.mxu0 0.0
  %2016 = vmatpush.msra.mxu0 0.0
  %2017 = vmatpush.msra.mxu0 %v1979
  %2018 = vmatpush.msra.mxu0 %v1977
  %2019 = vmatpush.msra.mxu0 %v1975
  %2020 = vmatpush.msra.mxu0 %v1973
  %2021 = vmatpush.msra.mxu0 %v1971
  %2022 = vmatpush.msra.mxu0 %v1969
  %2023 = vmatpush.msra.mxu0 %v1967
  %2024 = vmatpush.msra.mxu0 %v1965
  %2025 = vmatpush.msra.mxu0 %v1963
  %2026 = vmatmul.f32.gmra.mxu0 %v1988
  %v2027 = vpop.f32.mrf.mxu0
  %v2028 = vadd.f32 %v1985, %v2027
  %2029 = vdwg.mxu0
  %v2030 = vand.u32 2147483647, %v2008
  %v2031 = vand.u32 2147483647, %v2028
  %v2032 = vmax.f32 %v2030, %v2031
  %2033 = vmax.xlane.f32.xlu0 %v2032
  %v2034 = vpop.xlane.xlu0 %2033
  %v2035 = vrot.slane %v2034, 4
  %v2036 = vmax.f32 %v2034, %v2035
  %v2037 = vrot.slane %v2036, 2
  %v2038 = vmax.f32 %v2036, %v2037
  %v2039 = vrot.slane %v2038, 1
  %v2040 = vmax.f32 %v2038, %v2039
  %s2041 = vtos %v2040
  %s2042 = sadd.f32 %s2041, 1.0
  %v2043 = vstv %s2042
  %v2044 = vrcp.pop %v2043
  %v2045 = vmul.f32 %v2043, %v2044
  %v2046 = vsub.f32 1.0, %v2045
  %v2047 = vmul.f32 %v2044, %v2046
  %v2048 = vadd.f32 %v2044, %v2047
  %vm2049 = vweird.f32 %v2043
  %vm2050 = vweird.f32 %v2044
  %vm2051 = vmor %vm2049, %vm2050
  %v2052 = vsel %vm2051, %v2044, %v2048
  %v2053 = vand.u32 2147483647, %v2043
  %vm2054 = vcmp.eq.f32.partialorder %v2053, 8.507059e+37
  %v2055 = vand.u32 %v2043, 2147483648
  %v2056 = vor.u32 1.1754944e-38, %v2055
  %v2057 = vsel %vm2054, %v2056, %v2052
  %s2058 = vtos %v2057
  %s2059 = smul.f32 3.0, %s2058
  %v2060 = vstv %s2059
  %v2061 = vmul.f32 %v2008, %v2060
  %v2062 = vmul.f32 %v2028, %v2060
  %v2063 = vtanh.pop %v2061
  %v2064 = vtanh.pop %v2062
  %v2065 = vsub.f32 %v2063, 0.5
  %v2066 = vsub.f32 %v2064, 0.5
  %v2067 = vand.u32 2147483647, %v2065
  %v2068 = vand.u32 2147483647, %v2066
  %vm2069 = vcmp.le.f32.partialorder %v2067, 0.3
  %vm2070 = vcmp.le.f32.partialorder %v2068, 0.3
  %v2071 = vsel %vm2069, 1.0, 0.5
  %v2072 = vsel %vm2070, 1.0, 0.5
  %v2073 = vadd.f32 %v2063, 0.5
  %v2074 = vadd.f32 %v2064, 0.5
  %v2075 = vand.u32 2147483647, %v2073
  %v2076 = vand.u32 2147483647, %v2074
  %vm2077 = vcmp.le.f32.partialorder %v2075, 0.3
  %vm2078 = vcmp.le.f32.partialorder %v2076, 0.3
  %v2079 = vsel %vm2077, 0.0, %v2071
  %v2080 = vsel %vm2078, 0.0, %v2072
  %2081 = vst [vmem:[%s4] sm:$0xff] %v2079
  %2082 = vst [vmem:[%s4 + $0x8] sm:$0xff] %v2080
  // Predicated region
  $region18: #{bstc_forward.1} parent=0 // pred_check
    _
  $region19: #{bstc_forward.1} parent=0 // pred_check_branch
    %2084 = sbr.rel (0) target = $region21
  $region20: #{bstc_forward.1} parent=0 // pred_region
    _
  $region21: #{bstc_forward.1} parent=0 // pred_fallthru
    _
  // Predicated region
  $region22: #{bstc_forward.1} parent=0 // pred_check
    _
  $region23: #{bstc_forward.1} parent=0 // pred_check_branch
    %2086 = sbr.rel (0) target = $region25
  $region24: #{bstc_forward.1} parent=0 // pred_region
    _
  $region25: #{bstc_forward.1} parent=0 // pred_fallthru
    _

</llo_original>
